<compile_context>
chip_gen: v5e
topology: v5e:2x2
jax: 0.10.0
libtpu: 0.0.40
codegen_flags: <defaults>
</compile_context>

<pallas_src>
import functools

import jax
import jax.numpy as jnp
from jax.experimental import pallas as pl
from jax.experimental.pallas import tpu as pltpu

_NW = 10  # arrays per GRU layer passed to the fused kernel


# ----------------------------------------------------------------------------
# Fused kernel: all GRU layers + FC head, single grid point.
# ----------------------------------------------------------------------------
def _make_fused_kernel(n_layers, seq_len, bp, hidden_dim, unroll_limit=32):
    """bp = padded batch (multiple of 8).  Activation slabs are (seq*bp, H),
    time-major rows (row = t*bp + b)."""

    def kernel(*refs):
        x_ref = refs[0]
        h0_ref = refs[1]
        layer_refs = [refs[2 + l * _NW: 2 + (l + 1) * _NW] for l in range(n_layers)]
        fc_idx = 2 + n_layers * _NW
        fcw_ref = refs[fc_idx]          # (H, O)
        fcb_ref = refs[fc_idx + 1]      # (1, O)
        logits_ref = refs[fc_idx + 2]   # (seq*bp, O)
        hfin_ref = refs[fc_idx + 3]     # (L, bp, H)
        gir_ref, giz_ref, gin_ref, act_ref = refs[fc_idx + 4:]

        for l in range(n_layers):
            (w_ir, w_iz, w_in, w_hr, w_hz, w_hn,
             b_r, b_z, b_n, b_hn) = layer_refs[l]

            # --- whole-sequence input projections: big MXU matmuls, hoisted
            # out of the serial recurrence (per-gate weights => no lane-
            # crossing gate slices).
            cur = x_ref[...] if l == 0 else act_ref[...]
            gir_ref[...] = jnp.dot(cur, w_ir[...],
                                   preferred_element_type=jnp.float32) + b_r[...]
            giz_ref[...] = jnp.dot(cur, w_iz[...],
                                   preferred_element_type=jnp.float32) + b_z[...]
            gin_ref[...] = jnp.dot(cur, w_in[...],
                                   preferred_element_type=jnp.float32) + b_n[...]

            # hidden->hidden weights loaded once, resident across the loop.
            whr = w_hr[...]
            whz = w_hz[...]
            whn = w_hn[...]
            bhn = b_hn[...]

            def step(t, h, whr=whr, whz=whz, whn=whn, bhn=bhn):
                off = t * bp
                if not isinstance(off, int):
                    off = pl.multiple_of(off, bp)
                g_r = gir_ref[pl.ds(off, bp), :]
                g_z = giz_ref[pl.ds(off, bp), :]
                g_n = gin_ref[pl.ds(off, bp), :]
                r = jax.nn.sigmoid(
                    g_r + jnp.dot(h, whr, preferred_element_type=jnp.float32))
                z = jax.nn.sigmoid(
                    g_z + jnp.dot(h, whz, preferred_element_type=jnp.float32))
                n = jnp.tanh(
                    g_n + r * (jnp.dot(h, whn,
                                       preferred_element_type=jnp.float32) + bhn))
                h_new = (1.0 - z) * n + z * h
                act_ref[pl.ds(off, bp), :] = h_new
                return h_new

            h = h0_ref[l].astype(jnp.float32)          # (bp, H)
            if seq_len <= unroll_limit:
                for t in range(seq_len):               # fully unrolled, static slices
                    h = step(t, h)
            else:                                      # long sequences: in-kernel loop
                h = jax.lax.fori_loop(0, seq_len, step, h)
            hfin_ref[l] = h

        # --- FC head fused: one matmul over the whole final activation slab.
        logits_ref[...] = (
            jnp.dot(act_ref[...], fcw_ref[...],
                    preferred_element_type=jnp.float32) + fcb_ref[...])

    return kernel


def _full_spec(shape):
    nd = len(shape)
    return pl.BlockSpec(shape, lambda i, nd=nd: (0,) * nd)


# ----------------------------------------------------------------------------
# Full AliceModel forward (one pallas_call).
# ----------------------------------------------------------------------------
def alice_forward(prepared, x, hidden=None):
    """x: (B, S, input_size), batch_first like the PyTorch module.

    Returns (out, hidden): out (B*S, output_size), hidden (n_layers, B, H)."""
    layers = prepared["layers"]
    n_layers = len(layers)
    hidden_dim = layers[0]["w_hr"].shape[0]
    out_dim = prepared["fc_w_t"].shape[1]
    batch, seq, in_dim = x.shape
    bp = ((batch + 7) // 8) * 8            # pad batch to a sublane multiple

    x = x.astype(jnp.float32)
    xp = jnp.pad(x, ((0, bp - batch), (0, 0), (0, 0)))               # (bp, S, I)
    x_tm = jnp.transpose(xp, (1, 0, 2)).reshape(seq * bp, in_dim)    # time-major rows

    if hidden is None:
        h0 = jnp.zeros((n_layers, bp, hidden_dim), jnp.float32)
    else:
        h0 = jnp.pad(hidden.astype(jnp.float32),
                     ((0, 0), (0, bp - batch), (0, 0)))

    flat_inputs = [x_tm, h0]
    for lp in layers:
        flat_inputs += [lp["w_ir"], lp["w_iz"], lp["w_in"],
                        lp["w_hr"], lp["w_hz"], lp["w_hn"],
                        lp["b_r"], lp["b_z"], lp["b_n"], lp["b_hn"]]
    flat_inputs += [prepared["fc_w_t"], prepared["fc_b"]]

    kernel = _make_fused_kernel(n_layers, seq, bp, hidden_dim)

    out_shape = (jax.ShapeDtypeStruct((seq * bp, out_dim), jnp.float32),
                 jax.ShapeDtypeStruct((n_layers, bp, hidden_dim), jnp.float32))

    logits_tm, h_fin = pl.pallas_call(
        kernel,
        out_shape=out_shape,
        grid_spec=pltpu.PrefetchScalarGridSpec(
            num_scalar_prefetch=0,
            grid=(1,),
            in_specs=[_full_spec(a.shape) for a in flat_inputs],
            out_specs=(_full_spec((seq * bp, out_dim)),
                       _full_spec((n_layers, bp, hidden_dim))),
            scratch_shapes=[pltpu.VMEM((seq * bp, hidden_dim), jnp.float32)
                            for _ in range(4)],
        ),
        compiler_params=pltpu.CompilerParams(
            dimension_semantics=("arbitrary",)),
    )(*flat_inputs)

    # Tiny final reorder of the logits (time-major -> batch-first flatten),
    # matching out.contiguous().view(-1, hidden_dim) then fc in PyTorch.
    logits = (logits_tm.reshape(seq, bp, out_dim)[:, :batch, :]
              .transpose(1, 0, 2)
              .reshape(batch * seq, out_dim))
    h_out = h_fin[:, :batch, :]
    return logits, jax.lax.stop_gradient(h_out)      # hidden.detach()


# ----------------------------------------------------------------------------
# Parameters: torch-layout init + one-time layout prep (per-gate transposed
# weights, folded biases) so no transposes sit on the forward critical path.
# ----------------------------------------------------------------------------
def init_params(key, input_size, output_size, hidden_dim, n_layers):
    bound = 1.0 / jnp.sqrt(hidden_dim)
    params = {"gru": []}
    for l in range(n_layers):
        in_sz = input_size if l == 0 else hidden_dim
        key, k1, k2, k3, k4 = jax.random.split(key, 5)
        params["gru"].append({
            "w_ih": jax.random.uniform(k1, (3 * hidden_dim, in_sz),
                                       jnp.float32, -bound, bound),
            "w_hh": jax.random.uniform(k2, (3 * hidden_dim, hidden_dim),
                                       jnp.float32, -bound, bound),
            "b_ih": jax.random.uniform(k3, (3 * hidden_dim,),
                                       jnp.float32, -bound, bound),
            "b_hh": jax.random.uniform(k4, (3 * hidden_dim,),
                                       jnp.float32, -bound, bound),
        })
    key, k1, k2 = jax.random.split(key, 3)
    params["fc_w"] = jax.random.uniform(k1, (output_size, hidden_dim),
                                        jnp.float32, -bound, bound)
    params["fc_b"] = jax.random.uniform(k2, (output_size,),
                                        jnp.float32, -bound, bound)
    return params


def prepare_params(params):
    prepared = {"layers": []}
    for p in params["gru"]:
        w_ih, w_hh, b_ih, b_hh = p["w_ih"], p["w_hh"], p["b_ih"], p["b_hh"]
        H = w_hh.shape[1]
        prepared["layers"].append({
            "w_ir": jnp.transpose(w_ih[0:H]),              # (in, H)
            "w_iz": jnp.transpose(w_ih[H:2 * H]),
            "w_in": jnp.transpose(w_ih[2 * H:3 * H]),
            "w_hr": jnp.transpose(w_hh[0:H]),              # (H, H)
            "w_hz": jnp.transpose(w_hh[H:2 * H]),
            "w_hn": jnp.transpose(w_hh[2 * H:3 * H]),
            "b_r": (b_ih[0:H] + b_hh[0:H]).reshape(1, H),          # folded
            "b_z": (b_ih[H:2 * H] + b_hh[H:2 * H]).reshape(1, H),  # folded
            "b_n": b_ih[2 * H:3 * H].reshape(1, H),                # input-side n bias
            "b_hn": b_hh[2 * H:3 * H].reshape(1, H),               # hidden-side n bias
        })
    prepared["fc_w_t"] = jnp.transpose(params["fc_w"])     # (H, O)
    prepared["fc_b"] = params["fc_b"].reshape(1, -1)       # (1, O)
    return prepared


if __name__ == "__main__":
    input_size, output_size, hidden_dim, n_layers = 16, 16, 32, 2
    batch, seq = 2, 8

    key = jax.random.PRNGKey(0)
    key, pkey, xkey = jax.random.split(key, 3)
    raw_params = init_params(pkey, input_size, output_size, hidden_dim, n_layers)
    prepared = prepare_params(raw_params)          # one-time layout prep

    x = jax.random.normal(xkey, (batch, seq, input_size), jnp.float32)

    fwd = jax.jit(functools.partial(alice_forward, prepared))
    out, hidden = fwd(x)
    jax.block_until_ready((out, hidden))

    assert out.shape == (batch * seq, output_size)
    assert hidden.shape == (n_layers, batch, hidden_dim)
    assert bool(jnp.all(jnp.isfinite(out)))
    print("KERNEL_OK")
</pallas_src>

<mosaic_0001>
module attributes {stable_mosaic.version = 11 : i64} {
  func.func @kernel(%arg0: i32, %arg1: memref<64x16xf32, #tpu.memory_space<vmem>>, %arg2: memref<2x8x32xf32, #tpu.memory_space<vmem>>, %arg3: memref<16x32xf32, #tpu.memory_space<vmem>>, %arg4: memref<16x32xf32, #tpu.memory_space<vmem>>, %arg5: memref<16x32xf32, #tpu.memory_space<vmem>>, %arg6: memref<32x32xf32, #tpu.memory_space<vmem>>, %arg7: memref<32x32xf32, #tpu.memory_space<vmem>>, %arg8: memref<32x32xf32, #tpu.memory_space<vmem>>, %arg9: memref<1x32xf32, #tpu.memory_space<vmem>>, %arg10: memref<1x32xf32, #tpu.memory_space<vmem>>, %arg11: memref<1x32xf32, #tpu.memory_space<vmem>>, %arg12: memref<1x32xf32, #tpu.memory_space<vmem>>, %arg13: memref<32x32xf32, #tpu.memory_space<vmem>>, %arg14: memref<32x32xf32, #tpu.memory_space<vmem>>, %arg15: memref<32x32xf32, #tpu.memory_space<vmem>>, %arg16: memref<32x32xf32, #tpu.memory_space<vmem>>, %arg17: memref<32x32xf32, #tpu.memory_space<vmem>>, %arg18: memref<32x32xf32, #tpu.memory_space<vmem>>, %arg19: memref<1x32xf32, #tpu.memory_space<vmem>>, %arg20: memref<1x32xf32, #tpu.memory_space<vmem>>, %arg21: memref<1x32xf32, #tpu.memory_space<vmem>>, %arg22: memref<1x32xf32, #tpu.memory_space<vmem>>, %arg23: memref<32x16xf32, #tpu.memory_space<vmem>>, %arg24: memref<1x16xf32, #tpu.memory_space<vmem>>, %arg25: memref<64x16xf32, #tpu.memory_space<vmem>>, %arg26: memref<2x8x32xf32, #tpu.memory_space<vmem>>, %arg27: memref<64x32xf32, #tpu.memory_space<vmem>>, %arg28: memref<64x32xf32, #tpu.memory_space<vmem>>, %arg29: memref<64x32xf32, #tpu.memory_space<vmem>>, %arg30: memref<64x32xf32, #tpu.memory_space<vmem>>) attributes {dimension_semantics = [#tpu.dimension_semantics<arbitrary>], iteration_bounds = array<i64: 1>, scalar_prefetch = 0 : i64, scratch_operands = 4 : i64, tpu.core_type = #tpu.core_type<tc>, window_params = [{pipeline_mode = #tpu.pipeline_mode<synchronous>, transform_indices = @transform_0, window_bounds = array<i64: 64, 16>}, {pipeline_mode = #tpu.pipeline_mode<synchronous>, transform_indices = @transform_1, window_bounds = array<i64: 2, 8, 32>}, {pipeline_mode = #tpu.pipeline_mode<synchronous>, transform_indices = @transform_2, window_bounds = array<i64: 16, 32>}, {pipeline_mode = #tpu.pipeline_mode<synchronous>, transform_indices = @transform_3, window_bounds = array<i64: 16, 32>}, {pipeline_mode = #tpu.pipeline_mode<synchronous>, transform_indices = @transform_4, window_bounds = array<i64: 16, 32>}, {pipeline_mode = #tpu.pipeline_mode<synchronous>, transform_indices = @transform_5, window_bounds = array<i64: 32, 32>}, {pipeline_mode = #tpu.pipeline_mode<synchronous>, transform_indices = @transform_6, window_bounds = array<i64: 32, 32>}, {pipeline_mode = #tpu.pipeline_mode<synchronous>, transform_indices = @transform_7, window_bounds = array<i64: 32, 32>}, {pipeline_mode = #tpu.pipeline_mode<synchronous>, transform_indices = @transform_8, window_bounds = array<i64: 1, 32>}, {pipeline_mode = #tpu.pipeline_mode<synchronous>, transform_indices = @transform_9, window_bounds = array<i64: 1, 32>}, {pipeline_mode = #tpu.pipeline_mode<synchronous>, transform_indices = @transform_10, window_bounds = array<i64: 1, 32>}, {pipeline_mode = #tpu.pipeline_mode<synchronous>, transform_indices = @transform_11, window_bounds = array<i64: 1, 32>}, {pipeline_mode = #tpu.pipeline_mode<synchronous>, transform_indices = @transform_12, window_bounds = array<i64: 32, 32>}, {pipeline_mode = #tpu.pipeline_mode<synchronous>, transform_indices = @transform_13, window_bounds = array<i64: 32, 32>}, {pipeline_mode = #tpu.pipeline_mode<synchronous>, transform_indices = @transform_14, window_bounds = array<i64: 32, 32>}, {pipeline_mode = #tpu.pipeline_mode<synchronous>, transform_indices = @transform_15, window_bounds = array<i64: 32, 32>}, {pipeline_mode = #tpu.pipeline_mode<synchronous>, transform_indices = @transform_16, window_bounds = array<i64: 32, 32>}, {pipeline_mode = #tpu.pipeline_mode<synchronous>, transform_indices = @transform_17, window_bounds = array<i64: 32, 32>}, {pipeline_mode = #tpu.pipeline_mode<synchronous>, transform_indices = @transform_18, window_bounds = array<i64: 1, 32>}, {pipeline_mode = #tpu.pipeline_mode<synchronous>, transform_indices = @transform_19, window_bounds = array<i64: 1, 32>}, {pipeline_mode = #tpu.pipeline_mode<synchronous>, transform_indices = @transform_20, window_bounds = array<i64: 1, 32>}, {pipeline_mode = #tpu.pipeline_mode<synchronous>, transform_indices = @transform_21, window_bounds = array<i64: 1, 32>}, {pipeline_mode = #tpu.pipeline_mode<synchronous>, transform_indices = @transform_22, window_bounds = array<i64: 32, 16>}, {pipeline_mode = #tpu.pipeline_mode<synchronous>, transform_indices = @transform_23, window_bounds = array<i64: 1, 16>}, {pipeline_mode = #tpu.pipeline_mode<synchronous>, transform_indices = @transform_24, window_bounds = array<i64: 64, 16>}, {pipeline_mode = #tpu.pipeline_mode<synchronous>, transform_indices = @transform_25, window_bounds = array<i64: 2, 8, 32>}]} {
    %c0 = arith.constant 0 : index
    %c0_0 = arith.constant 0 : index
    %0 = vector.load %arg1[%c0, %c0_0] : memref<64x16xf32, #tpu.memory_space<vmem>>, vector<64x16xf32>
    %c0_1 = arith.constant 0 : index
    %c0_2 = arith.constant 0 : index
    %1 = vector.load %arg3[%c0_1, %c0_2] : memref<16x32xf32, #tpu.memory_space<vmem>>, vector<16x32xf32>
    %cst = arith.constant dense<0.000000e+00> : vector<64x32xf32>
    %2 = tpu.matmul %0, %1, %cst {dimension_numbers = #tpu.dot_dimension_numbers<[1], [0], [0], [1], [0, 0, 1, 1], [], []>} : vector<64x16xf32>, vector<16x32xf32>, vector<64x32xf32> -> vector<64x32xf32>
    %c0_3 = arith.constant 0 : index
    %c0_4 = arith.constant 0 : index
    %3 = vector.load %arg9[%c0_3, %c0_4] : memref<1x32xf32, #tpu.memory_space<vmem>>, vector<1x32xf32>
    %4 = vector.broadcast %3 : vector<1x32xf32> to vector<64x32xf32>
    %5 = arith.addf %2, %4 : vector<64x32xf32>
    %c0_5 = arith.constant 0 : index
    %c0_6 = arith.constant 0 : index
    %6 = vector.load %arg27[%c0_5, %c0_6] : memref<64x32xf32, #tpu.memory_space<vmem>>, vector<64x32xf32>
    tpu.vector_store %arg27[%c0_5, %c0_6], %5 {strides = array<i32>} : memref<64x32xf32, #tpu.memory_space<vmem>>, vector<64x32xf32>,
    %c0_7 = arith.constant 0 : index
    %c0_8 = arith.constant 0 : index
    %7 = vector.load %arg4[%c0_7, %c0_8] : memref<16x32xf32, #tpu.memory_space<vmem>>, vector<16x32xf32>
    %cst_9 = arith.constant dense<0.000000e+00> : vector<64x32xf32>
    %8 = tpu.matmul %0, %7, %cst_9 {dimension_numbers = #tpu.dot_dimension_numbers<[1], [0], [0], [1], [0, 0, 1, 1], [], []>} : vector<64x16xf32>, vector<16x32xf32>, vector<64x32xf32> -> vector<64x32xf32>
    %c0_10 = arith.constant 0 : index
    %c0_11 = arith.constant 0 : index
    %9 = vector.load %arg10[%c0_10, %c0_11] : memref<1x32xf32, #tpu.memory_space<vmem>>, vector<1x32xf32>
    %10 = vector.broadcast %9 : vector<1x32xf32> to vector<64x32xf32>
    %11 = arith.addf %8, %10 : vector<64x32xf32>
    %c0_12 = arith.constant 0 : index
    %c0_13 = arith.constant 0 : index
    %12 = vector.load %arg28[%c0_12, %c0_13] : memref<64x32xf32, #tpu.memory_space<vmem>>, vector<64x32xf32>
    tpu.vector_store %arg28[%c0_12, %c0_13], %11 {strides = array<i32>} : memref<64x32xf32, #tpu.memory_space<vmem>>, vector<64x32xf32>,
    %c0_14 = arith.constant 0 : index
    %c0_15 = arith.constant 0 : index
    %13 = vector.load %arg5[%c0_14, %c0_15] : memref<16x32xf32, #tpu.memory_space<vmem>>, vector<16x32xf32>
    %cst_16 = arith.constant dense<0.000000e+00> : vector<64x32xf32>
    %14 = tpu.matmul %0, %13, %cst_16 {dimension_numbers = #tpu.dot_dimension_numbers<[1], [0], [0], [1], [0, 0, 1, 1], [], []>} : vector<64x16xf32>, vector<16x32xf32>, vector<64x32xf32> -> vector<64x32xf32>
    %c0_17 = arith.constant 0 : index
    %c0_18 = arith.constant 0 : index
    %15 = vector.load %arg11[%c0_17, %c0_18] : memref<1x32xf32, #tpu.memory_space<vmem>>, vector<1x32xf32>
    %16 = vector.broadcast %15 : vector<1x32xf32> to vector<64x32xf32>
    %17 = arith.addf %14, %16 : vector<64x32xf32>
    %c0_19 = arith.constant 0 : index
    %c0_20 = arith.constant 0 : index
    %18 = vector.load %arg29[%c0_19, %c0_20] : memref<64x32xf32, #tpu.memory_space<vmem>>, vector<64x32xf32>
    tpu.vector_store %arg29[%c0_19, %c0_20], %17 {strides = array<i32>} : memref<64x32xf32, #tpu.memory_space<vmem>>, vector<64x32xf32>,
    %c0_21 = arith.constant 0 : index
    %c0_22 = arith.constant 0 : index
    %19 = vector.load %arg6[%c0_21, %c0_22] : memref<32x32xf32, #tpu.memory_space<vmem>>, vector<32x32xf32>
    %c0_23 = arith.constant 0 : index
    %c0_24 = arith.constant 0 : index
    %20 = vector.load %arg7[%c0_23, %c0_24] : memref<32x32xf32, #tpu.memory_space<vmem>>, vector<32x32xf32>
    %c0_25 = arith.constant 0 : index
    %c0_26 = arith.constant 0 : index
    %21 = vector.load %arg8[%c0_25, %c0_26] : memref<32x32xf32, #tpu.memory_space<vmem>>, vector<32x32xf32>
    %c0_27 = arith.constant 0 : index
    %c0_28 = arith.constant 0 : index
    %22 = vector.load %arg12[%c0_27, %c0_28] : memref<1x32xf32, #tpu.memory_space<vmem>>, vector<1x32xf32>
    %c0_29 = arith.constant 0 : index
    %c0_30 = arith.constant 0 : index
    %c0_31 = arith.constant 0 : index
    %23 = vector.load %arg2[%c0_29, %c0_30, %c0_31] : memref<2x8x32xf32, #tpu.memory_space<vmem>>, vector<1x8x32xf32>
    %24 = vector.shape_cast %23 : vector<1x8x32xf32> to vector<8x32xf32>
    %c0_32 = arith.constant 0 : index
    %c0_33 = arith.constant 0 : index
    %25 = vector.load %arg27[%c0_32, %c0_33] : memref<64x32xf32, #tpu.memory_space<vmem>>, vector<8x32xf32>
    %c0_34 = arith.constant 0 : index
    %c0_35 = arith.constant 0 : index
    %26 = vector.load %arg28[%c0_34, %c0_35] : memref<64x32xf32, #tpu.memory_space<vmem>>, vector<8x32xf32>
    %c0_36 = arith.constant 0 : index
    %c0_37 = arith.constant 0 : index
    %27 = vector.load %arg29[%c0_36, %c0_37] : memref<64x32xf32, #tpu.memory_space<vmem>>, vector<8x32xf32>
    %cst_38 = arith.constant dense<0.000000e+00> : vector<8x32xf32>
    %28 = tpu.matmul %24, %19, %cst_38 {dimension_numbers = #tpu.dot_dimension_numbers<[1], [0], [0], [1], [0, 0, 1, 1], [], []>} : vector<8x32xf32>, vector<32x32xf32>, vector<8x32xf32> -> vector<8x32xf32>
    %29 = arith.addf %25, %28 : vector<8x32xf32>
    %30 = arith.negf %29 : vector<8x32xf32>
    %31 = math.exp %30 : vector<8x32xf32>
    %cst_39 = arith.constant 1.000000e+00 : f32
    %32 = vector.broadcast %cst_39 : f32 to vector<8x32xf32>
    %33 = arith.addf %32, %31 : vector<8x32xf32>
    %34 = arith.divf %32, %33 : vector<8x32xf32>
    %cst_40 = arith.constant dense<0.000000e+00> : vector<8x32xf32>
    %35 = tpu.matmul %24, %20, %cst_40 {dimension_numbers = #tpu.dot_dimension_numbers<[1], [0], [0], [1], [0, 0, 1, 1], [], []>} : vector<8x32xf32>, vector<32x32xf32>, vector<8x32xf32> -> vector<8x32xf32>
    %36 = arith.addf %26, %35 : vector<8x32xf32>
    %37 = arith.negf %36 : vector<8x32xf32>
    %38 = math.exp %37 : vector<8x32xf32>
    %cst_41 = arith.constant 1.000000e+00 : f32
    %39 = vector.broadcast %cst_41 : f32 to vector<8x32xf32>
    %40 = arith.addf %39, %38 : vector<8x32xf32>
    %41 = arith.divf %39, %40 : vector<8x32xf32>
    %cst_42 = arith.constant dense<0.000000e+00> : vector<8x32xf32>
    %42 = tpu.matmul %24, %21, %cst_42 {dimension_numbers = #tpu.dot_dimension_numbers<[1], [0], [0], [1], [0, 0, 1, 1], [], []>} : vector<8x32xf32>, vector<32x32xf32>, vector<8x32xf32> -> vector<8x32xf32>
    %43 = vector.broadcast %22 : vector<1x32xf32> to vector<8x32xf32>
    %44 = arith.addf %42, %43 : vector<8x32xf32>
    %45 = arith.mulf %34, %44 : vector<8x32xf32>
    %46 = arith.addf %27, %45 : vector<8x32xf32>
    %47 = math.tanh %46 : vector<8x32xf32>
    %cst_43 = arith.constant 1.000000e+00 : f32
    %48 = vector.broadcast %cst_43 : f32 to vector<8x32xf32>
    %49 = arith.subf %48, %41 : vector<8x32xf32>
    %50 = arith.mulf %49, %47 : vector<8x32xf32>
    %51 = arith.mulf %41, %24 : vector<8x32xf32>
    %52 = arith.addf %50, %51 : vector<8x32xf32>
    %c0_44 = arith.constant 0 : index
    %c0_45 = arith.constant 0 : index
    %53 = vector.load %arg30[%c0_44, %c0_45] : memref<64x32xf32, #tpu.memory_space<vmem>>, vector<8x32xf32>
    tpu.vector_store %arg30[%c0_44, %c0_45], %52 {strides = array<i32>} : memref<64x32xf32, #tpu.memory_space<vmem>>, vector<8x32xf32>,
    %c8 = arith.constant 8 : index
    %c0_46 = arith.constant 0 : index
    %54 = vector.load %arg27[%c8, %c0_46] : memref<64x32xf32, #tpu.memory_space<vmem>>, vector<8x32xf32>
    %c8_47 = arith.constant 8 : index
    %c0_48 = arith.constant 0 : index
    %55 = vector.load %arg28[%c8_47, %c0_48] : memref<64x32xf32, #tpu.memory_space<vmem>>, vector<8x32xf32>
    %c8_49 = arith.constant 8 : index
    %c0_50 = arith.constant 0 : index
    %56 = vector.load %arg29[%c8_49, %c0_50] : memref<64x32xf32, #tpu.memory_space<vmem>>, vector<8x32xf32>
    %cst_51 = arith.constant dense<0.000000e+00> : vector<8x32xf32>
    %57 = tpu.matmul %52, %19, %cst_51 {dimension_numbers = #tpu.dot_dimension_numbers<[1], [0], [0], [1], [0, 0, 1, 1], [], []>} : vector<8x32xf32>, vector<32x32xf32>, vector<8x32xf32> -> vector<8x32xf32>
    %58 = arith.addf %54, %57 : vector<8x32xf32>
    %59 = arith.negf %58 : vector<8x32xf32>
    %60 = math.exp %59 : vector<8x32xf32>
    %cst_52 = arith.constant 1.000000e+00 : f32
    %61 = vector.broadcast %cst_52 : f32 to vector<8x32xf32>
    %62 = arith.addf %61, %60 : vector<8x32xf32>
    %63 = arith.divf %61, %62 : vector<8x32xf32>
    %cst_53 = arith.constant dense<0.000000e+00> : vector<8x32xf32>
    %64 = tpu.matmul %52, %20, %cst_53 {dimension_numbers = #tpu.dot_dimension_numbers<[1], [0], [0], [1], [0, 0, 1, 1], [], []>} : vector<8x32xf32>, vector<32x32xf32>, vector<8x32xf32> -> vector<8x32xf32>
    %65 = arith.addf %55, %64 : vector<8x32xf32>
    %66 = arith.negf %65 : vector<8x32xf32>
    %67 = math.exp %66 : vector<8x32xf32>
    %cst_54 = arith.constant 1.000000e+00 : f32
    %68 = vector.broadcast %cst_54 : f32 to vector<8x32xf32>
    %69 = arith.addf %68, %67 : vector<8x32xf32>
    %70 = arith.divf %68, %69 : vector<8x32xf32>
    %cst_55 = arith.constant dense<0.000000e+00> : vector<8x32xf32>
    %71 = tpu.matmul %52, %21, %cst_55 {dimension_numbers = #tpu.dot_dimension_numbers<[1], [0], [0], [1], [0, 0, 1, 1], [], []>} : vector<8x32xf32>, vector<32x32xf32>, vector<8x32xf32> -> vector<8x32xf32>
    %72 = vector.broadcast %22 : vector<1x32xf32> to vector<8x32xf32>
    %73 = arith.addf %71, %72 : vector<8x32xf32>
    %74 = arith.mulf %63, %73 : vector<8x32xf32>
    %75 = arith.addf %56, %74 : vector<8x32xf32>
    %76 = math.tanh %75 : vector<8x32xf32>
    %cst_56 = arith.constant 1.000000e+00 : f32
    %77 = vector.broadcast %cst_56 : f32 to vector<8x32xf32>
    %78 = arith.subf %77, %70 : vector<8x32xf32>
    %79 = arith.mulf %78, %76 : vector<8x32xf32>
    %80 = arith.mulf %70, %52 : vector<8x32xf32>
    %81 = arith.addf %79, %80 : vector<8x32xf32>
    %c8_57 = arith.constant 8 : index
    %c0_58 = arith.constant 0 : index
    %82 = vector.load %arg30[%c8_57, %c0_58] : memref<64x32xf32, #tpu.memory_space<vmem>>, vector<8x32xf32>
    tpu.vector_store %arg30[%c8_57, %c0_58], %81 {strides = array<i32>} : memref<64x32xf32, #tpu.memory_space<vmem>>, vector<8x32xf32>,
    %c16 = arith.constant 16 : index
    %c0_59 = arith.constant 0 : index
    %83 = vector.load %arg27[%c16, %c0_59] : memref<64x32xf32, #tpu.memory_space<vmem>>, vector<8x32xf32>
    %c16_60 = arith.constant 16 : index
    %c0_61 = arith.constant 0 : index
    %84 = vector.load %arg28[%c16_60, %c0_61] : memref<64x32xf32, #tpu.memory_space<vmem>>, vector<8x32xf32>
    %c16_62 = arith.constant 16 : index
    %c0_63 = arith.constant 0 : index
    %85 = vector.load %arg29[%c16_62, %c0_63] : memref<64x32xf32, #tpu.memory_space<vmem>>, vector<8x32xf32>
    %cst_64 = arith.constant dense<0.000000e+00> : vector<8x32xf32>
    %86 = tpu.matmul %81, %19, %cst_64 {dimension_numbers = #tpu.dot_dimension_numbers<[1], [0], [0], [1], [0, 0, 1, 1], [], []>} : vector<8x32xf32>, vector<32x32xf32>, vector<8x32xf32> -> vector<8x32xf32>
    %87 = arith.addf %83, %86 : vector<8x32xf32>
    %88 = arith.negf %87 : vector<8x32xf32>
    %89 = math.exp %88 : vector<8x32xf32>
    %cst_65 = arith.constant 1.000000e+00 : f32
    %90 = vector.broadcast %cst_65 : f32 to vector<8x32xf32>
    %91 = arith.addf %90, %89 : vector<8x32xf32>
    %92 = arith.divf %90, %91 : vector<8x32xf32>
    %cst_66 = arith.constant dense<0.000000e+00> : vector<8x32xf32>
    %93 = tpu.matmul %81, %20, %cst_66 {dimension_numbers = #tpu.dot_dimension_numbers<[1], [0], [0], [1], [0, 0, 1, 1], [], []>} : vector<8x32xf32>, vector<32x32xf32>, vector<8x32xf32> -> vector<8x32xf32>
    %94 = arith.addf %84, %93 : vector<8x32xf32>
    %95 = arith.negf %94 : vector<8x32xf32>
    %96 = math.exp %95 : vector<8x32xf32>
    %cst_67 = arith.constant 1.000000e+00 : f32
    %97 = vector.broadcast %cst_67 : f32 to vector<8x32xf32>
    %98 = arith.addf %97, %96 : vector<8x32xf32>
    %99 = arith.divf %97, %98 : vector<8x32xf32>
    %cst_68 = arith.constant dense<0.000000e+00> : vector<8x32xf32>
    %100 = tpu.matmul %81, %21, %cst_68 {dimension_numbers = #tpu.dot_dimension_numbers<[1], [0], [0], [1], [0, 0, 1, 1], [], []>} : vector<8x32xf32>, vector<32x32xf32>, vector<8x32xf32> -> vector<8x32xf32>
    %101 = vector.broadcast %22 : vector<1x32xf32> to vector<8x32xf32>
    %102 = arith.addf %100, %101 : vector<8x32xf32>
    %103 = arith.mulf %92, %102 : vector<8x32xf32>
    %104 = arith.addf %85, %103 : vector<8x32xf32>
    %105 = math.tanh %104 : vector<8x32xf32>
    %cst_69 = arith.constant 1.000000e+00 : f32
    %106 = vector.broadcast %cst_69 : f32 to vector<8x32xf32>
    %107 = arith.subf %106, %99 : vector<8x32xf32>
    %108 = arith.mulf %107, %105 : vector<8x32xf32>
    %109 = arith.mulf %99, %81 : vector<8x32xf32>
    %110 = arith.addf %108, %109 : vector<8x32xf32>
    %c16_70 = arith.constant 16 : index
    %c0_71 = arith.constant 0 : index
    %111 = vector.load %arg30[%c16_70, %c0_71] : memref<64x32xf32, #tpu.memory_space<vmem>>, vector<8x32xf32>
    tpu.vector_store %arg30[%c16_70, %c0_71], %110 {strides = array<i32>} : memref<64x32xf32, #tpu.memory_space<vmem>>, vector<8x32xf32>,
    %c24 = arith.constant 24 : index
    %c0_72 = arith.constant 0 : index
    %112 = vector.load %arg27[%c24, %c0_72] : memref<64x32xf32, #tpu.memory_space<vmem>>, vector<8x32xf32>
    %c24_73 = arith.constant 24 : index
    %c0_74 = arith.constant 0 : index
    %113 = vector.load %arg28[%c24_73, %c0_74] : memref<64x32xf32, #tpu.memory_space<vmem>>, vector<8x32xf32>
    %c24_75 = arith.constant 24 : index
    %c0_76 = arith.constant 0 : index
    %114 = vector.load %arg29[%c24_75, %c0_76] : memref<64x32xf32, #tpu.memory_space<vmem>>, vector<8x32xf32>
    %cst_77 = arith.constant dense<0.000000e+00> : vector<8x32xf32>
    %115 = tpu.matmul %110, %19, %cst_77 {dimension_numbers = #tpu.dot_dimension_numbers<[1], [0], [0], [1], [0, 0, 1, 1], [], []>} : vector<8x32xf32>, vector<32x32xf32>, vector<8x32xf32> -> vector<8x32xf32>
    %116 = arith.addf %112, %115 : vector<8x32xf32>
    %117 = arith.negf %116 : vector<8x32xf32>
    %118 = math.exp %117 : vector<8x32xf32>
    %cst_78 = arith.constant 1.000000e+00 : f32
    %119 = vector.broadcast %cst_78 : f32 to vector<8x32xf32>
    %120 = arith.addf %119, %118 : vector<8x32xf32>
    %121 = arith.divf %119, %120 : vector<8x32xf32>
    %cst_79 = arith.constant dense<0.000000e+00> : vector<8x32xf32>
    %122 = tpu.matmul %110, %20, %cst_79 {dimension_numbers = #tpu.dot_dimension_numbers<[1], [0], [0], [1], [0, 0, 1, 1], [], []>} : vector<8x32xf32>, vector<32x32xf32>, vector<8x32xf32> -> vector<8x32xf32>
    %123 = arith.addf %113, %122 : vector<8x32xf32>
    %124 = arith.negf %123 : vector<8x32xf32>
    %125 = math.exp %124 : vector<8x32xf32>
    %cst_80 = arith.constant 1.000000e+00 : f32
    %126 = vector.broadcast %cst_80 : f32 to vector<8x32xf32>
    %127 = arith.addf %126, %125 : vector<8x32xf32>
    %128 = arith.divf %126, %127 : vector<8x32xf32>
    %cst_81 = arith.constant dense<0.000000e+00> : vector<8x32xf32>
    %129 = tpu.matmul %110, %21, %cst_81 {dimension_numbers = #tpu.dot_dimension_numbers<[1], [0], [0], [1], [0, 0, 1, 1], [], []>} : vector<8x32xf32>, vector<32x32xf32>, vector<8x32xf32> -> vector<8x32xf32>
    %130 = vector.broadcast %22 : vector<1x32xf32> to vector<8x32xf32>
    %131 = arith.addf %129, %130 : vector<8x32xf32>
    %132 = arith.mulf %121, %131 : vector<8x32xf32>
    %133 = arith.addf %114, %132 : vector<8x32xf32>
    %134 = math.tanh %133 : vector<8x32xf32>
    %cst_82 = arith.constant 1.000000e+00 : f32
    %135 = vector.broadcast %cst_82 : f32 to vector<8x32xf32>
    %136 = arith.subf %135, %128 : vector<8x32xf32>
    %137 = arith.mulf %136, %134 : vector<8x32xf32>
    %138 = arith.mulf %128, %110 : vector<8x32xf32>
    %139 = arith.addf %137, %138 : vector<8x32xf32>
    %c24_83 = arith.constant 24 : index
    %c0_84 = arith.constant 0 : index
    %140 = vector.load %arg30[%c24_83, %c0_84] : memref<64x32xf32, #tpu.memory_space<vmem>>, vector<8x32xf32>
    tpu.vector_store %arg30[%c24_83, %c0_84], %139 {strides = array<i32>} : memref<64x32xf32, #tpu.memory_space<vmem>>, vector<8x32xf32>,
    %c32 = arith.constant 32 : index
    %c0_85 = arith.constant 0 : index
    %141 = vector.load %arg27[%c32, %c0_85] : memref<64x32xf32, #tpu.memory_space<vmem>>, vector<8x32xf32>
    %c32_86 = arith.constant 32 : index
    %c0_87 = arith.constant 0 : index
    %142 = vector.load %arg28[%c32_86, %c0_87] : memref<64x32xf32, #tpu.memory_space<vmem>>, vector<8x32xf32>
    %c32_88 = arith.constant 32 : index
    %c0_89 = arith.constant 0 : index
    %143 = vector.load %arg29[%c32_88, %c0_89] : memref<64x32xf32, #tpu.memory_space<vmem>>, vector<8x32xf32>
    %cst_90 = arith.constant dense<0.000000e+00> : vector<8x32xf32>
    %144 = tpu.matmul %139, %19, %cst_90 {dimension_numbers = #tpu.dot_dimension_numbers<[1], [0], [0], [1], [0, 0, 1, 1], [], []>} : vector<8x32xf32>, vector<32x32xf32>, vector<8x32xf32> -> vector<8x32xf32>
    %145 = arith.addf %141, %144 : vector<8x32xf32>
    %146 = arith.negf %145 : vector<8x32xf32>
    %147 = math.exp %146 : vector<8x32xf32>
    %cst_91 = arith.constant 1.000000e+00 : f32
    %148 = vector.broadcast %cst_91 : f32 to vector<8x32xf32>
    %149 = arith.addf %148, %147 : vector<8x32xf32>
    %150 = arith.divf %148, %149 : vector<8x32xf32>
    %cst_92 = arith.constant dense<0.000000e+00> : vector<8x32xf32>
    %151 = tpu.matmul %139, %20, %cst_92 {dimension_numbers = #tpu.dot_dimension_numbers<[1], [0], [0], [1], [0, 0, 1, 1], [], []>} : vector<8x32xf32>, vector<32x32xf32>, vector<8x32xf32> -> vector<8x32xf32>
    %152 = arith.addf %142, %151 : vector<8x32xf32>
    %153 = arith.negf %152 : vector<8x32xf32>
    %154 = math.exp %153 : vector<8x32xf32>
    %cst_93 = arith.constant 1.000000e+00 : f32
    %155 = vector.broadcast %cst_93 : f32 to vector<8x32xf32>
    %156 = arith.addf %155, %154 : vector<8x32xf32>
    %157 = arith.divf %155, %156 : vector<8x32xf32>
    %cst_94 = arith.constant dense<0.000000e+00> : vector<8x32xf32>
    %158 = tpu.matmul %139, %21, %cst_94 {dimension_numbers = #tpu.dot_dimension_numbers<[1], [0], [0], [1], [0, 0, 1, 1], [], []>} : vector<8x32xf32>, vector<32x32xf32>, vector<8x32xf32> -> vector<8x32xf32>
    %159 = vector.broadcast %22 : vector<1x32xf32> to vector<8x32xf32>
    %160 = arith.addf %158, %159 : vector<8x32xf32>
    %161 = arith.mulf %150, %160 : vector<8x32xf32>
    %162 = arith.addf %143, %161 : vector<8x32xf32>
    %163 = math.tanh %162 : vector<8x32xf32>
    %cst_95 = arith.constant 1.000000e+00 : f32
    %164 = vector.broadcast %cst_95 : f32 to vector<8x32xf32>
    %165 = arith.subf %164, %157 : vector<8x32xf32>
    %166 = arith.mulf %165, %163 : vector<8x32xf32>
    %167 = arith.mulf %157, %139 : vector<8x32xf32>
    %168 = arith.addf %166, %167 : vector<8x32xf32>
    %c32_96 = arith.constant 32 : index
    %c0_97 = arith.constant 0 : index
    %169 = vector.load %arg30[%c32_96, %c0_97] : memref<64x32xf32, #tpu.memory_space<vmem>>, vector<8x32xf32>
    tpu.vector_store %arg30[%c32_96, %c0_97], %168 {strides = array<i32>} : memref<64x32xf32, #tpu.memory_space<vmem>>, vector<8x32xf32>,
    %c40 = arith.constant 40 : index
    %c0_98 = arith.constant 0 : index
    %170 = vector.load %arg27[%c40, %c0_98] : memref<64x32xf32, #tpu.memory_space<vmem>>, vector<8x32xf32>
    %c40_99 = arith.constant 40 : index
    %c0_100 = arith.constant 0 : index
    %171 = vector.load %arg28[%c40_99, %c0_100] : memref<64x32xf32, #tpu.memory_space<vmem>>, vector<8x32xf32>
    %c40_101 = arith.constant 40 : index
    %c0_102 = arith.constant 0 : index
    %172 = vector.load %arg29[%c40_101, %c0_102] : memref<64x32xf32, #tpu.memory_space<vmem>>, vector<8x32xf32>
    %cst_103 = arith.constant dense<0.000000e+00> : vector<8x32xf32>
    %173 = tpu.matmul %168, %19, %cst_103 {dimension_numbers = #tpu.dot_dimension_numbers<[1], [0], [0], [1], [0, 0, 1, 1], [], []>} : vector<8x32xf32>, vector<32x32xf32>, vector<8x32xf32> -> vector<8x32xf32>
    %174 = arith.addf %170, %173 : vector<8x32xf32>
    %175 = arith.negf %174 : vector<8x32xf32>
    %176 = math.exp %175 : vector<8x32xf32>
    %cst_104 = arith.constant 1.000000e+00 : f32
    %177 = vector.broadcast %cst_104 : f32 to vector<8x32xf32>
    %178 = arith.addf %177, %176 : vector<8x32xf32>
    %179 = arith.divf %177, %178 : vector<8x32xf32>
    %cst_105 = arith.constant dense<0.000000e+00> : vector<8x32xf32>
    %180 = tpu.matmul %168, %20, %cst_105 {dimension_numbers = #tpu.dot_dimension_numbers<[1], [0], [0], [1], [0, 0, 1, 1], [], []>} : vector<8x32xf32>, vector<32x32xf32>, vector<8x32xf32> -> vector<8x32xf32>
    %181 = arith.addf %171, %180 : vector<8x32xf32>
    %182 = arith.negf %181 : vector<8x32xf32>
    %183 = math.exp %182 : vector<8x32xf32>
    %cst_106 = arith.constant 1.000000e+00 : f32
    %184 = vector.broadcast %cst_106 : f32 to vector<8x32xf32>
    %185 = arith.addf %184, %183 : vector<8x32xf32>
    %186 = arith.divf %184, %185 : vector<8x32xf32>
    %cst_107 = arith.constant dense<0.000000e+00> : vector<8x32xf32>
    %187 = tpu.matmul %168, %21, %cst_107 {dimension_numbers = #tpu.dot_dimension_numbers<[1], [0], [0], [1], [0, 0, 1, 1], [], []>} : vector<8x32xf32>, vector<32x32xf32>, vector<8x32xf32> -> vector<8x32xf32>
    %188 = vector.broadcast %22 : vector<1x32xf32> to vector<8x32xf32>
    %189 = arith.addf %187, %188 : vector<8x32xf32>
    %190 = arith.mulf %179, %189 : vector<8x32xf32>
    %191 = arith.addf %172, %190 : vector<8x32xf32>
    %192 = math.tanh %191 : vector<8x32xf32>
    %cst_108 = arith.constant 1.000000e+00 : f32
    %193 = vector.broadcast %cst_108 : f32 to vector<8x32xf32>
    %194 = arith.subf %193, %186 : vector<8x32xf32>
    %195 = arith.mulf %194, %192 : vector<8x32xf32>
    %196 = arith.mulf %186, %168 : vector<8x32xf32>
    %197 = arith.addf %195, %196 : vector<8x32xf32>
    %c40_109 = arith.constant 40 : index
    %c0_110 = arith.constant 0 : index
    %198 = vector.load %arg30[%c40_109, %c0_110] : memref<64x32xf32, #tpu.memory_space<vmem>>, vector<8x32xf32>
    tpu.vector_store %arg30[%c40_109, %c0_110], %197 {strides = array<i32>} : memref<64x32xf32, #tpu.memory_space<vmem>>, vector<8x32xf32>,
    %c48 = arith.constant 48 : index
    %c0_111 = arith.constant 0 : index
    %199 = vector.load %arg27[%c48, %c0_111] : memref<64x32xf32, #tpu.memory_space<vmem>>, vector<8x32xf32>
    %c48_112 = arith.constant 48 : index
    %c0_113 = arith.constant 0 : index
    %200 = vector.load %arg28[%c48_112, %c0_113] : memref<64x32xf32, #tpu.memory_space<vmem>>, vector<8x32xf32>
    %c48_114 = arith.constant 48 : index
    %c0_115 = arith.constant 0 : index
    %201 = vector.load %arg29[%c48_114, %c0_115] : memref<64x32xf32, #tpu.memory_space<vmem>>, vector<8x32xf32>
    %cst_116 = arith.constant dense<0.000000e+00> : vector<8x32xf32>
    %202 = tpu.matmul %197, %19, %cst_116 {dimension_numbers = #tpu.dot_dimension_numbers<[1], [0], [0], [1], [0, 0, 1, 1], [], []>} : vector<8x32xf32>, vector<32x32xf32>, vector<8x32xf32> -> vector<8x32xf32>
    %203 = arith.addf %199, %202 : vector<8x32xf32>
    %204 = arith.negf %203 : vector<8x32xf32>
    %205 = math.exp %204 : vector<8x32xf32>
    %cst_117 = arith.constant 1.000000e+00 : f32
    %206 = vector.broadcast %cst_117 : f32 to vector<8x32xf32>
    %207 = arith.addf %206, %205 : vector<8x32xf32>
    %208 = arith.divf %206, %207 : vector<8x32xf32>
    %cst_118 = arith.constant dense<0.000000e+00> : vector<8x32xf32>
    %209 = tpu.matmul %197, %20, %cst_118 {dimension_numbers = #tpu.dot_dimension_numbers<[1], [0], [0], [1], [0, 0, 1, 1], [], []>} : vector<8x32xf32>, vector<32x32xf32>, vector<8x32xf32> -> vector<8x32xf32>
    %210 = arith.addf %200, %209 : vector<8x32xf32>
    %211 = arith.negf %210 : vector<8x32xf32>
    %212 = math.exp %211 : vector<8x32xf32>
    %cst_119 = arith.constant 1.000000e+00 : f32
    %213 = vector.broadcast %cst_119 : f32 to vector<8x32xf32>
    %214 = arith.addf %213, %212 : vector<8x32xf32>
    %215 = arith.divf %213, %214 : vector<8x32xf32>
    %cst_120 = arith.constant dense<0.000000e+00> : vector<8x32xf32>
    %216 = tpu.matmul %197, %21, %cst_120 {dimension_numbers = #tpu.dot_dimension_numbers<[1], [0], [0], [1], [0, 0, 1, 1], [], []>} : vector<8x32xf32>, vector<32x32xf32>, vector<8x32xf32> -> vector<8x32xf32>
    %217 = vector.broadcast %22 : vector<1x32xf32> to vector<8x32xf32>
    %218 = arith.addf %216, %217 : vector<8x32xf32>
    %219 = arith.mulf %208, %218 : vector<8x32xf32>
    %220 = arith.addf %201, %219 : vector<8x32xf32>
    %221 = math.tanh %220 : vector<8x32xf32>
    %cst_121 = arith.constant 1.000000e+00 : f32
    %222 = vector.broadcast %cst_121 : f32 to vector<8x32xf32>
    %223 = arith.subf %222, %215 : vector<8x32xf32>
    %224 = arith.mulf %223, %221 : vector<8x32xf32>
    %225 = arith.mulf %215, %197 : vector<8x32xf32>
    %226 = arith.addf %224, %225 : vector<8x32xf32>
    %c48_122 = arith.constant 48 : index
    %c0_123 = arith.constant 0 : index
    %227 = vector.load %arg30[%c48_122, %c0_123] : memref<64x32xf32, #tpu.memory_space<vmem>>, vector<8x32xf32>
    tpu.vector_store %arg30[%c48_122, %c0_123], %226 {strides = array<i32>} : memref<64x32xf32, #tpu.memory_space<vmem>>, vector<8x32xf32>,
    %c56 = arith.constant 56 : index
    %c0_124 = arith.constant 0 : index
    %228 = vector.load %arg27[%c56, %c0_124] : memref<64x32xf32, #tpu.memory_space<vmem>>, vector<8x32xf32>
    %c56_125 = arith.constant 56 : index
    %c0_126 = arith.constant 0 : index
    %229 = vector.load %arg28[%c56_125, %c0_126] : memref<64x32xf32, #tpu.memory_space<vmem>>, vector<8x32xf32>
    %c56_127 = arith.constant 56 : index
    %c0_128 = arith.constant 0 : index
    %230 = vector.load %arg29[%c56_127, %c0_128] : memref<64x32xf32, #tpu.memory_space<vmem>>, vector<8x32xf32>
    %cst_129 = arith.constant dense<0.000000e+00> : vector<8x32xf32>
    %231 = tpu.matmul %226, %19, %cst_129 {dimension_numbers = #tpu.dot_dimension_numbers<[1], [0], [0], [1], [0, 0, 1, 1], [], []>} : vector<8x32xf32>, vector<32x32xf32>, vector<8x32xf32> -> vector<8x32xf32>
    %232 = arith.addf %228, %231 : vector<8x32xf32>
    %233 = arith.negf %232 : vector<8x32xf32>
    %234 = math.exp %233 : vector<8x32xf32>
    %cst_130 = arith.constant 1.000000e+00 : f32
    %235 = vector.broadcast %cst_130 : f32 to vector<8x32xf32>
    %236 = arith.addf %235, %234 : vector<8x32xf32>
    %237 = arith.divf %235, %236 : vector<8x32xf32>
    %cst_131 = arith.constant dense<0.000000e+00> : vector<8x32xf32>
    %238 = tpu.matmul %226, %20, %cst_131 {dimension_numbers = #tpu.dot_dimension_numbers<[1], [0], [0], [1], [0, 0, 1, 1], [], []>} : vector<8x32xf32>, vector<32x32xf32>, vector<8x32xf32> -> vector<8x32xf32>
    %239 = arith.addf %229, %238 : vector<8x32xf32>
    %240 = arith.negf %239 : vector<8x32xf32>
    %241 = math.exp %240 : vector<8x32xf32>
    %cst_132 = arith.constant 1.000000e+00 : f32
    %242 = vector.broadcast %cst_132 : f32 to vector<8x32xf32>
    %243 = arith.addf %242, %241 : vector<8x32xf32>
    %244 = arith.divf %242, %243 : vector<8x32xf32>
    %cst_133 = arith.constant dense<0.000000e+00> : vector<8x32xf32>
    %245 = tpu.matmul %226, %21, %cst_133 {dimension_numbers = #tpu.dot_dimension_numbers<[1], [0], [0], [1], [0, 0, 1, 1], [], []>} : vector<8x32xf32>, vector<32x32xf32>, vector<8x32xf32> -> vector<8x32xf32>
    %246 = vector.broadcast %22 : vector<1x32xf32> to vector<8x32xf32>
    %247 = arith.addf %245, %246 : vector<8x32xf32>
    %248 = arith.mulf %237, %247 : vector<8x32xf32>
    %249 = arith.addf %230, %248 : vector<8x32xf32>
    %250 = math.tanh %249 : vector<8x32xf32>
    %cst_134 = arith.constant 1.000000e+00 : f32
    %251 = vector.broadcast %cst_134 : f32 to vector<8x32xf32>
    %252 = arith.subf %251, %244 : vector<8x32xf32>
    %253 = arith.mulf %252, %250 : vector<8x32xf32>
    %254 = arith.mulf %244, %226 : vector<8x32xf32>
    %255 = arith.addf %253, %254 : vector<8x32xf32>
    %c56_135 = arith.constant 56 : index
    %c0_136 = arith.constant 0 : index
    %256 = vector.load %arg30[%c56_135, %c0_136] : memref<64x32xf32, #tpu.memory_space<vmem>>, vector<8x32xf32>
    tpu.vector_store %arg30[%c56_135, %c0_136], %255 {strides = array<i32>} : memref<64x32xf32, #tpu.memory_space<vmem>>, vector<8x32xf32>,
    %c0_137 = arith.constant 0 : index
    %c0_138 = arith.constant 0 : index
    %c0_139 = arith.constant 0 : index
    %257 = vector.load %arg26[%c0_137, %c0_138, %c0_139] : memref<2x8x32xf32, #tpu.memory_space<vmem>>, vector<1x8x32xf32>
    %258 = vector.shape_cast %257 : vector<1x8x32xf32> to vector<8x32xf32>
    %259 = vector.shape_cast %255 : vector<8x32xf32> to vector<1x8x32xf32>
    tpu.vector_store %arg26[%c0_137, %c0_138, %c0_139], %259 {strides = array<i32>} : memref<2x8x32xf32, #tpu.memory_space<vmem>>, vector<1x8x32xf32>,
    %c0_140 = arith.constant 0 : index
    %c0_141 = arith.constant 0 : index
    %260 = vector.load %arg30[%c0_140, %c0_141] : memref<64x32xf32, #tpu.memory_space<vmem>>, vector<64x32xf32>
    %c0_142 = arith.constant 0 : index
    %c0_143 = arith.constant 0 : index
    %261 = vector.load %arg13[%c0_142, %c0_143] : memref<32x32xf32, #tpu.memory_space<vmem>>, vector<32x32xf32>
    %cst_144 = arith.constant dense<0.000000e+00> : vector<64x32xf32>
    %262 = tpu.matmul %260, %261, %cst_144 {dimension_numbers = #tpu.dot_dimension_numbers<[1], [0], [0], [1], [0, 0, 1, 1], [], []>} : vector<64x32xf32>, vector<32x32xf32>, vector<64x32xf32> -> vector<64x32xf32>
    %c0_145 = arith.constant 0 : index
    %c0_146 = arith.constant 0 : index
    %263 = vector.load %arg19[%c0_145, %c0_146] : memref<1x32xf32, #tpu.memory_space<vmem>>, vector<1x32xf32>
    %264 = vector.broadcast %263 : vector<1x32xf32> to vector<64x32xf32>
    %265 = arith.addf %262, %264 : vector<64x32xf32>
    %c0_147 = arith.constant 0 : index
    %c0_148 = arith.constant 0 : index
    %266 = vector.load %arg27[%c0_147, %c0_148] : memref<64x32xf32, #tpu.memory_space<vmem>>, vector<64x32xf32>
    tpu.vector_store %arg27[%c0_147, %c0_148], %265 {strides = array<i32>} : memref<64x32xf32, #tpu.memory_space<vmem>>, vector<64x32xf32>,
    %c0_149 = arith.constant 0 : index
    %c0_150 = arith.constant 0 : index
    %267 = vector.load %arg14[%c0_149, %c0_150] : memref<32x32xf32, #tpu.memory_space<vmem>>, vector<32x32xf32>
    %cst_151 = arith.constant dense<0.000000e+00> : vector<64x32xf32>
    %268 = tpu.matmul %260, %267, %cst_151 {dimension_numbers = #tpu.dot_dimension_numbers<[1], [0], [0], [1], [0, 0, 1, 1], [], []>} : vector<64x32xf32>, vector<32x32xf32>, vector<64x32xf32> -> vector<64x32xf32>
    %c0_152 = arith.constant 0 : index
    %c0_153 = arith.constant 0 : index
    %269 = vector.load %arg20[%c0_152, %c0_153] : memref<1x32xf32, #tpu.memory_space<vmem>>, vector<1x32xf32>
    %270 = vector.broadcast %269 : vector<1x32xf32> to vector<64x32xf32>
    %271 = arith.addf %268, %270 : vector<64x32xf32>
    %c0_154 = arith.constant 0 : index
    %c0_155 = arith.constant 0 : index
    %272 = vector.load %arg28[%c0_154, %c0_155] : memref<64x32xf32, #tpu.memory_space<vmem>>, vector<64x32xf32>
    tpu.vector_store %arg28[%c0_154, %c0_155], %271 {strides = array<i32>} : memref<64x32xf32, #tpu.memory_space<vmem>>, vector<64x32xf32>,
    %c0_156 = arith.constant 0 : index
    %c0_157 = arith.constant 0 : index
    %273 = vector.load %arg15[%c0_156, %c0_157] : memref<32x32xf32, #tpu.memory_space<vmem>>, vector<32x32xf32>
    %cst_158 = arith.constant dense<0.000000e+00> : vector<64x32xf32>
    %274 = tpu.matmul %260, %273, %cst_158 {dimension_numbers = #tpu.dot_dimension_numbers<[1], [0], [0], [1], [0, 0, 1, 1], [], []>} : vector<64x32xf32>, vector<32x32xf32>, vector<64x32xf32> -> vector<64x32xf32>
    %c0_159 = arith.constant 0 : index
    %c0_160 = arith.constant 0 : index
    %275 = vector.load %arg21[%c0_159, %c0_160] : memref<1x32xf32, #tpu.memory_space<vmem>>, vector<1x32xf32>
    %276 = vector.broadcast %275 : vector<1x32xf32> to vector<64x32xf32>
    %277 = arith.addf %274, %276 : vector<64x32xf32>
    %c0_161 = arith.constant 0 : index
    %c0_162 = arith.constant 0 : index
    %278 = vector.load %arg29[%c0_161, %c0_162] : memref<64x32xf32, #tpu.memory_space<vmem>>, vector<64x32xf32>
    tpu.vector_store %arg29[%c0_161, %c0_162], %277 {strides = array<i32>} : memref<64x32xf32, #tpu.memory_space<vmem>>, vector<64x32xf32>,
    %c0_163 = arith.constant 0 : index
    %c0_164 = arith.constant 0 : index
    %279 = vector.load %arg16[%c0_163, %c0_164] : memref<32x32xf32, #tpu.memory_space<vmem>>, vector<32x32xf32>
    %c0_165 = arith.constant 0 : index
    %c0_166 = arith.constant 0 : index
    %280 = vector.load %arg17[%c0_165, %c0_166] : memref<32x32xf32, #tpu.memory_space<vmem>>, vector<32x32xf32>
    %c0_167 = arith.constant 0 : index
    %c0_168 = arith.constant 0 : index
    %281 = vector.load %arg18[%c0_167, %c0_168] : memref<32x32xf32, #tpu.memory_space<vmem>>, vector<32x32xf32>
    %c0_169 = arith.constant 0 : index
    %c0_170 = arith.constant 0 : index
    %282 = vector.load %arg22[%c0_169, %c0_170] : memref<1x32xf32, #tpu.memory_space<vmem>>, vector<1x32xf32>
    %c1 = arith.constant 1 : index
    %c0_171 = arith.constant 0 : index
    %c0_172 = arith.constant 0 : index
    %283 = vector.load %arg2[%c1, %c0_171, %c0_172] : memref<2x8x32xf32, #tpu.memory_space<vmem>>, vector<1x8x32xf32>
    %284 = vector.shape_cast %283 : vector<1x8x32xf32> to vector<8x32xf32>
    %c0_173 = arith.constant 0 : index
    %c0_174 = arith.constant 0 : index
    %285 = vector.load %arg27[%c0_173, %c0_174] : memref<64x32xf32, #tpu.memory_space<vmem>>, vector<8x32xf32>
    %c0_175 = arith.constant 0 : index
    %c0_176 = arith.constant 0 : index
    %286 = vector.load %arg28[%c0_175, %c0_176] : memref<64x32xf32, #tpu.memory_space<vmem>>, vector<8x32xf32>
    %c0_177 = arith.constant 0 : index
    %c0_178 = arith.constant 0 : index
    %287 = vector.load %arg29[%c0_177, %c0_178] : memref<64x32xf32, #tpu.memory_space<vmem>>, vector<8x32xf32>
    %cst_179 = arith.constant dense<0.000000e+00> : vector<8x32xf32>
    %288 = tpu.matmul %284, %279, %cst_179 {dimension_numbers = #tpu.dot_dimension_numbers<[1], [0], [0], [1], [0, 0, 1, 1], [], []>} : vector<8x32xf32>, vector<32x32xf32>, vector<8x32xf32> -> vector<8x32xf32>
    %289 = arith.addf %285, %288 : vector<8x32xf32>
    %290 = arith.negf %289 : vector<8x32xf32>
    %291 = math.exp %290 : vector<8x32xf32>
    %cst_180 = arith.constant 1.000000e+00 : f32
    %292 = vector.broadcast %cst_180 : f32 to vector<8x32xf32>
    %293 = arith.addf %292, %291 : vector<8x32xf32>
    %294 = arith.divf %292, %293 : vector<8x32xf32>
    %cst_181 = arith.constant dense<0.000000e+00> : vector<8x32xf32>
    %295 = tpu.matmul %284, %280, %cst_181 {dimension_numbers = #tpu.dot_dimension_numbers<[1], [0], [0], [1], [0, 0, 1, 1], [], []>} : vector<8x32xf32>, vector<32x32xf32>, vector<8x32xf32> -> vector<8x32xf32>
    %296 = arith.addf %286, %295 : vector<8x32xf32>
    %297 = arith.negf %296 : vector<8x32xf32>
    %298 = math.exp %297 : vector<8x32xf32>
    %cst_182 = arith.constant 1.000000e+00 : f32
    %299 = vector.broadcast %cst_182 : f32 to vector<8x32xf32>
    %300 = arith.addf %299, %298 : vector<8x32xf32>
    %301 = arith.divf %299, %300 : vector<8x32xf32>
    %cst_183 = arith.constant dense<0.000000e+00> : vector<8x32xf32>
    %302 = tpu.matmul %284, %281, %cst_183 {dimension_numbers = #tpu.dot_dimension_numbers<[1], [0], [0], [1], [0, 0, 1, 1], [], []>} : vector<8x32xf32>, vector<32x32xf32>, vector<8x32xf32> -> vector<8x32xf32>
    %303 = vector.broadcast %282 : vector<1x32xf32> to vector<8x32xf32>
    %304 = arith.addf %302, %303 : vector<8x32xf32>
    %305 = arith.mulf %294, %304 : vector<8x32xf32>
    %306 = arith.addf %287, %305 : vector<8x32xf32>
    %307 = math.tanh %306 : vector<8x32xf32>
    %cst_184 = arith.constant 1.000000e+00 : f32
    %308 = vector.broadcast %cst_184 : f32 to vector<8x32xf32>
    %309 = arith.subf %308, %301 : vector<8x32xf32>
    %310 = arith.mulf %309, %307 : vector<8x32xf32>
    %311 = arith.mulf %301, %284 : vector<8x32xf32>
    %312 = arith.addf %310, %311 : vector<8x32xf32>
    %c0_185 = arith.constant 0 : index
    %c0_186 = arith.constant 0 : index
    %313 = vector.load %arg30[%c0_185, %c0_186] : memref<64x32xf32, #tpu.memory_space<vmem>>, vector<8x32xf32>
    tpu.vector_store %arg30[%c0_185, %c0_186], %312 {strides = array<i32>} : memref<64x32xf32, #tpu.memory_space<vmem>>, vector<8x32xf32>,
    %c8_187 = arith.constant 8 : index
    %c0_188 = arith.constant 0 : index
    %314 = vector.load %arg27[%c8_187, %c0_188] : memref<64x32xf32, #tpu.memory_space<vmem>>, vector<8x32xf32>
    %c8_189 = arith.constant 8 : index
    %c0_190 = arith.constant 0 : index
    %315 = vector.load %arg28[%c8_189, %c0_190] : memref<64x32xf32, #tpu.memory_space<vmem>>, vector<8x32xf32>
    %c8_191 = arith.constant 8 : index
    %c0_192 = arith.constant 0 : index
    %316 = vector.load %arg29[%c8_191, %c0_192] : memref<64x32xf32, #tpu.memory_space<vmem>>, vector<8x32xf32>
    %cst_193 = arith.constant dense<0.000000e+00> : vector<8x32xf32>
    %317 = tpu.matmul %312, %279, %cst_193 {dimension_numbers = #tpu.dot_dimension_numbers<[1], [0], [0], [1], [0, 0, 1, 1], [], []>} : vector<8x32xf32>, vector<32x32xf32>, vector<8x32xf32> -> vector<8x32xf32>
    %318 = arith.addf %314, %317 : vector<8x32xf32>
    %319 = arith.negf %318 : vector<8x32xf32>
    %320 = math.exp %319 : vector<8x32xf32>
    %cst_194 = arith.constant 1.000000e+00 : f32
    %321 = vector.broadcast %cst_194 : f32 to vector<8x32xf32>
    %322 = arith.addf %321, %320 : vector<8x32xf32>
    %323 = arith.divf %321, %322 : vector<8x32xf32>
    %cst_195 = arith.constant dense<0.000000e+00> : vector<8x32xf32>
    %324 = tpu.matmul %312, %280, %cst_195 {dimension_numbers = #tpu.dot_dimension_numbers<[1], [0], [0], [1], [0, 0, 1, 1], [], []>} : vector<8x32xf32>, vector<32x32xf32>, vector<8x32xf32> -> vector<8x32xf32>
    %325 = arith.addf %315, %324 : vector<8x32xf32>
    %326 = arith.negf %325 : vector<8x32xf32>
    %327 = math.exp %326 : vector<8x32xf32>
    %cst_196 = arith.constant 1.000000e+00 : f32
    %328 = vector.broadcast %cst_196 : f32 to vector<8x32xf32>
    %329 = arith.addf %328, %327 : vector<8x32xf32>
    %330 = arith.divf %328, %329 : vector<8x32xf32>
    %cst_197 = arith.constant dense<0.000000e+00> : vector<8x32xf32>
    %331 = tpu.matmul %312, %281, %cst_197 {dimension_numbers = #tpu.dot_dimension_numbers<[1], [0], [0], [1], [0, 0, 1, 1], [], []>} : vector<8x32xf32>, vector<32x32xf32>, vector<8x32xf32> -> vector<8x32xf32>
    %332 = vector.broadcast %282 : vector<1x32xf32> to vector<8x32xf32>
    %333 = arith.addf %331, %332 : vector<8x32xf32>
    %334 = arith.mulf %323, %333 : vector<8x32xf32>
    %335 = arith.addf %316, %334 : vector<8x32xf32>
    %336 = math.tanh %335 : vector<8x32xf32>
    %cst_198 = arith.constant 1.000000e+00 : f32
    %337 = vector.broadcast %cst_198 : f32 to vector<8x32xf32>
    %338 = arith.subf %337, %330 : vector<8x32xf32>
    %339 = arith.mulf %338, %336 : vector<8x32xf32>
    %340 = arith.mulf %330, %312 : vector<8x32xf32>
    %341 = arith.addf %339, %340 : vector<8x32xf32>
    %c8_199 = arith.constant 8 : index
    %c0_200 = arith.constant 0 : index
    %342 = vector.load %arg30[%c8_199, %c0_200] : memref<64x32xf32, #tpu.memory_space<vmem>>, vector<8x32xf32>
    tpu.vector_store %arg30[%c8_199, %c0_200], %341 {strides = array<i32>} : memref<64x32xf32, #tpu.memory_space<vmem>>, vector<8x32xf32>,
    %c16_201 = arith.constant 16 : index
    %c0_202 = arith.constant 0 : index
    %343 = vector.load %arg27[%c16_201, %c0_202] : memref<64x32xf32, #tpu.memory_space<vmem>>, vector<8x32xf32>
    %c16_203 = arith.constant 16 : index
    %c0_204 = arith.constant 0 : index
    %344 = vector.load %arg28[%c16_203, %c0_204] : memref<64x32xf32, #tpu.memory_space<vmem>>, vector<8x32xf32>
    %c16_205 = arith.constant 16 : index
    %c0_206 = arith.constant 0 : index
    %345 = vector.load %arg29[%c16_205, %c0_206] : memref<64x32xf32, #tpu.memory_space<vmem>>, vector<8x32xf32>
    %cst_207 = arith.constant dense<0.000000e+00> : vector<8x32xf32>
    %346 = tpu.matmul %341, %279, %cst_207 {dimension_numbers = #tpu.dot_dimension_numbers<[1], [0], [0], [1], [0, 0, 1, 1], [], []>} : vector<8x32xf32>, vector<32x32xf32>, vector<8x32xf32> -> vector<8x32xf32>
    %347 = arith.addf %343, %346 : vector<8x32xf32>
    %348 = arith.negf %347 : vector<8x32xf32>
    %349 = math.exp %348 : vector<8x32xf32>
    %cst_208 = arith.constant 1.000000e+00 : f32
    %350 = vector.broadcast %cst_208 : f32 to vector<8x32xf32>
    %351 = arith.addf %350, %349 : vector<8x32xf32>
    %352 = arith.divf %350, %351 : vector<8x32xf32>
    %cst_209 = arith.constant dense<0.000000e+00> : vector<8x32xf32>
    %353 = tpu.matmul %341, %280, %cst_209 {dimension_numbers = #tpu.dot_dimension_numbers<[1], [0], [0], [1], [0, 0, 1, 1], [], []>} : vector<8x32xf32>, vector<32x32xf32>, vector<8x32xf32> -> vector<8x32xf32>
    %354 = arith.addf %344, %353 : vector<8x32xf32>
    %355 = arith.negf %354 : vector<8x32xf32>
    %356 = math.exp %355 : vector<8x32xf32>
    %cst_210 = arith.constant 1.000000e+00 : f32
    %357 = vector.broadcast %cst_210 : f32 to vector<8x32xf32>
    %358 = arith.addf %357, %356 : vector<8x32xf32>
    %359 = arith.divf %357, %358 : vector<8x32xf32>
    %cst_211 = arith.constant dense<0.000000e+00> : vector<8x32xf32>
    %360 = tpu.matmul %341, %281, %cst_211 {dimension_numbers = #tpu.dot_dimension_numbers<[1], [0], [0], [1], [0, 0, 1, 1], [], []>} : vector<8x32xf32>, vector<32x32xf32>, vector<8x32xf32> -> vector<8x32xf32>
    %361 = vector.broadcast %282 : vector<1x32xf32> to vector<8x32xf32>
    %362 = arith.addf %360, %361 : vector<8x32xf32>
    %363 = arith.mulf %352, %362 : vector<8x32xf32>
    %364 = arith.addf %345, %363 : vector<8x32xf32>
    %365 = math.tanh %364 : vector<8x32xf32>
    %cst_212 = arith.constant 1.000000e+00 : f32
    %366 = vector.broadcast %cst_212 : f32 to vector<8x32xf32>
    %367 = arith.subf %366, %359 : vector<8x32xf32>
    %368 = arith.mulf %367, %365 : vector<8x32xf32>
    %369 = arith.mulf %359, %341 : vector<8x32xf32>
    %370 = arith.addf %368, %369 : vector<8x32xf32>
    %c16_213 = arith.constant 16 : index
    %c0_214 = arith.constant 0 : index
    %371 = vector.load %arg30[%c16_213, %c0_214] : memref<64x32xf32, #tpu.memory_space<vmem>>, vector<8x32xf32>
    tpu.vector_store %arg30[%c16_213, %c0_214], %370 {strides = array<i32>} : memref<64x32xf32, #tpu.memory_space<vmem>>, vector<8x32xf32>,
    %c24_215 = arith.constant 24 : index
    %c0_216 = arith.constant 0 : index
    %372 = vector.load %arg27[%c24_215, %c0_216] : memref<64x32xf32, #tpu.memory_space<vmem>>, vector<8x32xf32>
    %c24_217 = arith.constant 24 : index
    %c0_218 = arith.constant 0 : index
    %373 = vector.load %arg28[%c24_217, %c0_218] : memref<64x32xf32, #tpu.memory_space<vmem>>, vector<8x32xf32>
    %c24_219 = arith.constant 24 : index
    %c0_220 = arith.constant 0 : index
    %374 = vector.load %arg29[%c24_219, %c0_220] : memref<64x32xf32, #tpu.memory_space<vmem>>, vector<8x32xf32>
    %cst_221 = arith.constant dense<0.000000e+00> : vector<8x32xf32>
    %375 = tpu.matmul %370, %279, %cst_221 {dimension_numbers = #tpu.dot_dimension_numbers<[1], [0], [0], [1], [0, 0, 1, 1], [], []>} : vector<8x32xf32>, vector<32x32xf32>, vector<8x32xf32> -> vector<8x32xf32>
    %376 = arith.addf %372, %375 : vector<8x32xf32>
    %377 = arith.negf %376 : vector<8x32xf32>
    %378 = math.exp %377 : vector<8x32xf32>
    %cst_222 = arith.constant 1.000000e+00 : f32
    %379 = vector.broadcast %cst_222 : f32 to vector<8x32xf32>
    %380 = arith.addf %379, %378 : vector<8x32xf32>
    %381 = arith.divf %379, %380 : vector<8x32xf32>
    %cst_223 = arith.constant dense<0.000000e+00> : vector<8x32xf32>
    %382 = tpu.matmul %370, %280, %cst_223 {dimension_numbers = #tpu.dot_dimension_numbers<[1], [0], [0], [1], [0, 0, 1, 1], [], []>} : vector<8x32xf32>, vector<32x32xf32>, vector<8x32xf32> -> vector<8x32xf32>
    %383 = arith.addf %373, %382 : vector<8x32xf32>
    %384 = arith.negf %383 : vector<8x32xf32>
    %385 = math.exp %384 : vector<8x32xf32>
    %cst_224 = arith.constant 1.000000e+00 : f32
    %386 = vector.broadcast %cst_224 : f32 to vector<8x32xf32>
    %387 = arith.addf %386, %385 : vector<8x32xf32>
    %388 = arith.divf %386, %387 : vector<8x32xf32>
    %cst_225 = arith.constant dense<0.000000e+00> : vector<8x32xf32>
    %389 = tpu.matmul %370, %281, %cst_225 {dimension_numbers = #tpu.dot_dimension_numbers<[1], [0], [0], [1], [0, 0, 1, 1], [], []>} : vector<8x32xf32>, vector<32x32xf32>, vector<8x32xf32> -> vector<8x32xf32>
    %390 = vector.broadcast %282 : vector<1x32xf32> to vector<8x32xf32>
    %391 = arith.addf %389, %390 : vector<8x32xf32>
    %392 = arith.mulf %381, %391 : vector<8x32xf32>
    %393 = arith.addf %374, %392 : vector<8x32xf32>
    %394 = math.tanh %393 : vector<8x32xf32>
    %cst_226 = arith.constant 1.000000e+00 : f32
    %395 = vector.broadcast %cst_226 : f32 to vector<8x32xf32>
    %396 = arith.subf %395, %388 : vector<8x32xf32>
    %397 = arith.mulf %396, %394 : vector<8x32xf32>
    %398 = arith.mulf %388, %370 : vector<8x32xf32>
    %399 = arith.addf %397, %398 : vector<8x32xf32>
    %c24_227 = arith.constant 24 : index
    %c0_228 = arith.constant 0 : index
    %400 = vector.load %arg30[%c24_227, %c0_228] : memref<64x32xf32, #tpu.memory_space<vmem>>, vector<8x32xf32>
    tpu.vector_store %arg30[%c24_227, %c0_228], %399 {strides = array<i32>} : memref<64x32xf32, #tpu.memory_space<vmem>>, vector<8x32xf32>,
    %c32_229 = arith.constant 32 : index
    %c0_230 = arith.constant 0 : index
    %401 = vector.load %arg27[%c32_229, %c0_230] : memref<64x32xf32, #tpu.memory_space<vmem>>, vector<8x32xf32>
    %c32_231 = arith.constant 32 : index
    %c0_232 = arith.constant 0 : index
    %402 = vector.load %arg28[%c32_231, %c0_232] : memref<64x32xf32, #tpu.memory_space<vmem>>, vector<8x32xf32>
    %c32_233 = arith.constant 32 : index
    %c0_234 = arith.constant 0 : index
    %403 = vector.load %arg29[%c32_233, %c0_234] : memref<64x32xf32, #tpu.memory_space<vmem>>, vector<8x32xf32>
    %cst_235 = arith.constant dense<0.000000e+00> : vector<8x32xf32>
    %404 = tpu.matmul %399, %279, %cst_235 {dimension_numbers = #tpu.dot_dimension_numbers<[1], [0], [0], [1], [0, 0, 1, 1], [], []>} : vector<8x32xf32>, vector<32x32xf32>, vector<8x32xf32> -> vector<8x32xf32>
    %405 = arith.addf %401, %404 : vector<8x32xf32>
    %406 = arith.negf %405 : vector<8x32xf32>
    %407 = math.exp %406 : vector<8x32xf32>
    %cst_236 = arith.constant 1.000000e+00 : f32
    %408 = vector.broadcast %cst_236 : f32 to vector<8x32xf32>
    %409 = arith.addf %408, %407 : vector<8x32xf32>
    %410 = arith.divf %408, %409 : vector<8x32xf32>
    %cst_237 = arith.constant dense<0.000000e+00> : vector<8x32xf32>
    %411 = tpu.matmul %399, %280, %cst_237 {dimension_numbers = #tpu.dot_dimension_numbers<[1], [0], [0], [1], [0, 0, 1, 1], [], []>} : vector<8x32xf32>, vector<32x32xf32>, vector<8x32xf32> -> vector<8x32xf32>
    %412 = arith.addf %402, %411 : vector<8x32xf32>
    %413 = arith.negf %412 : vector<8x32xf32>
    %414 = math.exp %413 : vector<8x32xf32>
    %cst_238 = arith.constant 1.000000e+00 : f32
    %415 = vector.broadcast %cst_238 : f32 to vector<8x32xf32>
    %416 = arith.addf %415, %414 : vector<8x32xf32>
    %417 = arith.divf %415, %416 : vector<8x32xf32>
    %cst_239 = arith.constant dense<0.000000e+00> : vector<8x32xf32>
    %418 = tpu.matmul %399, %281, %cst_239 {dimension_numbers = #tpu.dot_dimension_numbers<[1], [0], [0], [1], [0, 0, 1, 1], [], []>} : vector<8x32xf32>, vector<32x32xf32>, vector<8x32xf32> -> vector<8x32xf32>
    %419 = vector.broadcast %282 : vector<1x32xf32> to vector<8x32xf32>
    %420 = arith.addf %418, %419 : vector<8x32xf32>
    %421 = arith.mulf %410, %420 : vector<8x32xf32>
    %422 = arith.addf %403, %421 : vector<8x32xf32>
    %423 = math.tanh %422 : vector<8x32xf32>
    %cst_240 = arith.constant 1.000000e+00 : f32
    %424 = vector.broadcast %cst_240 : f32 to vector<8x32xf32>
    %425 = arith.subf %424, %417 : vector<8x32xf32>
    %426 = arith.mulf %425, %423 : vector<8x32xf32>
    %427 = arith.mulf %417, %399 : vector<8x32xf32>
    %428 = arith.addf %426, %427 : vector<8x32xf32>
    %c32_241 = arith.constant 32 : index
    %c0_242 = arith.constant 0 : index
    %429 = vector.load %arg30[%c32_241, %c0_242] : memref<64x32xf32, #tpu.memory_space<vmem>>, vector<8x32xf32>
    tpu.vector_store %arg30[%c32_241, %c0_242], %428 {strides = array<i32>} : memref<64x32xf32, #tpu.memory_space<vmem>>, vector<8x32xf32>,
    %c40_243 = arith.constant 40 : index
    %c0_244 = arith.constant 0 : index
    %430 = vector.load %arg27[%c40_243, %c0_244] : memref<64x32xf32, #tpu.memory_space<vmem>>, vector<8x32xf32>
    %c40_245 = arith.constant 40 : index
    %c0_246 = arith.constant 0 : index
    %431 = vector.load %arg28[%c40_245, %c0_246] : memref<64x32xf32, #tpu.memory_space<vmem>>, vector<8x32xf32>
    %c40_247 = arith.constant 40 : index
    %c0_248 = arith.constant 0 : index
    %432 = vector.load %arg29[%c40_247, %c0_248] : memref<64x32xf32, #tpu.memory_space<vmem>>, vector<8x32xf32>
    %cst_249 = arith.constant dense<0.000000e+00> : vector<8x32xf32>
    %433 = tpu.matmul %428, %279, %cst_249 {dimension_numbers = #tpu.dot_dimension_numbers<[1], [0], [0], [1], [0, 0, 1, 1], [], []>} : vector<8x32xf32>, vector<32x32xf32>, vector<8x32xf32> -> vector<8x32xf32>
    %434 = arith.addf %430, %433 : vector<8x32xf32>
    %435 = arith.negf %434 : vector<8x32xf32>
    %436 = math.exp %435 : vector<8x32xf32>
    %cst_250 = arith.constant 1.000000e+00 : f32
    %437 = vector.broadcast %cst_250 : f32 to vector<8x32xf32>
    %438 = arith.addf %437, %436 : vector<8x32xf32>
    %439 = arith.divf %437, %438 : vector<8x32xf32>
    %cst_251 = arith.constant dense<0.000000e+00> : vector<8x32xf32>
    %440 = tpu.matmul %428, %280, %cst_251 {dimension_numbers = #tpu.dot_dimension_numbers<[1], [0], [0], [1], [0, 0, 1, 1], [], []>} : vector<8x32xf32>, vector<32x32xf32>, vector<8x32xf32> -> vector<8x32xf32>
    %441 = arith.addf %431, %440 : vector<8x32xf32>
    %442 = arith.negf %441 : vector<8x32xf32>
    %443 = math.exp %442 : vector<8x32xf32>
    %cst_252 = arith.constant 1.000000e+00 : f32
    %444 = vector.broadcast %cst_252 : f32 to vector<8x32xf32>
    %445 = arith.addf %444, %443 : vector<8x32xf32>
    %446 = arith.divf %444, %445 : vector<8x32xf32>
    %cst_253 = arith.constant dense<0.000000e+00> : vector<8x32xf32>
    %447 = tpu.matmul %428, %281, %cst_253 {dimension_numbers = #tpu.dot_dimension_numbers<[1], [0], [0], [1], [0, 0, 1, 1], [], []>} : vector<8x32xf32>, vector<32x32xf32>, vector<8x32xf32> -> vector<8x32xf32>
    %448 = vector.broadcast %282 : vector<1x32xf32> to vector<8x32xf32>
    %449 = arith.addf %447, %448 : vector<8x32xf32>
    %450 = arith.mulf %439, %449 : vector<8x32xf32>
    %451 = arith.addf %432, %450 : vector<8x32xf32>
    %452 = math.tanh %451 : vector<8x32xf32>
    %cst_254 = arith.constant 1.000000e+00 : f32
    %453 = vector.broadcast %cst_254 : f32 to vector<8x32xf32>
    %454 = arith.subf %453, %446 : vector<8x32xf32>
    %455 = arith.mulf %454, %452 : vector<8x32xf32>
    %456 = arith.mulf %446, %428 : vector<8x32xf32>
    %457 = arith.addf %455, %456 : vector<8x32xf32>
    %c40_255 = arith.constant 40 : index
    %c0_256 = arith.constant 0 : index
    %458 = vector.load %arg30[%c40_255, %c0_256] : memref<64x32xf32, #tpu.memory_space<vmem>>, vector<8x32xf32>
    tpu.vector_store %arg30[%c40_255, %c0_256], %457 {strides = array<i32>} : memref<64x32xf32, #tpu.memory_space<vmem>>, vector<8x32xf32>,
    %c48_257 = arith.constant 48 : index
    %c0_258 = arith.constant 0 : index
    %459 = vector.load %arg27[%c48_257, %c0_258] : memref<64x32xf32, #tpu.memory_space<vmem>>, vector<8x32xf32>
    %c48_259 = arith.constant 48 : index
    %c0_260 = arith.constant 0 : index
    %460 = vector.load %arg28[%c48_259, %c0_260] : memref<64x32xf32, #tpu.memory_space<vmem>>, vector<8x32xf32>
    %c48_261 = arith.constant 48 : index
    %c0_262 = arith.constant 0 : index
    %461 = vector.load %arg29[%c48_261, %c0_262] : memref<64x32xf32, #tpu.memory_space<vmem>>, vector<8x32xf32>
    %cst_263 = arith.constant dense<0.000000e+00> : vector<8x32xf32>
    %462 = tpu.matmul %457, %279, %cst_263 {dimension_numbers = #tpu.dot_dimension_numbers<[1], [0], [0], [1], [0, 0, 1, 1], [], []>} : vector<8x32xf32>, vector<32x32xf32>, vector<8x32xf32> -> vector<8x32xf32>
    %463 = arith.addf %459, %462 : vector<8x32xf32>
    %464 = arith.negf %463 : vector<8x32xf32>
    %465 = math.exp %464 : vector<8x32xf32>
    %cst_264 = arith.constant 1.000000e+00 : f32
    %466 = vector.broadcast %cst_264 : f32 to vector<8x32xf32>
    %467 = arith.addf %466, %465 : vector<8x32xf32>
    %468 = arith.divf %466, %467 : vector<8x32xf32>
    %cst_265 = arith.constant dense<0.000000e+00> : vector<8x32xf32>
    %469 = tpu.matmul %457, %280, %cst_265 {dimension_numbers = #tpu.dot_dimension_numbers<[1], [0], [0], [1], [0, 0, 1, 1], [], []>} : vector<8x32xf32>, vector<32x32xf32>, vector<8x32xf32> -> vector<8x32xf32>
    %470 = arith.addf %460, %469 : vector<8x32xf32>
    %471 = arith.negf %470 : vector<8x32xf32>
    %472 = math.exp %471 : vector<8x32xf32>
    %cst_266 = arith.constant 1.000000e+00 : f32
    %473 = vector.broadcast %cst_266 : f32 to vector<8x32xf32>
    %474 = arith.addf %473, %472 : vector<8x32xf32>
    %475 = arith.divf %473, %474 : vector<8x32xf32>
    %cst_267 = arith.constant dense<0.000000e+00> : vector<8x32xf32>
    %476 = tpu.matmul %457, %281, %cst_267 {dimension_numbers = #tpu.dot_dimension_numbers<[1], [0], [0], [1], [0, 0, 1, 1], [], []>} : vector<8x32xf32>, vector<32x32xf32>, vector<8x32xf32> -> vector<8x32xf32>
    %477 = vector.broadcast %282 : vector<1x32xf32> to vector<8x32xf32>
    %478 = arith.addf %476, %477 : vector<8x32xf32>
    %479 = arith.mulf %468, %478 : vector<8x32xf32>
    %480 = arith.addf %461, %479 : vector<8x32xf32>
    %481 = math.tanh %480 : vector<8x32xf32>
    %cst_268 = arith.constant 1.000000e+00 : f32
    %482 = vector.broadcast %cst_268 : f32 to vector<8x32xf32>
    %483 = arith.subf %482, %475 : vector<8x32xf32>
    %484 = arith.mulf %483, %481 : vector<8x32xf32>
    %485 = arith.mulf %475, %457 : vector<8x32xf32>
    %486 = arith.addf %484, %485 : vector<8x32xf32>
    %c48_269 = arith.constant 48 : index
    %c0_270 = arith.constant 0 : index
    %487 = vector.load %arg30[%c48_269, %c0_270] : memref<64x32xf32, #tpu.memory_space<vmem>>, vector<8x32xf32>
    tpu.vector_store %arg30[%c48_269, %c0_270], %486 {strides = array<i32>} : memref<64x32xf32, #tpu.memory_space<vmem>>, vector<8x32xf32>,
    %c56_271 = arith.constant 56 : index
    %c0_272 = arith.constant 0 : index
    %488 = vector.load %arg27[%c56_271, %c0_272] : memref<64x32xf32, #tpu.memory_space<vmem>>, vector<8x32xf32>
    %c56_273 = arith.constant 56 : index
    %c0_274 = arith.constant 0 : index
    %489 = vector.load %arg28[%c56_273, %c0_274] : memref<64x32xf32, #tpu.memory_space<vmem>>, vector<8x32xf32>
    %c56_275 = arith.constant 56 : index
    %c0_276 = arith.constant 0 : index
    %490 = vector.load %arg29[%c56_275, %c0_276] : memref<64x32xf32, #tpu.memory_space<vmem>>, vector<8x32xf32>
    %cst_277 = arith.constant dense<0.000000e+00> : vector<8x32xf32>
    %491 = tpu.matmul %486, %279, %cst_277 {dimension_numbers = #tpu.dot_dimension_numbers<[1], [0], [0], [1], [0, 0, 1, 1], [], []>} : vector<8x32xf32>, vector<32x32xf32>, vector<8x32xf32> -> vector<8x32xf32>
    %492 = arith.addf %488, %491 : vector<8x32xf32>
    %493 = arith.negf %492 : vector<8x32xf32>
    %494 = math.exp %493 : vector<8x32xf32>
    %cst_278 = arith.constant 1.000000e+00 : f32
    %495 = vector.broadcast %cst_278 : f32 to vector<8x32xf32>
    %496 = arith.addf %495, %494 : vector<8x32xf32>
    %497 = arith.divf %495, %496 : vector<8x32xf32>
    %cst_279 = arith.constant dense<0.000000e+00> : vector<8x32xf32>
    %498 = tpu.matmul %486, %280, %cst_279 {dimension_numbers = #tpu.dot_dimension_numbers<[1], [0], [0], [1], [0, 0, 1, 1], [], []>} : vector<8x32xf32>, vector<32x32xf32>, vector<8x32xf32> -> vector<8x32xf32>
    %499 = arith.addf %489, %498 : vector<8x32xf32>
    %500 = arith.negf %499 : vector<8x32xf32>
    %501 = math.exp %500 : vector<8x32xf32>
    %cst_280 = arith.constant 1.000000e+00 : f32
    %502 = vector.broadcast %cst_280 : f32 to vector<8x32xf32>
    %503 = arith.addf %502, %501 : vector<8x32xf32>
    %504 = arith.divf %502, %503 : vector<8x32xf32>
    %cst_281 = arith.constant dense<0.000000e+00> : vector<8x32xf32>
    %505 = tpu.matmul %486, %281, %cst_281 {dimension_numbers = #tpu.dot_dimension_numbers<[1], [0], [0], [1], [0, 0, 1, 1], [], []>} : vector<8x32xf32>, vector<32x32xf32>, vector<8x32xf32> -> vector<8x32xf32>
    %506 = vector.broadcast %282 : vector<1x32xf32> to vector<8x32xf32>
    %507 = arith.addf %505, %506 : vector<8x32xf32>
    %508 = arith.mulf %497, %507 : vector<8x32xf32>
    %509 = arith.addf %490, %508 : vector<8x32xf32>
    %510 = math.tanh %509 : vector<8x32xf32>
    %cst_282 = arith.constant 1.000000e+00 : f32
    %511 = vector.broadcast %cst_282 : f32 to vector<8x32xf32>
    %512 = arith.subf %511, %504 : vector<8x32xf32>
    %513 = arith.mulf %512, %510 : vector<8x32xf32>
    %514 = arith.mulf %504, %486 : vector<8x32xf32>
    %515 = arith.addf %513, %514 : vector<8x32xf32>
    %c56_283 = arith.constant 56 : index
    %c0_284 = arith.constant 0 : index
    %516 = vector.load %arg30[%c56_283, %c0_284] : memref<64x32xf32, #tpu.memory_space<vmem>>, vector<8x32xf32>
    tpu.vector_store %arg30[%c56_283, %c0_284], %515 {strides = array<i32>} : memref<64x32xf32, #tpu.memory_space<vmem>>, vector<8x32xf32>,
    %c1_285 = arith.constant 1 : index
    %c0_286 = arith.constant 0 : index
    %c0_287 = arith.constant 0 : index
    %517 = vector.load %arg26[%c1_285, %c0_286, %c0_287] : memref<2x8x32xf32, #tpu.memory_space<vmem>>, vector<1x8x32xf32>
    %518 = vector.shape_cast %517 : vector<1x8x32xf32> to vector<8x32xf32>
    %519 = vector.shape_cast %515 : vector<8x32xf32> to vector<1x8x32xf32>
    tpu.vector_store %arg26[%c1_285, %c0_286, %c0_287], %519 {strides = array<i32>} : memref<2x8x32xf32, #tpu.memory_space<vmem>>, vector<1x8x32xf32>,
    %c0_288 = arith.constant 0 : index
    %c0_289 = arith.constant 0 : index
    %520 = vector.load %arg30[%c0_288, %c0_289] : memref<64x32xf32, #tpu.memory_space<vmem>>, vector<64x32xf32>
    %c0_290 = arith.constant 0 : index
    %c0_291 = arith.constant 0 : index
    %521 = vector.load %arg23[%c0_290, %c0_291] : memref<32x16xf32, #tpu.memory_space<vmem>>, vector<32x16xf32>
    %cst_292 = arith.constant dense<0.000000e+00> : vector<64x16xf32>
    %522 = tpu.matmul %520, %521, %cst_292 {dimension_numbers = #tpu.dot_dimension_numbers<[1], [0], [0], [1], [0, 0, 1, 1], [], []>} : vector<64x32xf32>, vector<32x16xf32>, vector<64x16xf32> -> vector<64x16xf32>
    %c0_293 = arith.constant 0 : index
    %c0_294 = arith.constant 0 : index
    %523 = vector.load %arg24[%c0_293, %c0_294] : memref<1x16xf32, #tpu.memory_space<vmem>>, vector<1x16xf32>
    %524 = vector.broadcast %523 : vector<1x16xf32> to vector<64x16xf32>
    %525 = arith.addf %522, %524 : vector<64x16xf32>
    %c0_295 = arith.constant 0 : index
    %c0_296 = arith.constant 0 : index
    %526 = vector.load %arg25[%c0_295, %c0_296] : memref<64x16xf32, #tpu.memory_space<vmem>>, vector<64x16xf32>
    tpu.vector_store %arg25[%c0_295, %c0_296], %525 {strides = array<i32>} : memref<64x16xf32, #tpu.memory_space<vmem>>, vector<64x16xf32>,
    return
  }
  func.func @transform_0(%arg0: i32) -> (i32, i32) {
    %c0_i32 = arith.constant 0 : i32
    %c0_i32_0 = arith.constant 0 : i32
    %c0_i32_1 = arith.constant 0 : i32
    return %c0_i32, %c0_i32_0 : i32, i32
  }
  func.func @transform_1(%arg0: i32) -> (i32, i32, i32) {
    %c0_i32 = arith.constant 0 : i32
    %c0_i32_0 = arith.constant 0 : i32
    %c0_i32_1 = arith.constant 0 : i32
    %c0_i32_2 = arith.constant 0 : i32
    return %c0_i32, %c0_i32_0, %c0_i32_1 : i32, i32, i32
  }
  func.func @transform_2(%arg0: i32) -> (i32, i32) {
    %c0_i32 = arith.constant 0 : i32
    %c0_i32_0 = arith.constant 0 : i32
    %c0_i32_1 = arith.constant 0 : i32
    return %c0_i32, %c0_i32_0 : i32, i32
  }
  func.func @transform_3(%arg0: i32) -> (i32, i32) {
    %c0_i32 = arith.constant 0 : i32
    %c0_i32_0 = arith.constant 0 : i32
    %c0_i32_1 = arith.constant 0 : i32
    return %c0_i32, %c0_i32_0 : i32, i32
  }
  func.func @transform_4(%arg0: i32) -> (i32, i32) {
    %c0_i32 = arith.constant 0 : i32
    %c0_i32_0 = arith.constant 0 : i32
    %c0_i32_1 = arith.constant 0 : i32
    return %c0_i32, %c0_i32_0 : i32, i32
  }
  func.func @transform_5(%arg0: i32) -> (i32, i32) {
    %c0_i32 = arith.constant 0 : i32
    %c0_i32_0 = arith.constant 0 : i32
    %c0_i32_1 = arith.constant 0 : i32
    return %c0_i32, %c0_i32_0 : i32, i32
  }
  func.func @transform_6(%arg0: i32) -> (i32, i32) {
    %c0_i32 = arith.constant 0 : i32
    %c0_i32_0 = arith.constant 0 : i32
    %c0_i32_1 = arith.constant 0 : i32
    return %c0_i32, %c0_i32_0 : i32, i32
  }
  func.func @transform_7(%arg0: i32) -> (i32, i32) {
    %c0_i32 = arith.constant 0 : i32
    %c0_i32_0 = arith.constant 0 : i32
    %c0_i32_1 = arith.constant 0 : i32
    return %c0_i32, %c0_i32_0 : i32, i32
  }
  func.func @transform_8(%arg0: i32) -> (i32, i32) {
    %c0_i32 = arith.constant 0 : i32
    %c0_i32_0 = arith.constant 0 : i32
    %c0_i32_1 = arith.constant 0 : i32
    return %c0_i32, %c0_i32_0 : i32, i32
  }
  func.func @transform_9(%arg0: i32) -> (i32, i32) {
    %c0_i32 = arith.constant 0 : i32
    %c0_i32_0 = arith.constant 0 : i32
    %c0_i32_1 = arith.constant 0 : i32
    return %c0_i32, %c0_i32_0 : i32, i32
  }
  func.func @transform_10(%arg0: i32) -> (i32, i32) {
    %c0_i32 = arith.constant 0 : i32
    %c0_i32_0 = arith.constant 0 : i32
    %c0_i32_1 = arith.constant 0 : i32
    return %c0_i32, %c0_i32_0 : i32, i32
  }
  func.func @transform_11(%arg0: i32) -> (i32, i32) {
    %c0_i32 = arith.constant 0 : i32
    %c0_i32_0 = arith.constant 0 : i32
    %c0_i32_1 = arith.constant 0 : i32
    return %c0_i32, %c0_i32_0 : i32, i32
  }
  func.func @transform_12(%arg0: i32) -> (i32, i32) {
    %c0_i32 = arith.constant 0 : i32
    %c0_i32_0 = arith.constant 0 : i32
    %c0_i32_1 = arith.constant 0 : i32
    return %c0_i32, %c0_i32_0 : i32, i32
  }
  func.func @transform_13(%arg0: i32) -> (i32, i32) {
    %c0_i32 = arith.constant 0 : i32
    %c0_i32_0 = arith.constant 0 : i32
    %c0_i32_1 = arith.constant 0 : i32
    return %c0_i32, %c0_i32_0 : i32, i32
  }
  func.func @transform_14(%arg0: i32) -> (i32, i32) {
    %c0_i32 = arith.constant 0 : i32
    %c0_i32_0 = arith.constant 0 : i32
    %c0_i32_1 = arith.constant 0 : i32
    return %c0_i32, %c0_i32_0 : i32, i32
  }
  func.func @transform_15(%arg0: i32) -> (i32, i32) {
    %c0_i32 = arith.constant 0 : i32
    %c0_i32_0 = arith.constant 0 : i32
    %c0_i32_1 = arith.constant 0 : i32
    return %c0_i32, %c0_i32_0 : i32, i32
  }
  func.func @transform_16(%arg0: i32) -> (i32, i32) {
    %c0_i32 = arith.constant 0 : i32
    %c0_i32_0 = arith.constant 0 : i32
    %c0_i32_1 = arith.constant 0 : i32
    return %c0_i32, %c0_i32_0 : i32, i32
  }
  func.func @transform_17(%arg0: i32) -> (i32, i32) {
    %c0_i32 = arith.constant 0 : i32
    %c0_i32_0 = arith.constant 0 : i32
    %c0_i32_1 = arith.constant 0 : i32
    return %c0_i32, %c0_i32_0 : i32, i32
  }
  func.func @transform_18(%arg0: i32) -> (i32, i32) {
    %c0_i32 = arith.constant 0 : i32
    %c0_i32_0 = arith.constant 0 : i32
    %c0_i32_1 = arith.constant 0 : i32
    return %c0_i32, %c0_i32_0 : i32, i32
  }
  func.func @transform_19(%arg0: i32) -> (i32, i32) {
    %c0_i32 = arith.constant 0 : i32
    %c0_i32_0 = arith.constant 0 : i32
    %c0_i32_1 = arith.constant 0 : i32
    return %c0_i32, %c0_i32_0 : i32, i32
  }
  func.func @transform_20(%arg0: i32) -> (i32, i32) {
    %c0_i32 = arith.constant 0 : i32
    %c0_i32_0 = arith.constant 0 : i32
    %c0_i32_1 = arith.constant 0 : i32
    return %c0_i32, %c0_i32_0 : i32, i32
  }
  func.func @transform_21(%arg0: i32) -> (i32, i32) {
    %c0_i32 = arith.constant 0 : i32
    %c0_i32_0 = arith.constant 0 : i32
    %c0_i32_1 = arith.constant 0 : i32
    return %c0_i32, %c0_i32_0 : i32, i32
  }
  func.func @transform_22(%arg0: i32) -> (i32, i32) {
    %c0_i32 = arith.constant 0 : i32
    %c0_i32_0 = arith.constant 0 : i32
    %c0_i32_1 = arith.constant 0 : i32
    return %c0_i32, %c0_i32_0 : i32, i32
  }
  func.func @transform_23(%arg0: i32) -> (i32, i32) {
    %c0_i32 = arith.constant 0 : i32
    %c0_i32_0 = arith.constant 0 : i32
    %c0_i32_1 = arith.constant 0 : i32
    return %c0_i32, %c0_i32_0 : i32, i32
  }
  func.func @transform_24(%arg0: i32) -> (i32, i32) {
    %c0_i32 = arith.constant 0 : i32
    %c0_i32_0 = arith.constant 0 : i32
    %c0_i32_1 = arith.constant 0 : i32
    return %c0_i32, %c0_i32_0 : i32, i32
  }
  func.func @transform_25(%arg0: i32) -> (i32, i32, i32) {
    %c0_i32 = arith.constant 0 : i32
    %c0_i32_0 = arith.constant 0 : i32
    %c0_i32_1 = arith.constant 0 : i32
    %c0_i32_2 = arith.constant 0 : i32
    return %c0_i32, %c0_i32_0, %c0_i32_1 : i32, i32, i32
  }
}

</mosaic_0001>

<llo_original>
// kernel: alice_forward.1
$region0: #{alice_forward.1}
  #allocation0 [shape = 'u32[]', space=smem, size = 0x4, offset = 0x4, fixed_abs, tag = 'smem constant byte address 0x4 - core index']
  #allocation1 [shape = 'u32[72,128]{1,0:T(1,128)}', space=vmem, size = 0x9000, scoped, tag = 'internal scratch']
  #allocation2 [shape = 'f32[64,32]{1,0:T(8,128)}', space=vmem, size = 0x8000, scoped, tag = 'scratch operand']
  #allocation3 [shape = 'f32[64,32]{1,0:T(8,128)}', space=vmem, size = 0x8000, scoped, tag = 'scratch operand']
  #allocation4 [shape = 'f32[64,32]{1,0:T(8,128)}', space=vmem, size = 0x8000, scoped, tag = 'scratch operand']
  #allocation5 [shape = 'f32[64,32]{1,0:T(8,128)}', space=vmem, size = 0x8000, scoped, tag = 'scratch operand']
  %s0 = inlined_call_operand.vmem [shape: f32[64,16], index: 0, kind: input, shape index: {}]
  %s1 = inlined_call_operand.vmem [shape: f32[2,8,32], index: 1, kind: input, shape index: {}]
  %s2 = inlined_call_operand.hbm [shape: f32[16,32], index: 2, kind: input, shape index: {}]
  %s3 = inlined_call_operand.hbm [shape: f32[16,32], index: 3, kind: input, shape index: {}]
  %s4 = inlined_call_operand.hbm [shape: f32[16,32], index: 4, kind: input, shape index: {}]
  %s5 = inlined_call_operand.hbm [shape: f32[32,32], index: 5, kind: input, shape index: {}]
  %s6 = inlined_call_operand.hbm [shape: f32[32,32], index: 6, kind: input, shape index: {}]
  %s7 = inlined_call_operand.hbm [shape: f32[32,32], index: 7, kind: input, shape index: {}]
  %s8 = inlined_call_operand.hbm [shape: f32[1,32], index: 8, kind: input, shape index: {}]
  %s9 = inlined_call_operand.vmem [shape: f32[1,32], index: 9, kind: input, shape index: {}]
  %s10 = inlined_call_operand.vmem [shape: f32[1,32], index: 10, kind: input, shape index: {}]
  %s11 = inlined_call_operand.vmem [shape: f32[1,32], index: 11, kind: input, shape index: {}]
  %s12 = inlined_call_operand.vmem [shape: f32[32,32], index: 12, kind: input, shape index: {}]
  %s13 = inlined_call_operand.vmem [shape: f32[32,32], index: 13, kind: input, shape index: {}]
  %s14 = inlined_call_operand.vmem [shape: f32[32,32], index: 14, kind: input, shape index: {}]
  %s15 = inlined_call_operand.vmem [shape: f32[32,32], index: 15, kind: input, shape index: {}]
  %s16 = inlined_call_operand.vmem [shape: f32[32,32], index: 16, kind: input, shape index: {}]
  %s17 = inlined_call_operand.vmem [shape: f32[32,32], index: 17, kind: input, shape index: {}]
  %s18 = inlined_call_operand.vmem [shape: f32[1,32], index: 18, kind: input, shape index: {}]
  %s19 = inlined_call_operand.vmem [shape: f32[1,32], index: 19, kind: input, shape index: {}]
  %s20 = inlined_call_operand.vmem [shape: f32[1,32], index: 20, kind: input, shape index: {}]
  %s21 = inlined_call_operand.vmem [shape: f32[1,32], index: 21, kind: input, shape index: {}]
  %s22 = inlined_call_operand.vmem [shape: f32[32,16], index: 22, kind: input, shape index: {}]
  %s23 = inlined_call_operand.vmem [shape: f32[1,16], index: 23, kind: input, shape index: {}]
  %s24 = inlined_call_operand.vmem [shape: f32[64,16], index: 24, kind: output, shape index: {0}]
  %s25 = inlined_call_operand.vmem [shape: f32[2,8,32], index: 25, kind: output, shape index: {1}]
  %26 = xla_tuple %s24, %s25
  %s27 = sld [smem:[#allocation0]]
  $region142: #{alice_forward.1} parent=0
    _
  %s29 = ssub.s32 1, %s27
  %s30 = scalar_select 0, %s29, %s27
  $region1: #{alice_forward.1} parent=0
    #allocation6 [shape = 'u8[8192]{0}', space=vmem, size = 0x2000, scoped, tag = 'input window, operand 2, single buffered']
    #allocation7 [shape = 's32[1]{0}', space=sflag, size = 0x4, scoped, tag = 'scoped memory for alice_forward.1']
    #allocation8 [shape = 'u8[8192]{0}', space=vmem, size = 0x2000, scoped, tag = 'input window, operand 3, single buffered']
    #allocation9 [shape = 's32[1]{0}', space=sflag, size = 0x4, scoped, tag = 'scoped memory for alice_forward.1']
    #allocation10 [shape = 'u8[8192]{0}', space=vmem, size = 0x2000, scoped, tag = 'input window, operand 4, single buffered']
    #allocation11 [shape = 'u8[16384]{0}', space=vmem, size = 0x4000, scoped, tag = 'input window, operand 5, single buffered']
    #allocation12 [shape = 's32[1]{0}', space=sflag, size = 0x4, scoped, tag = 'scoped memory for alice_forward.1']
    #allocation13 [shape = 'u8[16384]{0}', space=vmem, size = 0x4000, scoped, tag = 'input window, operand 6, single buffered']
    #allocation14 [shape = 'u8[16384]{0}', space=vmem, size = 0x4000, scoped, tag = 'input window, operand 7, single buffered']
    #allocation15 [shape = 's32[1]{0}', space=sflag, size = 0x4, scoped, tag = 'scoped memory for alice_forward.1']
    #allocation16 [shape = 'u8[512]{0}', space=vmem, size = 0x400, scoped, tag = 'input window, operand 8, single buffered']
    %31 = vsyncpa [#allocation7], 0
    %32 = vsyncpa [#allocation9], 0
    %33 = vsyncpa [#allocation12], 0
    %34 = vsyncpa [#allocation15], 0
    // Predicated region
    $region2: #{alice_forward.1} parent=1 // pred_check
      _
    $region3: #{alice_forward.1} parent=1 // pred_check_branch
      %36 = sbr.rel (0) target = $region5
    $region4: #{alice_forward.1} parent=1 // pred_region
      _
    $region5: #{alice_forward.1} parent=1 // pred_fallthru
      _
    // Predicated region
    $region6: #{alice_forward.1} parent=1 // pred_check
      _
    $region7: #{alice_forward.1} parent=1 // pred_check_branch
      %38 = sbr.rel (0) target = $region9
    $region8: #{alice_forward.1} parent=1 // pred_region
      _
    $region9: #{alice_forward.1} parent=1 // pred_fallthru
      _
    // Predicated region
    $region10: #{alice_forward.1} parent=1 // pred_check
      _
    $region11: #{alice_forward.1} parent=1 // pred_check_branch
      %40 = sbr.rel (0) target = $region13
    $region12: #{alice_forward.1} parent=1 // pred_region
      %42 = vsyncadd [#allocation7], 0
      %s43 = sshll.u32 %s2, 4
      %s44 = int_to_ptr.hbm [resolvable:$true] %s43
      %s45 = sshll.u32 [#allocation6], 4
      %s46 = int_to_ptr.vmem [resolvable:$true] %s45
      %51 = dma.hbm_to_vmem [thread:$0]  %s44, 256, %s46, [#allocation7], 128, 128, 8
    $region13: #{alice_forward.1} parent=1 // pred_fallthru
      _
    // Predicated region
    $region14: #{alice_forward.1} parent=1 // pred_check
      _
    $region15: #{alice_forward.1} parent=1 // pred_check_branch
      %53 = sbr.rel (0) target = $region17
    $region16: #{alice_forward.1} parent=1 // pred_region
      %55 = vsyncadd [#allocation9], 0
      %s56 = sshll.u32 %s3, 4
      %s57 = int_to_ptr.hbm [resolvable:$true] %s56
      %s58 = sshll.u32 [#allocation8], 4
      %s59 = int_to_ptr.vmem [resolvable:$true] %s58
      %64 = dma.hbm_to_vmem [thread:$0]  %s57, 256, %s59, [#allocation9], 128, 128, 8
    $region17: #{alice_forward.1} parent=1 // pred_fallthru
      _
    // Predicated region
    $region18: #{alice_forward.1} parent=1 // pred_check
      _
    $region19: #{alice_forward.1} parent=1 // pred_check_branch
      %66 = sbr.rel (0) target = $region21
    $region20: #{alice_forward.1} parent=1 // pred_region
      %68 = vsyncadd [#allocation9], 0
      %s69 = sshll.u32 %s4, 4
      %s70 = int_to_ptr.hbm [resolvable:$true] %s69
      %s71 = sshll.u32 [#allocation10], 4
      %s72 = int_to_ptr.vmem [resolvable:$true] %s71
      %77 = dma.hbm_to_vmem [thread:$0]  %s70, 256, %s72, [#allocation9], 128, 128, 8
    $region21: #{alice_forward.1} parent=1 // pred_fallthru
      _
    // Predicated region
    $region22: #{alice_forward.1} parent=1 // pred_check
      _
    $region23: #{alice_forward.1} parent=1 // pred_check_branch
      %79 = sbr.rel (0) target = $region25
    $region24: #{alice_forward.1} parent=1 // pred_region
      %81 = vsyncadd [#allocation12], 0
      %s82 = sshll.u32 %s5, 4
      %s83 = int_to_ptr.hbm [resolvable:$true] %s82
      %s84 = sshll.u32 [#allocation11], 4
      %s85 = int_to_ptr.vmem [resolvable:$true] %s84
      %90 = dma.hbm_to_vmem [thread:$0]  %s83, 512, %s85, [#allocation12], 128, 128, 8
    $region25: #{alice_forward.1} parent=1 // pred_fallthru
      _
    // Predicated region
    $region26: #{alice_forward.1} parent=1 // pred_check
      _
    $region27: #{alice_forward.1} parent=1 // pred_check_branch
      %92 = sbr.rel (0) target = $region29
    $region28: #{alice_forward.1} parent=1 // pred_region
      %94 = vsyncadd [#allocation12], 0
      %s95 = sshll.u32 %s6, 4
      %s96 = int_to_ptr.hbm [resolvable:$true] %s95
      %s97 = sshll.u32 [#allocation13], 4
      %s98 = int_to_ptr.vmem [resolvable:$true] %s97
      %103 = dma.hbm_to_vmem [thread:$0]  %s96, 512, %s98, [#allocation12], 128, 128, 8
    $region29: #{alice_forward.1} parent=1 // pred_fallthru
      _
    // Predicated region
    $region30: #{alice_forward.1} parent=1 // pred_check
      _
    $region31: #{alice_forward.1} parent=1 // pred_check_branch
      %105 = sbr.rel (0) target = $region33
    $region32: #{alice_forward.1} parent=1 // pred_region
      %107 = vsyncadd [#allocation15], 0
      %s108 = sshll.u32 %s7, 4
      %s109 = int_to_ptr.hbm [resolvable:$true] %s108
      %s110 = sshll.u32 [#allocation14], 4
      %s111 = int_to_ptr.vmem [resolvable:$true] %s110
      %116 = dma.hbm_to_vmem [thread:$0]  %s109, 512, %s111, [#allocation15], 128, 128, 8
    $region33: #{alice_forward.1} parent=1 // pred_fallthru
      _
    // Predicated region
    $region34: #{alice_forward.1} parent=1 // pred_check
      _
    $region35: #{alice_forward.1} parent=1 // pred_check_branch
      %118 = sbr.rel (0) target = $region37
    $region36: #{alice_forward.1} parent=1 // pred_region
      %120 = vsyncadd [#allocation15], 0
      %s122 = sshll.u32 %s8, 4
      %s123 = int_to_ptr.hbm [resolvable:$true] %s122
      %s124 = sshll.u32 [#allocation16], 4
      %s125 = int_to_ptr.vmem [resolvable:$true] %s124
      %127 = dma.hbm_to_vmem [thread:$0]  %s123, 16, %s125, [#allocation15]
    $region37: #{alice_forward.1} parent=1 // pred_fallthru
      _
    // Predicated region
    $region38: #{alice_forward.1} parent=1 // pred_check
      _
    $region39: #{alice_forward.1} parent=1 // pred_check_branch
      %129 = sbr.rel (0) target = $region41
    $region40: #{alice_forward.1} parent=1 // pred_region
      _
    $region41: #{alice_forward.1} parent=1 // pred_fallthru
      _
    // Predicated region
    $region42: #{alice_forward.1} parent=1 // pred_check
      _
    $region43: #{alice_forward.1} parent=1 // pred_check_branch
      %131 = sbr.rel (0) target = $region45
    $region44: #{alice_forward.1} parent=1 // pred_region
      _
    $region45: #{alice_forward.1} parent=1 // pred_fallthru
      _
    // Predicated region
    $region46: #{alice_forward.1} parent=1 // pred_check
      _
    $region47: #{alice_forward.1} parent=1 // pred_check_branch
      %133 = sbr.rel (0) target = $region49
    $region48: #{alice_forward.1} parent=1 // pred_region
      _
    $region49: #{alice_forward.1} parent=1 // pred_fallthru
      _
    // Predicated region
    $region50: #{alice_forward.1} parent=1 // pred_check
      _
    $region51: #{alice_forward.1} parent=1 // pred_check_branch
      %135 = sbr.rel (0) target = $region53
    $region52: #{alice_forward.1} parent=1 // pred_region
      _
    $region53: #{alice_forward.1} parent=1 // pred_fallthru
      _
    // Predicated region
    $region54: #{alice_forward.1} parent=1 // pred_check
      _
    $region55: #{alice_forward.1} parent=1 // pred_check_branch
      %137 = sbr.rel (0) target = $region57
    $region56: #{alice_forward.1} parent=1 // pred_region
      _
    $region57: #{alice_forward.1} parent=1 // pred_fallthru
      _
    // Predicated region
    $region58: #{alice_forward.1} parent=1 // pred_check
      _
    $region59: #{alice_forward.1} parent=1 // pred_check_branch
      %139 = sbr.rel (0) target = $region61
    $region60: #{alice_forward.1} parent=1 // pred_region
      _
    $region61: #{alice_forward.1} parent=1 // pred_fallthru
      _
    // Predicated region
    $region62: #{alice_forward.1} parent=1 // pred_check
      _
    $region63: #{alice_forward.1} parent=1 // pred_check_branch
      %141 = sbr.rel (0) target = $region65
    $region64: #{alice_forward.1} parent=1 // pred_region
      _
    $region65: #{alice_forward.1} parent=1 // pred_fallthru
      _
    // Predicated region
    $region66: #{alice_forward.1} parent=1 // pred_check
      _
    $region67: #{alice_forward.1} parent=1 // pred_check_branch
      %143 = sbr.rel (0) target = $region69
    $region68: #{alice_forward.1} parent=1 // pred_region
      _
    $region69: #{alice_forward.1} parent=1 // pred_fallthru
      _
    // Predicated region
    $region70: #{alice_forward.1} parent=1 // pred_check
      _
    $region71: #{alice_forward.1} parent=1 // pred_check_branch
      %145 = sbr.rel (0) target = $region73
    $region72: #{alice_forward.1} parent=1 // pred_region
      _
    $region73: #{alice_forward.1} parent=1 // pred_fallthru
      _
    // Predicated region
    $region74: #{alice_forward.1} parent=1 // pred_check
      _
    $region75: #{alice_forward.1} parent=1 // pred_check_branch
      %147 = sbr.rel (0) target = $region77
    $region76: #{alice_forward.1} parent=1 // pred_region
      _
    $region77: #{alice_forward.1} parent=1 // pred_fallthru
      _
    // Predicated region
    $region78: #{alice_forward.1} parent=1 // pred_check
      _
    $region79: #{alice_forward.1} parent=1 // pred_check_branch
      %149 = sbr.rel (0) target = $region81
    $region80: #{alice_forward.1} parent=1 // pred_region
      _
    $region81: #{alice_forward.1} parent=1 // pred_fallthru
      _
    // Predicated region
    $region82: #{alice_forward.1} parent=1 // pred_check
      _
    $region83: #{alice_forward.1} parent=1 // pred_check_branch
      %151 = sbr.rel (0) target = $region85
    $region84: #{alice_forward.1} parent=1 // pred_region
      _
    $region85: #{alice_forward.1} parent=1 // pred_fallthru
      _
    // Predicated region
    $region86: #{alice_forward.1} parent=1 // pred_check
      _
    $region87: #{alice_forward.1} parent=1 // pred_check_branch
      %153 = sbr.rel (0) target = $region89
    $region88: #{alice_forward.1} parent=1 // pred_region
      _
    $region89: #{alice_forward.1} parent=1 // pred_fallthru
      _
    // Predicated region
    $region90: #{alice_forward.1} parent=1 // pred_check
      _
    $region91: #{alice_forward.1} parent=1 // pred_check_branch
      %155 = sbr.rel (0) target = $region93
    $region92: #{alice_forward.1} parent=1 // pred_region
      _
    $region93: #{alice_forward.1} parent=1 // pred_fallthru
      _
    // Predicated region
    $region94: #{alice_forward.1} parent=1 // pred_check
      _
    $region95: #{alice_forward.1} parent=1 // pred_check_branch
      %157 = sbr.rel (0) target = $region97
    $region96: #{alice_forward.1} parent=1 // pred_region
      _
    $region97: #{alice_forward.1} parent=1 // pred_fallthru
      _
    // Predicated region
    $region98: #{alice_forward.1} parent=1 // pred_check
      _
    $region99: #{alice_forward.1} parent=1 // pred_check_branch
      %159 = sbr.rel (0) target = $region101
    $region100: #{alice_forward.1} parent=1 // pred_region
      %161 = dma.done [#allocation7], 256
    $region101: #{alice_forward.1} parent=1 // pred_fallthru
      _
    // Predicated region
    $region102: #{alice_forward.1} parent=1 // pred_check
      _
    $region103: #{alice_forward.1} parent=1 // pred_check_branch
      %163 = sbr.rel (0) target = $region105
    $region104: #{alice_forward.1} parent=1 // pred_region
      %165 = dma.done [#allocation9], 256
    $region105: #{alice_forward.1} parent=1 // pred_fallthru
      _
    // Predicated region
    $region106: #{alice_forward.1} parent=1 // pred_check
      _
    $region107: #{alice_forward.1} parent=1 // pred_check_branch
      %167 = sbr.rel (0) target = $region109
    $region108: #{alice_forward.1} parent=1 // pred_region
      %169 = dma.done [#allocation9], 256
    $region109: #{alice_forward.1} parent=1 // pred_fallthru
      _
    // Predicated region
    $region110: #{alice_forward.1} parent=1 // pred_check
      _
    $region111: #{alice_forward.1} parent=1 // pred_check_branch
      %171 = sbr.rel (0) target = $region113
    $region112: #{alice_forward.1} parent=1 // pred_region
      %173 = dma.done [#allocation12], 512
    $region113: #{alice_forward.1} parent=1 // pred_fallthru
      _
    // Predicated region
    $region114: #{alice_forward.1} parent=1 // pred_check
      _
    $region115: #{alice_forward.1} parent=1 // pred_check_branch
      %175 = sbr.rel (0) target = $region117
    $region116: #{alice_forward.1} parent=1 // pred_region
      %177 = dma.done [#allocation12], 512
    $region117: #{alice_forward.1} parent=1 // pred_fallthru
      _
    // Predicated region
    $region118: #{alice_forward.1} parent=1 // pred_check
      _
    $region119: #{alice_forward.1} parent=1 // pred_check_branch
      %179 = sbr.rel (0) target = $region121
    $region120: #{alice_forward.1} parent=1 // pred_region
      %181 = dma.done [#allocation15], 512
    $region121: #{alice_forward.1} parent=1 // pred_fallthru
      _
    // Predicated region
    $region122: #{alice_forward.1} parent=1 // pred_check
      _
    $region123: #{alice_forward.1} parent=1 // pred_check_branch
      %183 = sbr.rel (0) target = $region125
    $region124: #{alice_forward.1} parent=1 // pred_region
      %185 = dma.done [#allocation15], 16
    $region125: #{alice_forward.1} parent=1 // pred_fallthru
      _
    %v186 = vld [vmem:[%s0] sm:$0xff]
    %v187 = vld [vmem:[%s0 + $0x8] sm:$0xff]
    %v188 = vld [vmem:[%s0 + $0x10] sm:$0xff]
    %v189 = vld [vmem:[%s0 + $0x18] sm:$0xff]
    %v190 = vld [vmem:[%s0 + $0x20] sm:$0xff]
    %v191 = vld [vmem:[%s0 + $0x28] sm:$0xff]
    %v192 = vld [vmem:[%s0 + $0x30] sm:$0xff]
    %v193 = vld [vmem:[%s0 + $0x38] sm:$0xff]
    %v194 = vld [vmem:[#allocation6] sm:$0xff]
    %v195 = vld [vmem:[#allocation6 + $0x8] sm:$0xff]
    %v196 = vld [vmem:[#allocation16] sm:$0x1]
    %v198 = vperm.slane %v196, 0
    %vm200 = vcmask 130048
    %v202 = vsel %vm200, %v186, 0
    %v205 = vsel %vm200, %v187, 0
    %v208 = vsel %vm200, %v188, 0
    %v211 = vsel %vm200, %v189, 0
    %v214 = vsel %vm200, %v190, 0
    %v217 = vsel %vm200, %v191, 0
    %v220 = vsel %vm200, %v192, 0
    %v223 = vsel %vm200, %v193, 0
    %225 = vmatpush.msra.mxu0 0.0
    %226 = vmatpush.msra.mxu0 0.0
    %227 = vmatpush.msra.mxu0 0.0
    %228 = vmatpush.msra.mxu0 0.0
    %229 = vmatpush.msra.mxu0 0.0
    %230 = vmatpush.msra.mxu0 0.0
    %231 = vmatpush.msra.mxu0 0.0
    %232 = vmatpush.msra.mxu0 0.0
    %233 = vmatpush.msra.mxu0 0.0
    %234 = vmatpush.msra.mxu0 0.0
    %235 = vmatpush.msra.mxu0 0.0
    %236 = vmatpush.msra.mxu0 0.0
    %237 = vmatpush.msra.mxu0 0.0
    %238 = vmatpush.msra.mxu0 0.0
    %239 = vmatpush.msra.mxu0 %v195
    %240 = vmatpush.msra.mxu0 %v194
    %241 = vmatmul.f32.gmra.mxu0 %v202
    %v242 = vpop.f32.mrf.mxu0
    %v243 = vadd.f32 %v198, %v242
    %244 = vmatmul.f32.gmra.mxu0 %v205
    %v245 = vpop.f32.mrf.mxu0
    %v246 = vadd.f32 %v198, %v245
    %247 = vmatmul.f32.gmra.mxu0 %v208
    %v248 = vpop.f32.mrf.mxu0
    %v249 = vadd.f32 %v198, %v248
    %250 = vmatmul.f32.gmra.mxu0 %v211
    %v251 = vpop.f32.mrf.mxu0
    %v252 = vadd.f32 %v198, %v251
    %253 = vmatmul.f32.gmra.mxu0 %v214
    %v254 = vpop.f32.mrf.mxu0
    %v255 = vadd.f32 %v198, %v254
    %256 = vmatmul.f32.gmra.mxu0 %v217
    %v257 = vpop.f32.mrf.mxu0
    %v258 = vadd.f32 %v198, %v257
    %259 = vmatmul.f32.gmra.mxu0 %v220
    %v260 = vpop.f32.mrf.mxu0
    %v261 = vadd.f32 %v198, %v260
    %262 = vmatmul.f32.gmra.mxu0 %v223
    %v263 = vpop.f32.mrf.mxu0
    %v264 = vadd.f32 %v198, %v263
    %265 = vdwg.mxu0
    %vm266 = vcmask 261120
    %267 = vst.msk [vmem:[#allocation2] sm:$0xff] %vm266, %v243
    %268 = vst.msk [vmem:[#allocation2 + $0x8] sm:$0xff] %vm266, %v246
    %269 = vst.msk [vmem:[#allocation2 + $0x10] sm:$0xff] %vm266, %v249
    %270 = vst.msk [vmem:[#allocation2 + $0x18] sm:$0xff] %vm266, %v252
    %271 = vst.msk [vmem:[#allocation2 + $0x20] sm:$0xff] %vm266, %v255
    %272 = vst.msk [vmem:[#allocation2 + $0x28] sm:$0xff] %vm266, %v258
    %273 = vst.msk [vmem:[#allocation2 + $0x30] sm:$0xff] %vm266, %v261
    %274 = vst.msk [vmem:[#allocation2 + $0x38] sm:$0xff] %vm266, %v264
    %v275 = vld [vmem:[#allocation8] sm:$0xff]
    %v276 = vld [vmem:[#allocation8 + $0x8] sm:$0xff]
    %v277 = vld [vmem:[%s9] sm:$0x1]
    %v279 = vperm.slane %v277, 0
    %281 = vmatpush.msra.mxu0 0.0
    %282 = vmatpush.msra.mxu0 0.0
    %283 = vmatpush.msra.mxu0 0.0
    %284 = vmatpush.msra.mxu0 0.0
    %285 = vmatpush.msra.mxu0 0.0
    %286 = vmatpush.msra.mxu0 0.0
    %287 = vmatpush.msra.mxu0 0.0
    %288 = vmatpush.msra.mxu0 0.0
    %289 = vmatpush.msra.mxu0 0.0
    %290 = vmatpush.msra.mxu0 0.0
    %291 = vmatpush.msra.mxu0 0.0
    %292 = vmatpush.msra.mxu0 0.0
    %293 = vmatpush.msra.mxu0 0.0
    %294 = vmatpush.msra.mxu0 0.0
    %295 = vmatpush.msra.mxu0 %v276
    %296 = vmatpush.msra.mxu0 %v275
    %297 = vmatmul.f32.gmra.mxu0 %v202
    %v298 = vpop.f32.mrf.mxu0
    %v299 = vadd.f32 %v279, %v298
    %300 = vmatmul.f32.gmra.mxu0 %v205
    %v301 = vpop.f32.mrf.mxu0
    %v302 = vadd.f32 %v279, %v301
    %303 = vmatmul.f32.gmra.mxu0 %v208
    %v304 = vpop.f32.mrf.mxu0
    %v305 = vadd.f32 %v279, %v304
    %306 = vmatmul.f32.gmra.mxu0 %v211
    %v307 = vpop.f32.mrf.mxu0
    %v308 = vadd.f32 %v279, %v307
    %309 = vmatmul.f32.gmra.mxu0 %v214
    %v310 = vpop.f32.mrf.mxu0
    %v311 = vadd.f32 %v279, %v310
    %312 = vmatmul.f32.gmra.mxu0 %v217
    %v313 = vpop.f32.mrf.mxu0
    %v314 = vadd.f32 %v279, %v313
    %315 = vmatmul.f32.gmra.mxu0 %v220
    %v316 = vpop.f32.mrf.mxu0
    %v317 = vadd.f32 %v279, %v316
    %318 = vmatmul.f32.gmra.mxu0 %v223
    %v319 = vpop.f32.mrf.mxu0
    %v320 = vadd.f32 %v279, %v319
    %321 = vdwg.mxu0
    %322 = vst.msk [vmem:[#allocation3] sm:$0xff] %vm266, %v299
    %323 = vst.msk [vmem:[#allocation3 + $0x8] sm:$0xff] %vm266, %v302
    %324 = vst.msk [vmem:[#allocation3 + $0x10] sm:$0xff] %vm266, %v305
    %325 = vst.msk [vmem:[#allocation3 + $0x18] sm:$0xff] %vm266, %v308
    %326 = vst.msk [vmem:[#allocation3 + $0x20] sm:$0xff] %vm266, %v311
    %327 = vst.msk [vmem:[#allocation3 + $0x28] sm:$0xff] %vm266, %v314
    %328 = vst.msk [vmem:[#allocation3 + $0x30] sm:$0xff] %vm266, %v317
    %329 = vst.msk [vmem:[#allocation3 + $0x38] sm:$0xff] %vm266, %v320
    %v330 = vld [vmem:[#allocation10] sm:$0xff]
    %v331 = vld [vmem:[#allocation10 + $0x8] sm:$0xff]
    %v332 = vld [vmem:[%s10] sm:$0x1]
    %v334 = vperm.slane %v332, 0
    %336 = vmatpush.msra.mxu0 0.0
    %337 = vmatpush.msra.mxu0 0.0
    %338 = vmatpush.msra.mxu0 0.0
    %339 = vmatpush.msra.mxu0 0.0
    %340 = vmatpush.msra.mxu0 0.0
    %341 = vmatpush.msra.mxu0 0.0
    %342 = vmatpush.msra.mxu0 0.0
    %343 = vmatpush.msra.mxu0 0.0
    %344 = vmatpush.msra.mxu0 0.0
    %345 = vmatpush.msra.mxu0 0.0
    %346 = vmatpush.msra.mxu0 0.0
    %347 = vmatpush.msra.mxu0 0.0
    %348 = vmatpush.msra.mxu0 0.0
    %349 = vmatpush.msra.mxu0 0.0
    %350 = vmatpush.msra.mxu0 %v331
    %351 = vmatpush.msra.mxu0 %v330
    %352 = vmatmul.f32.gmra.mxu0 %v202
    %v353 = vpop.f32.mrf.mxu0
    %v354 = vadd.f32 %v334, %v353
    %355 = vmatmul.f32.gmra.mxu0 %v205
    %v356 = vpop.f32.mrf.mxu0
    %v357 = vadd.f32 %v334, %v356
    %358 = vmatmul.f32.gmra.mxu0 %v208
    %v359 = vpop.f32.mrf.mxu0
    %v360 = vadd.f32 %v334, %v359
    %361 = vmatmul.f32.gmra.mxu0 %v211
    %v362 = vpop.f32.mrf.mxu0
    %v363 = vadd.f32 %v334, %v362
    %364 = vmatmul.f32.gmra.mxu0 %v214
    %v365 = vpop.f32.mrf.mxu0
    %v366 = vadd.f32 %v334, %v365
    %367 = vmatmul.f32.gmra.mxu0 %v217
    %v368 = vpop.f32.mrf.mxu0
    %v369 = vadd.f32 %v334, %v368
    %370 = vmatmul.f32.gmra.mxu0 %v220
    %v371 = vpop.f32.mrf.mxu0
    %v372 = vadd.f32 %v334, %v371
    %373 = vmatmul.f32.gmra.mxu0 %v223
    %v374 = vpop.f32.mrf.mxu0
    %v375 = vadd.f32 %v334, %v374
    %376 = vdwg.mxu0
    %377 = vst.msk [vmem:[#allocation4] sm:$0xff] %vm266, %v354
    %378 = vst.msk [vmem:[#allocation4 + $0x8] sm:$0xff] %vm266, %v357
    %379 = vst.msk [vmem:[#allocation4 + $0x10] sm:$0xff] %vm266, %v360
    %380 = vst.msk [vmem:[#allocation4 + $0x18] sm:$0xff] %vm266, %v363
    %381 = vst.msk [vmem:[#allocation4 + $0x20] sm:$0xff] %vm266, %v366
    %382 = vst.msk [vmem:[#allocation4 + $0x28] sm:$0xff] %vm266, %v369
    %383 = vst.msk [vmem:[#allocation4 + $0x30] sm:$0xff] %vm266, %v372
    %384 = vst.msk [vmem:[#allocation4 + $0x38] sm:$0xff] %vm266, %v375
    %v385 = vld [vmem:[#allocation11] sm:$0xff]
    %v386 = vld [vmem:[#allocation11 + $0x8] sm:$0xff]
    %v387 = vld [vmem:[#allocation11 + $0x10] sm:$0xff]
    %v388 = vld [vmem:[#allocation11 + $0x18] sm:$0xff]
    %v389 = vld [vmem:[#allocation13] sm:$0xff]
    %v390 = vld [vmem:[#allocation13 + $0x8] sm:$0xff]
    %v391 = vld [vmem:[#allocation13 + $0x10] sm:$0xff]
    %v392 = vld [vmem:[#allocation13 + $0x18] sm:$0xff]
    %v393 = vld [vmem:[#allocation14] sm:$0xff]
    %v394 = vld [vmem:[#allocation14 + $0x8] sm:$0xff]
    %v395 = vld [vmem:[#allocation14 + $0x10] sm:$0xff]
    %v396 = vld [vmem:[#allocation14 + $0x18] sm:$0xff]
    %v397 = vld [vmem:[%s11] sm:$0x1]
    %v398 = vld [vmem:[%s1] sm:$0xff]
    %v399 = vld [vmem:[#allocation2] sm:$0xff]
    %v400 = vld [vmem:[#allocation3] sm:$0xff]
    %v401 = vld [vmem:[#allocation4] sm:$0xff]
    %v403 = vsel %vm266, %v398, 0
    %405 = vmatpush.msra.mxu0 0.0
    %406 = vmatpush.msra.mxu0 0.0
    %407 = vmatpush.msra.mxu0 0.0
    %408 = vmatpush.msra.mxu0 0.0
    %409 = vmatpush.msra.mxu0 0.0
    %410 = vmatpush.msra.mxu0 0.0
    %411 = vmatpush.msra.mxu0 0.0
    %412 = vmatpush.msra.mxu0 0.0
    %413 = vmatpush.msra.mxu0 0.0
    %414 = vmatpush.msra.mxu0 0.0
    %415 = vmatpush.msra.mxu0 0.0
    %416 = vmatpush.msra.mxu0 0.0
    %417 = vmatpush.msra.mxu0 %v388
    %418 = vmatpush.msra.mxu0 %v387
    %419 = vmatpush.msra.mxu0 %v386
    %420 = vmatpush.msra.mxu0 %v385
    %421 = vmatmul.f32.gmra.mxu0 %v403
    %v422 = vpop.f32.mrf.mxu0
    %v423 = vadd.f32 0.0, %v422
    %424 = vdwg.mxu0
    %v425 = vadd.f32 %v399, %v423
    %v426 = vxor.u32 %v425, 2147483648
    %v427 = vmul.f32 %v426, 1.442695
    %v428 = vpow.pop %v427
    %v429 = vadd.f32 %v428, 1.0
    %v430 = vrcp.pop %v429
    %v431 = vmul.f32 %v429, %v430
    %v432 = vsub.f32 1.0, %v431
    %v433 = vmul.f32 %v430, %v432
    %v434 = vadd.f32 %v430, %v433
    %vm435 = vweird.f32 %v429
    %vm436 = vweird.f32 %v430
    %vm437 = vmor %vm435, %vm436
    %v438 = vsel %vm437, %v430, %v434
    %v439 = vand.u32 2147483647, %v429
    %vm440 = vcmp.eq.f32.partialorder %v439, 8.507059e+37
    %v441 = vand.u32 %v429, 2147483648
    %v442 = vor.u32 1.1754944e-38, %v441
    %v443 = vsel %vm440, %v442, %v438
    %v444 = vmul.f32 1.0, %v443
    %445 = vmatpush.msra.mxu0 0.0
    %446 = vmatpush.msra.mxu0 0.0
    %447 = vmatpush.msra.mxu0 0.0
    %448 = vmatpush.msra.mxu0 0.0
    %449 = vmatpush.msra.mxu0 0.0
    %450 = vmatpush.msra.mxu0 0.0
    %451 = vmatpush.msra.mxu0 0.0
    %452 = vmatpush.msra.mxu0 0.0
    %453 = vmatpush.msra.mxu0 0.0
    %454 = vmatpush.msra.mxu0 0.0
    %455 = vmatpush.msra.mxu0 0.0
    %456 = vmatpush.msra.mxu0 0.0
    %457 = vmatpush.msra.mxu0 %v392
    %458 = vmatpush.msra.mxu0 %v391
    %459 = vmatpush.msra.mxu0 %v390
    %460 = vmatpush.msra.mxu0 %v389
    %461 = vmatmul.f32.gmra.mxu0 %v403
    %v462 = vpop.f32.mrf.mxu0
    %v463 = vadd.f32 0.0, %v462
    %464 = vdwg.mxu0
    %v465 = vadd.f32 %v400, %v463
    %v466 = vxor.u32 %v465, 2147483648
    %v467 = vmul.f32 %v466, 1.442695
    %v468 = vpow.pop %v467
    %v469 = vadd.f32 %v468, 1.0
    %v470 = vrcp.pop %v469
    %v471 = vmul.f32 %v469, %v470
    %v472 = vsub.f32 1.0, %v471
    %v473 = vmul.f32 %v470, %v472
    %v474 = vadd.f32 %v470, %v473
    %vm475 = vweird.f32 %v469
    %vm476 = vweird.f32 %v470
    %vm477 = vmor %vm475, %vm476
    %v478 = vsel %vm477, %v470, %v474
    %v479 = vand.u32 2147483647, %v469
    %vm480 = vcmp.eq.f32.partialorder %v479, 8.507059e+37
    %v481 = vand.u32 %v469, 2147483648
    %v482 = vor.u32 1.1754944e-38, %v481
    %v483 = vsel %vm480, %v482, %v478
    %v484 = vmul.f32 1.0, %v483
    %v486 = vperm.slane %v397, 0
    %488 = vmatpush.msra.mxu0 0.0
    %489 = vmatpush.msra.mxu0 0.0
    %490 = vmatpush.msra.mxu0 0.0
    %491 = vmatpush.msra.mxu0 0.0
    %492 = vmatpush.msra.mxu0 0.0
    %493 = vmatpush.msra.mxu0 0.0
    %494 = vmatpush.msra.mxu0 0.0
    %495 = vmatpush.msra.mxu0 0.0
    %496 = vmatpush.msra.mxu0 0.0
    %497 = vmatpush.msra.mxu0 0.0
    %498 = vmatpush.msra.mxu0 0.0
    %499 = vmatpush.msra.mxu0 0.0
    %500 = vmatpush.msra.mxu0 %v396
    %501 = vmatpush.msra.mxu0 %v395
    %502 = vmatpush.msra.mxu0 %v394
    %503 = vmatpush.msra.mxu0 %v393
    %504 = vmatmul.f32.gmra.mxu0 %v403
    %v505 = vpop.f32.mrf.mxu0
    %v506 = vadd.f32 %v486, %v505
    %507 = vdwg.mxu0
    %v508 = vmul.f32 %v444, %v506
    %v509 = vadd.f32 %v401, %v508
    %v510 = vtanh.pop %v509
    %v511 = vsub.f32 1.0, %v484
    %v512 = vmul.f32 %v511, %v510
    %v513 = vmul.f32 %v484, %v398
    %v514 = vadd.f32 %v512, %v513
    %515 = vst.msk [vmem:[#allocation5] sm:$0xff] %vm266, %v514
    %v516 = vld [vmem:[#allocation2 + $0x8] sm:$0xff]
    %v517 = vld [vmem:[#allocation3 + $0x8] sm:$0xff]
    %v518 = vld [vmem:[#allocation4 + $0x8] sm:$0xff]
    %v520 = vsel %vm266, %v514, 0
    %522 = vmatpush.msra.mxu0 0.0
    %523 = vmatpush.msra.mxu0 0.0
    %524 = vmatpush.msra.mxu0 0.0
    %525 = vmatpush.msra.mxu0 0.0
    %526 = vmatpush.msra.mxu0 0.0
    %527 = vmatpush.msra.mxu0 0.0
    %528 = vmatpush.msra.mxu0 0.0
    %529 = vmatpush.msra.mxu0 0.0
    %530 = vmatpush.msra.mxu0 0.0
    %531 = vmatpush.msra.mxu0 0.0
    %532 = vmatpush.msra.mxu0 0.0
    %533 = vmatpush.msra.mxu0 0.0
    %534 = vmatpush.msra.mxu0 %v388
    %535 = vmatpush.msra.mxu0 %v387
    %536 = vmatpush.msra.mxu0 %v386
    %537 = vmatpush.msra.mxu0 %v385
    %538 = vmatmul.f32.gmra.mxu0 %v520
    %v539 = vpop.f32.mrf.mxu0
    %v540 = vadd.f32 0.0, %v539
    %541 = vdwg.mxu0
    %v542 = vadd.f32 %v516, %v540
    %v543 = vxor.u32 %v542, 2147483648
    %v544 = vmul.f32 %v543, 1.442695
    %v545 = vpow.pop %v544
    %v546 = vadd.f32 %v545, 1.0
    %v547 = vrcp.pop %v546
    %v548 = vmul.f32 %v546, %v547
    %v549 = vsub.f32 1.0, %v548
    %v550 = vmul.f32 %v547, %v549
    %v551 = vadd.f32 %v547, %v550
    %vm552 = vweird.f32 %v546
    %vm553 = vweird.f32 %v547
    %vm554 = vmor %vm552, %vm553
    %v555 = vsel %vm554, %v547, %v551
    %v556 = vand.u32 2147483647, %v546
    %vm557 = vcmp.eq.f32.partialorder %v556, 8.507059e+37
    %v558 = vand.u32 %v546, 2147483648
    %v559 = vor.u32 1.1754944e-38, %v558
    %v560 = vsel %vm557, %v559, %v555
    %v561 = vmul.f32 1.0, %v560
    %562 = vmatpush.msra.mxu0 0.0
    %563 = vmatpush.msra.mxu0 0.0
    %564 = vmatpush.msra.mxu0 0.0
    %565 = vmatpush.msra.mxu0 0.0
    %566 = vmatpush.msra.mxu0 0.0
    %567 = vmatpush.msra.mxu0 0.0
    %568 = vmatpush.msra.mxu0 0.0
    %569 = vmatpush.msra.mxu0 0.0
    %570 = vmatpush.msra.mxu0 0.0
    %571 = vmatpush.msra.mxu0 0.0
    %572 = vmatpush.msra.mxu0 0.0
    %573 = vmatpush.msra.mxu0 0.0
    %574 = vmatpush.msra.mxu0 %v392
    %575 = vmatpush.msra.mxu0 %v391
    %576 = vmatpush.msra.mxu0 %v390
    %577 = vmatpush.msra.mxu0 %v389
    %578 = vmatmul.f32.gmra.mxu0 %v520
    %v579 = vpop.f32.mrf.mxu0
    %v580 = vadd.f32 0.0, %v579
    %581 = vdwg.mxu0
    %v582 = vadd.f32 %v517, %v580
    %v583 = vxor.u32 %v582, 2147483648
    %v584 = vmul.f32 %v583, 1.442695
    %v585 = vpow.pop %v584
    %v586 = vadd.f32 %v585, 1.0
    %v587 = vrcp.pop %v586
    %v588 = vmul.f32 %v586, %v587
    %v589 = vsub.f32 1.0, %v588
    %v590 = vmul.f32 %v587, %v589
    %v591 = vadd.f32 %v587, %v590
    %vm592 = vweird.f32 %v586
    %vm593 = vweird.f32 %v587
    %vm594 = vmor %vm592, %vm593
    %v595 = vsel %vm594, %v587, %v591
    %v596 = vand.u32 2147483647, %v586
    %vm597 = vcmp.eq.f32.partialorder %v596, 8.507059e+37
    %v598 = vand.u32 %v586, 2147483648
    %v599 = vor.u32 1.1754944e-38, %v598
    %v600 = vsel %vm597, %v599, %v595
    %v601 = vmul.f32 1.0, %v600
    %602 = vmatpush.msra.mxu0 0.0
    %603 = vmatpush.msra.mxu0 0.0
    %604 = vmatpush.msra.mxu0 0.0
    %605 = vmatpush.msra.mxu0 0.0
    %606 = vmatpush.msra.mxu0 0.0
    %607 = vmatpush.msra.mxu0 0.0
    %608 = vmatpush.msra.mxu0 0.0
    %609 = vmatpush.msra.mxu0 0.0
    %610 = vmatpush.msra.mxu0 0.0
    %611 = vmatpush.msra.mxu0 0.0
    %612 = vmatpush.msra.mxu0 0.0
    %613 = vmatpush.msra.mxu0 0.0
    %614 = vmatpush.msra.mxu0 %v396
    %615 = vmatpush.msra.mxu0 %v395
    %616 = vmatpush.msra.mxu0 %v394
    %617 = vmatpush.msra.mxu0 %v393
    %618 = vmatmul.f32.gmra.mxu0 %v520
    %v619 = vpop.f32.mrf.mxu0
    %v620 = vadd.f32 %v486, %v619
    %621 = vdwg.mxu0
    %v622 = vmul.f32 %v561, %v620
    %v623 = vadd.f32 %v518, %v622
    %v624 = vtanh.pop %v623
    %v625 = vsub.f32 1.0, %v601
    %v626 = vmul.f32 %v625, %v624
    %v627 = vmul.f32 %v601, %v514
    %v628 = vadd.f32 %v626, %v627
    %629 = vst.msk [vmem:[#allocation5 + $0x8] sm:$0xff] %vm266, %v628
    %v630 = vld [vmem:[#allocation2 + $0x10] sm:$0xff]
    %v631 = vld [vmem:[#allocation3 + $0x10] sm:$0xff]
    %v632 = vld [vmem:[#allocation4 + $0x10] sm:$0xff]
    %v634 = vsel %vm266, %v628, 0
    %636 = vmatpush.msra.mxu0 0.0
    %637 = vmatpush.msra.mxu0 0.0
    %638 = vmatpush.msra.mxu0 0.0
    %639 = vmatpush.msra.mxu0 0.0
    %640 = vmatpush.msra.mxu0 0.0
    %641 = vmatpush.msra.mxu0 0.0
    %642 = vmatpush.msra.mxu0 0.0
    %643 = vmatpush.msra.mxu0 0.0
    %644 = vmatpush.msra.mxu0 0.0
    %645 = vmatpush.msra.mxu0 0.0
    %646 = vmatpush.msra.mxu0 0.0
    %647 = vmatpush.msra.mxu0 0.0
    %648 = vmatpush.msra.mxu0 %v388
    %649 = vmatpush.msra.mxu0 %v387
    %650 = vmatpush.msra.mxu0 %v386
    %651 = vmatpush.msra.mxu0 %v385
    %652 = vmatmul.f32.gmra.mxu0 %v634
    %v653 = vpop.f32.mrf.mxu0
    %v654 = vadd.f32 0.0, %v653
    %655 = vdwg.mxu0
    %v656 = vadd.f32 %v630, %v654
    %v657 = vxor.u32 %v656, 2147483648
    %v658 = vmul.f32 %v657, 1.442695
    %v659 = vpow.pop %v658
    %v660 = vadd.f32 %v659, 1.0
    %v661 = vrcp.pop %v660
    %v662 = vmul.f32 %v660, %v661
    %v663 = vsub.f32 1.0, %v662
    %v664 = vmul.f32 %v661, %v663
    %v665 = vadd.f32 %v661, %v664
    %vm666 = vweird.f32 %v660
    %vm667 = vweird.f32 %v661
    %vm668 = vmor %vm666, %vm667
    %v669 = vsel %vm668, %v661, %v665
    %v670 = vand.u32 2147483647, %v660
    %vm671 = vcmp.eq.f32.partialorder %v670, 8.507059e+37
    %v672 = vand.u32 %v660, 2147483648
    %v673 = vor.u32 1.1754944e-38, %v672
    %v674 = vsel %vm671, %v673, %v669
    %v675 = vmul.f32 1.0, %v674
    %676 = vmatpush.msra.mxu0 0.0
    %677 = vmatpush.msra.mxu0 0.0
    %678 = vmatpush.msra.mxu0 0.0
    %679 = vmatpush.msra.mxu0 0.0
    %680 = vmatpush.msra.mxu0 0.0
    %681 = vmatpush.msra.mxu0 0.0
    %682 = vmatpush.msra.mxu0 0.0
    %683 = vmatpush.msra.mxu0 0.0
    %684 = vmatpush.msra.mxu0 0.0
    %685 = vmatpush.msra.mxu0 0.0
    %686 = vmatpush.msra.mxu0 0.0
    %687 = vmatpush.msra.mxu0 0.0
    %688 = vmatpush.msra.mxu0 %v392
    %689 = vmatpush.msra.mxu0 %v391
    %690 = vmatpush.msra.mxu0 %v390
    %691 = vmatpush.msra.mxu0 %v389
    %692 = vmatmul.f32.gmra.mxu0 %v634
    %v693 = vpop.f32.mrf.mxu0
    %v694 = vadd.f32 0.0, %v693
    %695 = vdwg.mxu0
    %v696 = vadd.f32 %v631, %v694
    %v697 = vxor.u32 %v696, 2147483648
    %v698 = vmul.f32 %v697, 1.442695
    %v699 = vpow.pop %v698
    %v700 = vadd.f32 %v699, 1.0
    %v701 = vrcp.pop %v700
    %v702 = vmul.f32 %v700, %v701
    %v703 = vsub.f32 1.0, %v702
    %v704 = vmul.f32 %v701, %v703
    %v705 = vadd.f32 %v701, %v704
    %vm706 = vweird.f32 %v700
    %vm707 = vweird.f32 %v701
    %vm708 = vmor %vm706, %vm707
    %v709 = vsel %vm708, %v701, %v705
    %v710 = vand.u32 2147483647, %v700
    %vm711 = vcmp.eq.f32.partialorder %v710, 8.507059e+37
    %v712 = vand.u32 %v700, 2147483648
    %v713 = vor.u32 1.1754944e-38, %v712
    %v714 = vsel %vm711, %v713, %v709
    %v715 = vmul.f32 1.0, %v714
    %716 = vmatpush.msra.mxu0 0.0
    %717 = vmatpush.msra.mxu0 0.0
    %718 = vmatpush.msra.mxu0 0.0
    %719 = vmatpush.msra.mxu0 0.0
    %720 = vmatpush.msra.mxu0 0.0
    %721 = vmatpush.msra.mxu0 0.0
    %722 = vmatpush.msra.mxu0 0.0
    %723 = vmatpush.msra.mxu0 0.0
    %724 = vmatpush.msra.mxu0 0.0
    %725 = vmatpush.msra.mxu0 0.0
    %726 = vmatpush.msra.mxu0 0.0
    %727 = vmatpush.msra.mxu0 0.0
    %728 = vmatpush.msra.mxu0 %v396
    %729 = vmatpush.msra.mxu0 %v395
    %730 = vmatpush.msra.mxu0 %v394
    %731 = vmatpush.msra.mxu0 %v393
    %732 = vmatmul.f32.gmra.mxu0 %v634
    %v733 = vpop.f32.mrf.mxu0
    %v734 = vadd.f32 %v486, %v733
    %735 = vdwg.mxu0
    %v736 = vmul.f32 %v675, %v734
    %v737 = vadd.f32 %v632, %v736
    %v738 = vtanh.pop %v737
    %v739 = vsub.f32 1.0, %v715
    %v740 = vmul.f32 %v739, %v738
    %v741 = vmul.f32 %v715, %v628
    %v742 = vadd.f32 %v740, %v741
    %743 = vst.msk [vmem:[#allocation5 + $0x10] sm:$0xff] %vm266, %v742
    %v744 = vld [vmem:[#allocation2 + $0x18] sm:$0xff]
    %v745 = vld [vmem:[#allocation3 + $0x18] sm:$0xff]
    %v746 = vld [vmem:[#allocation4 + $0x18] sm:$0xff]
    %v748 = vsel %vm266, %v742, 0
    %750 = vmatpush.msra.mxu0 0.0
    %751 = vmatpush.msra.mxu0 0.0
    %752 = vmatpush.msra.mxu0 0.0
    %753 = vmatpush.msra.mxu0 0.0
    %754 = vmatpush.msra.mxu0 0.0
    %755 = vmatpush.msra.mxu0 0.0
    %756 = vmatpush.msra.mxu0 0.0
    %757 = vmatpush.msra.mxu0 0.0
    %758 = vmatpush.msra.mxu0 0.0
    %759 = vmatpush.msra.mxu0 0.0
    %760 = vmatpush.msra.mxu0 0.0
    %761 = vmatpush.msra.mxu0 0.0
    %762 = vmatpush.msra.mxu0 %v388
    %763 = vmatpush.msra.mxu0 %v387
    %764 = vmatpush.msra.mxu0 %v386
    %765 = vmatpush.msra.mxu0 %v385
    %766 = vmatmul.f32.gmra.mxu0 %v748
    %v767 = vpop.f32.mrf.mxu0
    %v768 = vadd.f32 0.0, %v767
    %769 = vdwg.mxu0
    %v770 = vadd.f32 %v744, %v768
    %v771 = vxor.u32 %v770, 2147483648
    %v772 = vmul.f32 %v771, 1.442695
    %v773 = vpow.pop %v772
    %v774 = vadd.f32 %v773, 1.0
    %v775 = vrcp.pop %v774
    %v776 = vmul.f32 %v774, %v775
    %v777 = vsub.f32 1.0, %v776
    %v778 = vmul.f32 %v775, %v777
    %v779 = vadd.f32 %v775, %v778
    %vm780 = vweird.f32 %v774
    %vm781 = vweird.f32 %v775
    %vm782 = vmor %vm780, %vm781
    %v783 = vsel %vm782, %v775, %v779
    %v784 = vand.u32 2147483647, %v774
    %vm785 = vcmp.eq.f32.partialorder %v784, 8.507059e+37
    %v786 = vand.u32 %v774, 2147483648
    %v787 = vor.u32 1.1754944e-38, %v786
    %v788 = vsel %vm785, %v787, %v783
    %v789 = vmul.f32 1.0, %v788
    %790 = vmatpush.msra.mxu0 0.0
    %791 = vmatpush.msra.mxu0 0.0
    %792 = vmatpush.msra.mxu0 0.0
    %793 = vmatpush.msra.mxu0 0.0
    %794 = vmatpush.msra.mxu0 0.0
    %795 = vmatpush.msra.mxu0 0.0
    %796 = vmatpush.msra.mxu0 0.0
    %797 = vmatpush.msra.mxu0 0.0
    %798 = vmatpush.msra.mxu0 0.0
    %799 = vmatpush.msra.mxu0 0.0
    %800 = vmatpush.msra.mxu0 0.0
    %801 = vmatpush.msra.mxu0 0.0
    %802 = vmatpush.msra.mxu0 %v392
    %803 = vmatpush.msra.mxu0 %v391
    %804 = vmatpush.msra.mxu0 %v390
    %805 = vmatpush.msra.mxu0 %v389
    %806 = vmatmul.f32.gmra.mxu0 %v748
    %v807 = vpop.f32.mrf.mxu0
    %v808 = vadd.f32 0.0, %v807
    %809 = vdwg.mxu0
    %v810 = vadd.f32 %v745, %v808
    %v811 = vxor.u32 %v810, 2147483648
    %v812 = vmul.f32 %v811, 1.442695
    %v813 = vpow.pop %v812
    %v814 = vadd.f32 %v813, 1.0
    %v815 = vrcp.pop %v814
    %v816 = vmul.f32 %v814, %v815
    %v817 = vsub.f32 1.0, %v816
    %v818 = vmul.f32 %v815, %v817
    %v819 = vadd.f32 %v815, %v818
    %vm820 = vweird.f32 %v814
    %vm821 = vweird.f32 %v815
    %vm822 = vmor %vm820, %vm821
    %v823 = vsel %vm822, %v815, %v819
    %v824 = vand.u32 2147483647, %v814
    %vm825 = vcmp.eq.f32.partialorder %v824, 8.507059e+37
    %v826 = vand.u32 %v814, 2147483648
    %v827 = vor.u32 1.1754944e-38, %v826
    %v828 = vsel %vm825, %v827, %v823
    %v829 = vmul.f32 1.0, %v828
    %830 = vmatpush.msra.mxu0 0.0
    %831 = vmatpush.msra.mxu0 0.0
    %832 = vmatpush.msra.mxu0 0.0
    %833 = vmatpush.msra.mxu0 0.0
    %834 = vmatpush.msra.mxu0 0.0
    %835 = vmatpush.msra.mxu0 0.0
    %836 = vmatpush.msra.mxu0 0.0
    %837 = vmatpush.msra.mxu0 0.0
    %838 = vmatpush.msra.mxu0 0.0
    %839 = vmatpush.msra.mxu0 0.0
    %840 = vmatpush.msra.mxu0 0.0
    %841 = vmatpush.msra.mxu0 0.0
    %842 = vmatpush.msra.mxu0 %v396
    %843 = vmatpush.msra.mxu0 %v395
    %844 = vmatpush.msra.mxu0 %v394
    %845 = vmatpush.msra.mxu0 %v393
    %846 = vmatmul.f32.gmra.mxu0 %v748
    %v847 = vpop.f32.mrf.mxu0
    %v848 = vadd.f32 %v486, %v847
    %849 = vdwg.mxu0
    %v850 = vmul.f32 %v789, %v848
    %v851 = vadd.f32 %v746, %v850
    %v852 = vtanh.pop %v851
    %v853 = vsub.f32 1.0, %v829
    %v854 = vmul.f32 %v853, %v852
    %v855 = vmul.f32 %v829, %v742
    %v856 = vadd.f32 %v854, %v855
    %857 = vst.msk [vmem:[#allocation5 + $0x18] sm:$0xff] %vm266, %v856
    %v858 = vld [vmem:[#allocation2 + $0x20] sm:$0xff]
    %v859 = vld [vmem:[#allocation3 + $0x20] sm:$0xff]
    %v860 = vld [vmem:[#allocation4 + $0x20] sm:$0xff]
    %v862 = vsel %vm266, %v856, 0
    %864 = vmatpush.msra.mxu0 0.0
    %865 = vmatpush.msra.mxu0 0.0
    %866 = vmatpush.msra.mxu0 0.0
    %867 = vmatpush.msra.mxu0 0.0
    %868 = vmatpush.msra.mxu0 0.0
    %869 = vmatpush.msra.mxu0 0.0
    %870 = vmatpush.msra.mxu0 0.0
    %871 = vmatpush.msra.mxu0 0.0
    %872 = vmatpush.msra.mxu0 0.0
    %873 = vmatpush.msra.mxu0 0.0
    %874 = vmatpush.msra.mxu0 0.0
    %875 = vmatpush.msra.mxu0 0.0
    %876 = vmatpush.msra.mxu0 %v388
    %877 = vmatpush.msra.mxu0 %v387
    %878 = vmatpush.msra.mxu0 %v386
    %879 = vmatpush.msra.mxu0 %v385
    %880 = vmatmul.f32.gmra.mxu0 %v862
    %v881 = vpop.f32.mrf.mxu0
    %v882 = vadd.f32 0.0, %v881
    %883 = vdwg.mxu0
    %v884 = vadd.f32 %v858, %v882
    %v885 = vxor.u32 %v884, 2147483648
    %v886 = vmul.f32 %v885, 1.442695
    %v887 = vpow.pop %v886
    %v888 = vadd.f32 %v887, 1.0
    %v889 = vrcp.pop %v888
    %v890 = vmul.f32 %v888, %v889
    %v891 = vsub.f32 1.0, %v890
    %v892 = vmul.f32 %v889, %v891
    %v893 = vadd.f32 %v889, %v892
    %vm894 = vweird.f32 %v888
    %vm895 = vweird.f32 %v889
    %vm896 = vmor %vm894, %vm895
    %v897 = vsel %vm896, %v889, %v893
    %v898 = vand.u32 2147483647, %v888
    %vm899 = vcmp.eq.f32.partialorder %v898, 8.507059e+37
    %v900 = vand.u32 %v888, 2147483648
    %v901 = vor.u32 1.1754944e-38, %v900
    %v902 = vsel %vm899, %v901, %v897
    %v903 = vmul.f32 1.0, %v902
    %904 = vmatpush.msra.mxu0 0.0
    %905 = vmatpush.msra.mxu0 0.0
    %906 = vmatpush.msra.mxu0 0.0
    %907 = vmatpush.msra.mxu0 0.0
    %908 = vmatpush.msra.mxu0 0.0
    %909 = vmatpush.msra.mxu0 0.0
    %910 = vmatpush.msra.mxu0 0.0
    %911 = vmatpush.msra.mxu0 0.0
    %912 = vmatpush.msra.mxu0 0.0
    %913 = vmatpush.msra.mxu0 0.0
    %914 = vmatpush.msra.mxu0 0.0
    %915 = vmatpush.msra.mxu0 0.0
    %916 = vmatpush.msra.mxu0 %v392
    %917 = vmatpush.msra.mxu0 %v391
    %918 = vmatpush.msra.mxu0 %v390
    %919 = vmatpush.msra.mxu0 %v389
    %920 = vmatmul.f32.gmra.mxu0 %v862
    %v921 = vpop.f32.mrf.mxu0
    %v922 = vadd.f32 0.0, %v921
    %923 = vdwg.mxu0
    %v924 = vadd.f32 %v859, %v922
    %v925 = vxor.u32 %v924, 2147483648
    %v926 = vmul.f32 %v925, 1.442695
    %v927 = vpow.pop %v926
    %v928 = vadd.f32 %v927, 1.0
    %v929 = vrcp.pop %v928
    %v930 = vmul.f32 %v928, %v929
    %v931 = vsub.f32 1.0, %v930
    %v932 = vmul.f32 %v929, %v931
    %v933 = vadd.f32 %v929, %v932
    %vm934 = vweird.f32 %v928
    %vm935 = vweird.f32 %v929
    %vm936 = vmor %vm934, %vm935
    %v937 = vsel %vm936, %v929, %v933
    %v938 = vand.u32 2147483647, %v928
    %vm939 = vcmp.eq.f32.partialorder %v938, 8.507059e+37
    %v940 = vand.u32 %v928, 2147483648
    %v941 = vor.u32 1.1754944e-38, %v940
    %v942 = vsel %vm939, %v941, %v937
    %v943 = vmul.f32 1.0, %v942
    %944 = vmatpush.msra.mxu0 0.0
    %945 = vmatpush.msra.mxu0 0.0
    %946 = vmatpush.msra.mxu0 0.0
    %947 = vmatpush.msra.mxu0 0.0
    %948 = vmatpush.msra.mxu0 0.0
    %949 = vmatpush.msra.mxu0 0.0
    %950 = vmatpush.msra.mxu0 0.0
    %951 = vmatpush.msra.mxu0 0.0
    %952 = vmatpush.msra.mxu0 0.0
    %953 = vmatpush.msra.mxu0 0.0
    %954 = vmatpush.msra.mxu0 0.0
    %955 = vmatpush.msra.mxu0 0.0
    %956 = vmatpush.msra.mxu0 %v396
    %957 = vmatpush.msra.mxu0 %v395
    %958 = vmatpush.msra.mxu0 %v394
    %959 = vmatpush.msra.mxu0 %v393
    %960 = vmatmul.f32.gmra.mxu0 %v862
    %v961 = vpop.f32.mrf.mxu0
    %v962 = vadd.f32 %v486, %v961
    %963 = vdwg.mxu0
    %v964 = vmul.f32 %v903, %v962
    %v965 = vadd.f32 %v860, %v964
    %v966 = vtanh.pop %v965
    %v967 = vsub.f32 1.0, %v943
    %v968 = vmul.f32 %v967, %v966
    %v969 = vmul.f32 %v943, %v856
    %v970 = vadd.f32 %v968, %v969
    %971 = vst.msk [vmem:[#allocation5 + $0x20] sm:$0xff] %vm266, %v970
    %v972 = vld [vmem:[#allocation2 + $0x28] sm:$0xff]
    %v973 = vld [vmem:[#allocation3 + $0x28] sm:$0xff]
    %v974 = vld [vmem:[#allocation4 + $0x28] sm:$0xff]
    %v976 = vsel %vm266, %v970, 0
    %978 = vmatpush.msra.mxu0 0.0
    %979 = vmatpush.msra.mxu0 0.0
    %980 = vmatpush.msra.mxu0 0.0
    %981 = vmatpush.msra.mxu0 0.0
    %982 = vmatpush.msra.mxu0 0.0
    %983 = vmatpush.msra.mxu0 0.0
    %984 = vmatpush.msra.mxu0 0.0
    %985 = vmatpush.msra.mxu0 0.0
    %986 = vmatpush.msra.mxu0 0.0
    %987 = vmatpush.msra.mxu0 0.0
    %988 = vmatpush.msra.mxu0 0.0
    %989 = vmatpush.msra.mxu0 0.0
    %990 = vmatpush.msra.mxu0 %v388
    %991 = vmatpush.msra.mxu0 %v387
    %992 = vmatpush.msra.mxu0 %v386
    %993 = vmatpush.msra.mxu0 %v385
    %994 = vmatmul.f32.gmra.mxu0 %v976
    %v995 = vpop.f32.mrf.mxu0
    %v996 = vadd.f32 0.0, %v995
    %997 = vdwg.mxu0
    %v998 = vadd.f32 %v972, %v996
    %v999 = vxor.u32 %v998, 2147483648
    %v1000 = vmul.f32 %v999, 1.442695
    %v1001 = vpow.pop %v1000
    %v1002 = vadd.f32 %v1001, 1.0
    %v1003 = vrcp.pop %v1002
    %v1004 = vmul.f32 %v1002, %v1003
    %v1005 = vsub.f32 1.0, %v1004
    %v1006 = vmul.f32 %v1003, %v1005
    %v1007 = vadd.f32 %v1003, %v1006
    %vm1008 = vweird.f32 %v1002
    %vm1009 = vweird.f32 %v1003
    %vm1010 = vmor %vm1008, %vm1009
    %v1011 = vsel %vm1010, %v1003, %v1007
    %v1012 = vand.u32 2147483647, %v1002
    %vm1013 = vcmp.eq.f32.partialorder %v1012, 8.507059e+37
    %v1014 = vand.u32 %v1002, 2147483648
    %v1015 = vor.u32 1.1754944e-38, %v1014
    %v1016 = vsel %vm1013, %v1015, %v1011
    %v1017 = vmul.f32 1.0, %v1016
    %1018 = vmatpush.msra.mxu0 0.0
    %1019 = vmatpush.msra.mxu0 0.0
    %1020 = vmatpush.msra.mxu0 0.0
    %1021 = vmatpush.msra.mxu0 0.0
    %1022 = vmatpush.msra.mxu0 0.0
    %1023 = vmatpush.msra.mxu0 0.0
    %1024 = vmatpush.msra.mxu0 0.0
    %1025 = vmatpush.msra.mxu0 0.0
    %1026 = vmatpush.msra.mxu0 0.0
    %1027 = vmatpush.msra.mxu0 0.0
    %1028 = vmatpush.msra.mxu0 0.0
    %1029 = vmatpush.msra.mxu0 0.0
    %1030 = vmatpush.msra.mxu0 %v392
    %1031 = vmatpush.msra.mxu0 %v391
    %1032 = vmatpush.msra.mxu0 %v390
    %1033 = vmatpush.msra.mxu0 %v389
    %1034 = vmatmul.f32.gmra.mxu0 %v976
    %v1035 = vpop.f32.mrf.mxu0
    %v1036 = vadd.f32 0.0, %v1035
    %1037 = vdwg.mxu0
    %v1038 = vadd.f32 %v973, %v1036
    %v1039 = vxor.u32 %v1038, 2147483648
    %v1040 = vmul.f32 %v1039, 1.442695
    %v1041 = vpow.pop %v1040
    %v1042 = vadd.f32 %v1041, 1.0
    %v1043 = vrcp.pop %v1042
    %v1044 = vmul.f32 %v1042, %v1043
    %v1045 = vsub.f32 1.0, %v1044
    %v1046 = vmul.f32 %v1043, %v1045
    %v1047 = vadd.f32 %v1043, %v1046
    %vm1048 = vweird.f32 %v1042
    %vm1049 = vweird.f32 %v1043
    %vm1050 = vmor %vm1048, %vm1049
    %v1051 = vsel %vm1050, %v1043, %v1047
    %v1052 = vand.u32 2147483647, %v1042
    %vm1053 = vcmp.eq.f32.partialorder %v1052, 8.507059e+37
    %v1054 = vand.u32 %v1042, 2147483648
    %v1055 = vor.u32 1.1754944e-38, %v1054
    %v1056 = vsel %vm1053, %v1055, %v1051
    %v1057 = vmul.f32 1.0, %v1056
    %1058 = vmatpush.msra.mxu0 0.0
    %1059 = vmatpush.msra.mxu0 0.0
    %1060 = vmatpush.msra.mxu0 0.0
    %1061 = vmatpush.msra.mxu0 0.0
    %1062 = vmatpush.msra.mxu0 0.0
    %1063 = vmatpush.msra.mxu0 0.0
    %1064 = vmatpush.msra.mxu0 0.0
    %1065 = vmatpush.msra.mxu0 0.0
    %1066 = vmatpush.msra.mxu0 0.0
    %1067 = vmatpush.msra.mxu0 0.0
    %1068 = vmatpush.msra.mxu0 0.0
    %1069 = vmatpush.msra.mxu0 0.0
    %1070 = vmatpush.msra.mxu0 %v396
    %1071 = vmatpush.msra.mxu0 %v395
    %1072 = vmatpush.msra.mxu0 %v394
    %1073 = vmatpush.msra.mxu0 %v393
    %1074 = vmatmul.f32.gmra.mxu0 %v976
    %v1075 = vpop.f32.mrf.mxu0
    %v1076 = vadd.f32 %v486, %v1075
    %1077 = vdwg.mxu0
    %v1078 = vmul.f32 %v1017, %v1076
    %v1079 = vadd.f32 %v974, %v1078
    %v1080 = vtanh.pop %v1079
    %v1081 = vsub.f32 1.0, %v1057
    %v1082 = vmul.f32 %v1081, %v1080
    %v1083 = vmul.f32 %v1057, %v970
    %v1084 = vadd.f32 %v1082, %v1083
    %1085 = vst.msk [vmem:[#allocation5 + $0x28] sm:$0xff] %vm266, %v1084
    %v1086 = vld [vmem:[#allocation2 + $0x30] sm:$0xff]
    %v1087 = vld [vmem:[#allocation3 + $0x30] sm:$0xff]
    %v1088 = vld [vmem:[#allocation4 + $0x30] sm:$0xff]
    %v1090 = vsel %vm266, %v1084, 0
    %1092 = vmatpush.msra.mxu0 0.0
    %1093 = vmatpush.msra.mxu0 0.0
    %1094 = vmatpush.msra.mxu0 0.0
    %1095 = vmatpush.msra.mxu0 0.0
    %1096 = vmatpush.msra.mxu0 0.0
    %1097 = vmatpush.msra.mxu0 0.0
    %1098 = vmatpush.msra.mxu0 0.0
    %1099 = vmatpush.msra.mxu0 0.0
    %1100 = vmatpush.msra.mxu0 0.0
    %1101 = vmatpush.msra.mxu0 0.0
    %1102 = vmatpush.msra.mxu0 0.0
    %1103 = vmatpush.msra.mxu0 0.0
    %1104 = vmatpush.msra.mxu0 %v388
    %1105 = vmatpush.msra.mxu0 %v387
    %1106 = vmatpush.msra.mxu0 %v386
    %1107 = vmatpush.msra.mxu0 %v385
    %1108 = vmatmul.f32.gmra.mxu0 %v1090
    %v1109 = vpop.f32.mrf.mxu0
    %v1110 = vadd.f32 0.0, %v1109
    %1111 = vdwg.mxu0
    %v1112 = vadd.f32 %v1086, %v1110
    %v1113 = vxor.u32 %v1112, 2147483648
    %v1114 = vmul.f32 %v1113, 1.442695
    %v1115 = vpow.pop %v1114
    %v1116 = vadd.f32 %v1115, 1.0
    %v1117 = vrcp.pop %v1116
    %v1118 = vmul.f32 %v1116, %v1117
    %v1119 = vsub.f32 1.0, %v1118
    %v1120 = vmul.f32 %v1117, %v1119
    %v1121 = vadd.f32 %v1117, %v1120
    %vm1122 = vweird.f32 %v1116
    %vm1123 = vweird.f32 %v1117
    %vm1124 = vmor %vm1122, %vm1123
    %v1125 = vsel %vm1124, %v1117, %v1121
    %v1126 = vand.u32 2147483647, %v1116
    %vm1127 = vcmp.eq.f32.partialorder %v1126, 8.507059e+37
    %v1128 = vand.u32 %v1116, 2147483648
    %v1129 = vor.u32 1.1754944e-38, %v1128
    %v1130 = vsel %vm1127, %v1129, %v1125
    %v1131 = vmul.f32 1.0, %v1130
    %1132 = vmatpush.msra.mxu0 0.0
    %1133 = vmatpush.msra.mxu0 0.0
    %1134 = vmatpush.msra.mxu0 0.0
    %1135 = vmatpush.msra.mxu0 0.0
    %1136 = vmatpush.msra.mxu0 0.0
    %1137 = vmatpush.msra.mxu0 0.0
    %1138 = vmatpush.msra.mxu0 0.0
    %1139 = vmatpush.msra.mxu0 0.0
    %1140 = vmatpush.msra.mxu0 0.0
    %1141 = vmatpush.msra.mxu0 0.0
    %1142 = vmatpush.msra.mxu0 0.0
    %1143 = vmatpush.msra.mxu0 0.0
    %1144 = vmatpush.msra.mxu0 %v392
    %1145 = vmatpush.msra.mxu0 %v391
    %1146 = vmatpush.msra.mxu0 %v390
    %1147 = vmatpush.msra.mxu0 %v389
    %1148 = vmatmul.f32.gmra.mxu0 %v1090
    %v1149 = vpop.f32.mrf.mxu0
    %v1150 = vadd.f32 0.0, %v1149
    %1151 = vdwg.mxu0
    %v1152 = vadd.f32 %v1087, %v1150
    %v1153 = vxor.u32 %v1152, 2147483648
    %v1154 = vmul.f32 %v1153, 1.442695
    %v1155 = vpow.pop %v1154
    %v1156 = vadd.f32 %v1155, 1.0
    %v1157 = vrcp.pop %v1156
    %v1158 = vmul.f32 %v1156, %v1157
    %v1159 = vsub.f32 1.0, %v1158
    %v1160 = vmul.f32 %v1157, %v1159
    %v1161 = vadd.f32 %v1157, %v1160
    %vm1162 = vweird.f32 %v1156
    %vm1163 = vweird.f32 %v1157
    %vm1164 = vmor %vm1162, %vm1163
    %v1165 = vsel %vm1164, %v1157, %v1161
    %v1166 = vand.u32 2147483647, %v1156
    %vm1167 = vcmp.eq.f32.partialorder %v1166, 8.507059e+37
    %v1168 = vand.u32 %v1156, 2147483648
    %v1169 = vor.u32 1.1754944e-38, %v1168
    %v1170 = vsel %vm1167, %v1169, %v1165
    %v1171 = vmul.f32 1.0, %v1170
    %1172 = vmatpush.msra.mxu0 0.0
    %1173 = vmatpush.msra.mxu0 0.0
    %1174 = vmatpush.msra.mxu0 0.0
    %1175 = vmatpush.msra.mxu0 0.0
    %1176 = vmatpush.msra.mxu0 0.0
    %1177 = vmatpush.msra.mxu0 0.0
    %1178 = vmatpush.msra.mxu0 0.0
    %1179 = vmatpush.msra.mxu0 0.0
    %1180 = vmatpush.msra.mxu0 0.0
    %1181 = vmatpush.msra.mxu0 0.0
    %1182 = vmatpush.msra.mxu0 0.0
    %1183 = vmatpush.msra.mxu0 0.0
    %1184 = vmatpush.msra.mxu0 %v396
    %1185 = vmatpush.msra.mxu0 %v395
    %1186 = vmatpush.msra.mxu0 %v394
    %1187 = vmatpush.msra.mxu0 %v393
    %1188 = vmatmul.f32.gmra.mxu0 %v1090
    %v1189 = vpop.f32.mrf.mxu0
    %v1190 = vadd.f32 %v486, %v1189
    %1191 = vdwg.mxu0
    %v1192 = vmul.f32 %v1131, %v1190
    %v1193 = vadd.f32 %v1088, %v1192
    %v1194 = vtanh.pop %v1193
    %v1195 = vsub.f32 1.0, %v1171
    %v1196 = vmul.f32 %v1195, %v1194
    %v1197 = vmul.f32 %v1171, %v1084
    %v1198 = vadd.f32 %v1196, %v1197
    %1199 = vst.msk [vmem:[#allocation5 + $0x30] sm:$0xff] %vm266, %v1198
    %v1200 = vld [vmem:[#allocation2 + $0x38] sm:$0xff]
    %v1201 = vld [vmem:[#allocation3 + $0x38] sm:$0xff]
    %v1202 = vld [vmem:[#allocation4 + $0x38] sm:$0xff]
    %v1204 = vsel %vm266, %v1198, 0
    %1206 = vmatpush.msra.mxu0 0.0
    %1207 = vmatpush.msra.mxu0 0.0
    %1208 = vmatpush.msra.mxu0 0.0
    %1209 = vmatpush.msra.mxu0 0.0
    %1210 = vmatpush.msra.mxu0 0.0
    %1211 = vmatpush.msra.mxu0 0.0
    %1212 = vmatpush.msra.mxu0 0.0
    %1213 = vmatpush.msra.mxu0 0.0
    %1214 = vmatpush.msra.mxu0 0.0
    %1215 = vmatpush.msra.mxu0 0.0
    %1216 = vmatpush.msra.mxu0 0.0
    %1217 = vmatpush.msra.mxu0 0.0
    %1218 = vmatpush.msra.mxu0 %v388
    %1219 = vmatpush.msra.mxu0 %v387
    %1220 = vmatpush.msra.mxu0 %v386
    %1221 = vmatpush.msra.mxu0 %v385
    %1222 = vmatmul.f32.gmra.mxu0 %v1204
    %v1223 = vpop.f32.mrf.mxu0
    %v1224 = vadd.f32 0.0, %v1223
    %1225 = vdwg.mxu0
    %v1226 = vadd.f32 %v1200, %v1224
    %v1227 = vxor.u32 %v1226, 2147483648
    %v1228 = vmul.f32 %v1227, 1.442695
    %v1229 = vpow.pop %v1228
    %v1230 = vadd.f32 %v1229, 1.0
    %v1231 = vrcp.pop %v1230
    %v1232 = vmul.f32 %v1230, %v1231
    %v1233 = vsub.f32 1.0, %v1232
    %v1234 = vmul.f32 %v1231, %v1233
    %v1235 = vadd.f32 %v1231, %v1234
    %vm1236 = vweird.f32 %v1230
    %vm1237 = vweird.f32 %v1231
    %vm1238 = vmor %vm1236, %vm1237
    %v1239 = vsel %vm1238, %v1231, %v1235
    %v1240 = vand.u32 2147483647, %v1230
    %vm1241 = vcmp.eq.f32.partialorder %v1240, 8.507059e+37
    %v1242 = vand.u32 %v1230, 2147483648
    %v1243 = vor.u32 1.1754944e-38, %v1242
    %v1244 = vsel %vm1241, %v1243, %v1239
    %v1245 = vmul.f32 1.0, %v1244
    %1246 = vmatpush.msra.mxu0 0.0
    %1247 = vmatpush.msra.mxu0 0.0
    %1248 = vmatpush.msra.mxu0 0.0
    %1249 = vmatpush.msra.mxu0 0.0
    %1250 = vmatpush.msra.mxu0 0.0
    %1251 = vmatpush.msra.mxu0 0.0
    %1252 = vmatpush.msra.mxu0 0.0
    %1253 = vmatpush.msra.mxu0 0.0
    %1254 = vmatpush.msra.mxu0 0.0
    %1255 = vmatpush.msra.mxu0 0.0
    %1256 = vmatpush.msra.mxu0 0.0
    %1257 = vmatpush.msra.mxu0 0.0
    %1258 = vmatpush.msra.mxu0 %v392
    %1259 = vmatpush.msra.mxu0 %v391
    %1260 = vmatpush.msra.mxu0 %v390
    %1261 = vmatpush.msra.mxu0 %v389
    %1262 = vmatmul.f32.gmra.mxu0 %v1204
    %v1263 = vpop.f32.mrf.mxu0
    %v1264 = vadd.f32 0.0, %v1263
    %1265 = vdwg.mxu0
    %v1266 = vadd.f32 %v1201, %v1264
    %v1267 = vxor.u32 %v1266, 2147483648
    %v1268 = vmul.f32 %v1267, 1.442695
    %v1269 = vpow.pop %v1268
    %v1270 = vadd.f32 %v1269, 1.0
    %v1271 = vrcp.pop %v1270
    %v1272 = vmul.f32 %v1270, %v1271
    %v1273 = vsub.f32 1.0, %v1272
    %v1274 = vmul.f32 %v1271, %v1273
    %v1275 = vadd.f32 %v1271, %v1274
    %vm1276 = vweird.f32 %v1270
    %vm1277 = vweird.f32 %v1271
    %vm1278 = vmor %vm1276, %vm1277
    %v1279 = vsel %vm1278, %v1271, %v1275
    %v1280 = vand.u32 2147483647, %v1270
    %vm1281 = vcmp.eq.f32.partialorder %v1280, 8.507059e+37
    %v1282 = vand.u32 %v1270, 2147483648
    %v1283 = vor.u32 1.1754944e-38, %v1282
    %v1284 = vsel %vm1281, %v1283, %v1279
    %v1285 = vmul.f32 1.0, %v1284
    %1286 = vmatpush.msra.mxu0 0.0
    %1287 = vmatpush.msra.mxu0 0.0
    %1288 = vmatpush.msra.mxu0 0.0
    %1289 = vmatpush.msra.mxu0 0.0
    %1290 = vmatpush.msra.mxu0 0.0
    %1291 = vmatpush.msra.mxu0 0.0
    %1292 = vmatpush.msra.mxu0 0.0
    %1293 = vmatpush.msra.mxu0 0.0
    %1294 = vmatpush.msra.mxu0 0.0
    %1295 = vmatpush.msra.mxu0 0.0
    %1296 = vmatpush.msra.mxu0 0.0
    %1297 = vmatpush.msra.mxu0 0.0
    %1298 = vmatpush.msra.mxu0 %v396
    %1299 = vmatpush.msra.mxu0 %v395
    %1300 = vmatpush.msra.mxu0 %v394
    %1301 = vmatpush.msra.mxu0 %v393
    %1302 = vmatmul.f32.gmra.mxu0 %v1204
    %v1303 = vpop.f32.mrf.mxu0
    %v1304 = vadd.f32 %v486, %v1303
    %1305 = vdwg.mxu0
    %v1306 = vmul.f32 %v1245, %v1304
    %v1307 = vadd.f32 %v1202, %v1306
    %v1308 = vtanh.pop %v1307
    %v1309 = vsub.f32 1.0, %v1285
    %v1310 = vmul.f32 %v1309, %v1308
    %v1311 = vmul.f32 %v1285, %v1198
    %v1312 = vadd.f32 %v1310, %v1311
    %1313 = vst.msk [vmem:[#allocation5 + $0x38] sm:$0xff] %vm266, %v1312
    %1314 = vst.msk [vmem:[%s25] sm:$0xff] %vm266, %v1312
    %v1315 = vld [vmem:[#allocation5] sm:$0xff]
    %v1316 = vld [vmem:[#allocation5 + $0x8] sm:$0xff]
    %v1317 = vld [vmem:[#allocation5 + $0x10] sm:$0xff]
    %v1318 = vld [vmem:[#allocation5 + $0x18] sm:$0xff]
    %v1319 = vld [vmem:[#allocation5 + $0x20] sm:$0xff]
    %v1320 = vld [vmem:[#allocation5 + $0x28] sm:$0xff]
    %v1321 = vld [vmem:[#allocation5 + $0x30] sm:$0xff]
    %v1322 = vld [vmem:[#allocation5 + $0x38] sm:$0xff]
    %v1323 = vld [vmem:[%s12] sm:$0xff]
    %v1324 = vld [vmem:[%s12 + $0x8] sm:$0xff]
    %v1325 = vld [vmem:[%s12 + $0x10] sm:$0xff]
    %v1326 = vld [vmem:[%s12 + $0x18] sm:$0xff]
    %v1327 = vld [vmem:[%s18] sm:$0x1]
    %v1329 = vperm.slane %v1327, 0
    %v1332 = vsel %vm266, %v1315, 0
    %v1335 = vsel %vm266, %v1316, 0
    %v1338 = vsel %vm266, %v1317, 0
    %v1341 = vsel %vm266, %v1318, 0
    %v1344 = vsel %vm266, %v1319, 0
    %v1347 = vsel %vm266, %v1320, 0
    %v1350 = vsel %vm266, %v1321, 0
    %v1353 = vsel %vm266, %v1322, 0
    %1355 = vmatpush.msra.mxu0 0.0
    %1356 = vmatpush.msra.mxu0 0.0
    %1357 = vmatpush.msra.mxu0 0.0
    %1358 = vmatpush.msra.mxu0 0.0
    %1359 = vmatpush.msra.mxu0 0.0
    %1360 = vmatpush.msra.mxu0 0.0
    %1361 = vmatpush.msra.mxu0 0.0
    %1362 = vmatpush.msra.mxu0 0.0
    %1363 = vmatpush.msra.mxu0 0.0
    %1364 = vmatpush.msra.mxu0 0.0
    %1365 = vmatpush.msra.mxu0 0.0
    %1366 = vmatpush.msra.mxu0 0.0
    %1367 = vmatpush.msra.mxu0 %v1326
    %1368 = vmatpush.msra.mxu0 %v1325
    %1369 = vmatpush.msra.mxu0 %v1324
    %1370 = vmatpush.msra.mxu0 %v1323
    %1371 = vmatmul.f32.gmra.mxu0 %v1332
    %v1372 = vpop.f32.mrf.mxu0
    %v1373 = vadd.f32 %v1329, %v1372
    %1374 = vmatmul.f32.gmra.mxu0 %v1335
    %v1375 = vpop.f32.mrf.mxu0
    %v1376 = vadd.f32 %v1329, %v1375
    %1377 = vmatmul.f32.gmra.mxu0 %v1338
    %v1378 = vpop.f32.mrf.mxu0
    %v1379 = vadd.f32 %v1329, %v1378
    %1380 = vmatmul.f32.gmra.mxu0 %v1341
    %v1381 = vpop.f32.mrf.mxu0
    %v1382 = vadd.f32 %v1329, %v1381
    %1383 = vmatmul.f32.gmra.mxu0 %v1344
    %v1384 = vpop.f32.mrf.mxu0
    %v1385 = vadd.f32 %v1329, %v1384
    %1386 = vmatmul.f32.gmra.mxu0 %v1347
    %v1387 = vpop.f32.mrf.mxu0
    %v1388 = vadd.f32 %v1329, %v1387
    %1389 = vmatmul.f32.gmra.mxu0 %v1350
    %v1390 = vpop.f32.mrf.mxu0
    %v1391 = vadd.f32 %v1329, %v1390
    %1392 = vmatmul.f32.gmra.mxu0 %v1353
    %v1393 = vpop.f32.mrf.mxu0
    %v1394 = vadd.f32 %v1329, %v1393
    %1395 = vdwg.mxu0
    %1396 = vst.msk [vmem:[#allocation2] sm:$0xff] %vm266, %v1373
    %1397 = vst.msk [vmem:[#allocation2 + $0x8] sm:$0xff] %vm266, %v1376
    %1398 = vst.msk [vmem:[#allocation2 + $0x10] sm:$0xff] %vm266, %v1379
    %1399 = vst.msk [vmem:[#allocation2 + $0x18] sm:$0xff] %vm266, %v1382
    %1400 = vst.msk [vmem:[#allocation2 + $0x20] sm:$0xff] %vm266, %v1385
    %1401 = vst.msk [vmem:[#allocation2 + $0x28] sm:$0xff] %vm266, %v1388
    %1402 = vst.msk [vmem:[#allocation2 + $0x30] sm:$0xff] %vm266, %v1391
    %1403 = vst.msk [vmem:[#allocation2 + $0x38] sm:$0xff] %vm266, %v1394
    %v1404 = vld [vmem:[%s13] sm:$0xff]
    %v1405 = vld [vmem:[%s13 + $0x8] sm:$0xff]
    %v1406 = vld [vmem:[%s13 + $0x10] sm:$0xff]
    %v1407 = vld [vmem:[%s13 + $0x18] sm:$0xff]
    %v1408 = vld [vmem:[%s19] sm:$0x1]
    %v1410 = vperm.slane %v1408, 0
    %1412 = vmatpush.msra.mxu0 0.0
    %1413 = vmatpush.msra.mxu0 0.0
    %1414 = vmatpush.msra.mxu0 0.0
    %1415 = vmatpush.msra.mxu0 0.0
    %1416 = vmatpush.msra.mxu0 0.0
    %1417 = vmatpush.msra.mxu0 0.0
    %1418 = vmatpush.msra.mxu0 0.0
    %1419 = vmatpush.msra.mxu0 0.0
    %1420 = vmatpush.msra.mxu0 0.0
    %1421 = vmatpush.msra.mxu0 0.0
    %1422 = vmatpush.msra.mxu0 0.0
    %1423 = vmatpush.msra.mxu0 0.0
    %1424 = vmatpush.msra.mxu0 %v1407
    %1425 = vmatpush.msra.mxu0 %v1406
    %1426 = vmatpush.msra.mxu0 %v1405
    %1427 = vmatpush.msra.mxu0 %v1404
    %1428 = vmatmul.f32.gmra.mxu0 %v1332
    %v1429 = vpop.f32.mrf.mxu0
    %v1430 = vadd.f32 %v1410, %v1429
    %1431 = vmatmul.f32.gmra.mxu0 %v1335
    %v1432 = vpop.f32.mrf.mxu0
    %v1433 = vadd.f32 %v1410, %v1432
    %1434 = vmatmul.f32.gmra.mxu0 %v1338
    %v1435 = vpop.f32.mrf.mxu0
    %v1436 = vadd.f32 %v1410, %v1435
    %1437 = vmatmul.f32.gmra.mxu0 %v1341
    %v1438 = vpop.f32.mrf.mxu0
    %v1439 = vadd.f32 %v1410, %v1438
    %1440 = vmatmul.f32.gmra.mxu0 %v1344
    %v1441 = vpop.f32.mrf.mxu0
    %v1442 = vadd.f32 %v1410, %v1441
    %1443 = vmatmul.f32.gmra.mxu0 %v1347
    %v1444 = vpop.f32.mrf.mxu0
    %v1445 = vadd.f32 %v1410, %v1444
    %1446 = vmatmul.f32.gmra.mxu0 %v1350
    %v1447 = vpop.f32.mrf.mxu0
    %v1448 = vadd.f32 %v1410, %v1447
    %1449 = vmatmul.f32.gmra.mxu0 %v1353
    %v1450 = vpop.f32.mrf.mxu0
    %v1451 = vadd.f32 %v1410, %v1450
    %1452 = vdwg.mxu0
    %1453 = vst.msk [vmem:[#allocation3] sm:$0xff] %vm266, %v1430
    %1454 = vst.msk [vmem:[#allocation3 + $0x8] sm:$0xff] %vm266, %v1433
    %1455 = vst.msk [vmem:[#allocation3 + $0x10] sm:$0xff] %vm266, %v1436
    %1456 = vst.msk [vmem:[#allocation3 + $0x18] sm:$0xff] %vm266, %v1439
    %1457 = vst.msk [vmem:[#allocation3 + $0x20] sm:$0xff] %vm266, %v1442
    %1458 = vst.msk [vmem:[#allocation3 + $0x28] sm:$0xff] %vm266, %v1445
    %1459 = vst.msk [vmem:[#allocation3 + $0x30] sm:$0xff] %vm266, %v1448
    %1460 = vst.msk [vmem:[#allocation3 + $0x38] sm:$0xff] %vm266, %v1451
    %v1461 = vld [vmem:[%s14] sm:$0xff]
    %v1462 = vld [vmem:[%s14 + $0x8] sm:$0xff]
    %v1463 = vld [vmem:[%s14 + $0x10] sm:$0xff]
    %v1464 = vld [vmem:[%s14 + $0x18] sm:$0xff]
    %v1465 = vld [vmem:[%s20] sm:$0x1]
    %v1467 = vperm.slane %v1465, 0
    %1469 = vmatpush.msra.mxu0 0.0
    %1470 = vmatpush.msra.mxu0 0.0
    %1471 = vmatpush.msra.mxu0 0.0
    %1472 = vmatpush.msra.mxu0 0.0
    %1473 = vmatpush.msra.mxu0 0.0
    %1474 = vmatpush.msra.mxu0 0.0
    %1475 = vmatpush.msra.mxu0 0.0
    %1476 = vmatpush.msra.mxu0 0.0
    %1477 = vmatpush.msra.mxu0 0.0
    %1478 = vmatpush.msra.mxu0 0.0
    %1479 = vmatpush.msra.mxu0 0.0
    %1480 = vmatpush.msra.mxu0 0.0
    %1481 = vmatpush.msra.mxu0 %v1464
    %1482 = vmatpush.msra.mxu0 %v1463
    %1483 = vmatpush.msra.mxu0 %v1462
    %1484 = vmatpush.msra.mxu0 %v1461
    %1485 = vmatmul.f32.gmra.mxu0 %v1332
    %v1486 = vpop.f32.mrf.mxu0
    %v1487 = vadd.f32 %v1467, %v1486
    %1488 = vmatmul.f32.gmra.mxu0 %v1335
    %v1489 = vpop.f32.mrf.mxu0
    %v1490 = vadd.f32 %v1467, %v1489
    %1491 = vmatmul.f32.gmra.mxu0 %v1338
    %v1492 = vpop.f32.mrf.mxu0
    %v1493 = vadd.f32 %v1467, %v1492
    %1494 = vmatmul.f32.gmra.mxu0 %v1341
    %v1495 = vpop.f32.mrf.mxu0
    %v1496 = vadd.f32 %v1467, %v1495
    %1497 = vmatmul.f32.gmra.mxu0 %v1344
    %v1498 = vpop.f32.mrf.mxu0
    %v1499 = vadd.f32 %v1467, %v1498
    %1500 = vmatmul.f32.gmra.mxu0 %v1347
    %v1501 = vpop.f32.mrf.mxu0
    %v1502 = vadd.f32 %v1467, %v1501
    %1503 = vmatmul.f32.gmra.mxu0 %v1350
    %v1504 = vpop.f32.mrf.mxu0
    %v1505 = vadd.f32 %v1467, %v1504
    %1506 = vmatmul.f32.gmra.mxu0 %v1353
    %v1507 = vpop.f32.mrf.mxu0
    %v1508 = vadd.f32 %v1467, %v1507
    %1509 = vdwg.mxu0
    %1510 = vst.msk [vmem:[#allocation4] sm:$0xff] %vm266, %v1487
    %1511 = vst.msk [vmem:[#allocation4 + $0x8] sm:$0xff] %vm266, %v1490
    %1512 = vst.msk [vmem:[#allocation4 + $0x10] sm:$0xff] %vm266, %v1493
    %1513 = vst.msk [vmem:[#allocation4 + $0x18] sm:$0xff] %vm266, %v1496
    %1514 = vst.msk [vmem:[#allocation4 + $0x20] sm:$0xff] %vm266, %v1499
    %1515 = vst.msk [vmem:[#allocation4 + $0x28] sm:$0xff] %vm266, %v1502
    %1516 = vst.msk [vmem:[#allocation4 + $0x30] sm:$0xff] %vm266, %v1505
    %1517 = vst.msk [vmem:[#allocation4 + $0x38] sm:$0xff] %vm266, %v1508
    %v1518 = vld [vmem:[%s15] sm:$0xff]
    %v1519 = vld [vmem:[%s15 + $0x8] sm:$0xff]
    %v1520 = vld [vmem:[%s15 + $0x10] sm:$0xff]
    %v1521 = vld [vmem:[%s15 + $0x18] sm:$0xff]
    %v1522 = vld [vmem:[%s16] sm:$0xff]
    %v1523 = vld [vmem:[%s16 + $0x8] sm:$0xff]
    %v1524 = vld [vmem:[%s16 + $0x10] sm:$0xff]
    %v1525 = vld [vmem:[%s16 + $0x18] sm:$0xff]
    %v1526 = vld [vmem:[%s17] sm:$0xff]
    %v1527 = vld [vmem:[%s17 + $0x8] sm:$0xff]
    %v1528 = vld [vmem:[%s17 + $0x10] sm:$0xff]
    %v1529 = vld [vmem:[%s17 + $0x18] sm:$0xff]
    %v1530 = vld [vmem:[%s21] sm:$0x1]
    %s1531 = scalar_lea.vmem %s1, 8
    %v1532 = vld [vmem:[%s1531] sm:$0xff]
    %v1533 = vld [vmem:[#allocation2] sm:$0xff]
    %v1534 = vld [vmem:[#allocation3] sm:$0xff]
    %v1535 = vld [vmem:[#allocation4] sm:$0xff]
    %v1537 = vsel %vm266, %v1532, 0
    %1539 = vmatpush.msra.mxu0 0.0
    %1540 = vmatpush.msra.mxu0 0.0
    %1541 = vmatpush.msra.mxu0 0.0
    %1542 = vmatpush.msra.mxu0 0.0
    %1543 = vmatpush.msra.mxu0 0.0
    %1544 = vmatpush.msra.mxu0 0.0
    %1545 = vmatpush.msra.mxu0 0.0
    %1546 = vmatpush.msra.mxu0 0.0
    %1547 = vmatpush.msra.mxu0 0.0
    %1548 = vmatpush.msra.mxu0 0.0
    %1549 = vmatpush.msra.mxu0 0.0
    %1550 = vmatpush.msra.mxu0 0.0
    %1551 = vmatpush.msra.mxu0 %v1521
    %1552 = vmatpush.msra.mxu0 %v1520
    %1553 = vmatpush.msra.mxu0 %v1519
    %1554 = vmatpush.msra.mxu0 %v1518
    %1555 = vmatmul.f32.gmra.mxu0 %v1537
    %v1556 = vpop.f32.mrf.mxu0
    %v1557 = vadd.f32 0.0, %v1556
    %1558 = vdwg.mxu0
    %v1559 = vadd.f32 %v1533, %v1557
    %v1560 = vxor.u32 %v1559, 2147483648
    %v1561 = vmul.f32 %v1560, 1.442695
    %v1562 = vpow.pop %v1561
    %v1563 = vadd.f32 %v1562, 1.0
    %v1564 = vrcp.pop %v1563
    %v1565 = vmul.f32 %v1563, %v1564
    %v1566 = vsub.f32 1.0, %v1565
    %v1567 = vmul.f32 %v1564, %v1566
    %v1568 = vadd.f32 %v1564, %v1567
    %vm1569 = vweird.f32 %v1563
    %vm1570 = vweird.f32 %v1564
    %vm1571 = vmor %vm1569, %vm1570
    %v1572 = vsel %vm1571, %v1564, %v1568
    %v1573 = vand.u32 2147483647, %v1563
    %vm1574 = vcmp.eq.f32.partialorder %v1573, 8.507059e+37
    %v1575 = vand.u32 %v1563, 2147483648
    %v1576 = vor.u32 1.1754944e-38, %v1575
    %v1577 = vsel %vm1574, %v1576, %v1572
    %v1578 = vmul.f32 1.0, %v1577
    %1579 = vmatpush.msra.mxu0 0.0
    %1580 = vmatpush.msra.mxu0 0.0
    %1581 = vmatpush.msra.mxu0 0.0
    %1582 = vmatpush.msra.mxu0 0.0
    %1583 = vmatpush.msra.mxu0 0.0
    %1584 = vmatpush.msra.mxu0 0.0
    %1585 = vmatpush.msra.mxu0 0.0
    %1586 = vmatpush.msra.mxu0 0.0
    %1587 = vmatpush.msra.mxu0 0.0
    %1588 = vmatpush.msra.mxu0 0.0
    %1589 = vmatpush.msra.mxu0 0.0
    %1590 = vmatpush.msra.mxu0 0.0
    %1591 = vmatpush.msra.mxu0 %v1525
    %1592 = vmatpush.msra.mxu0 %v1524
    %1593 = vmatpush.msra.mxu0 %v1523
    %1594 = vmatpush.msra.mxu0 %v1522
    %1595 = vmatmul.f32.gmra.mxu0 %v1537
    %v1596 = vpop.f32.mrf.mxu0
    %v1597 = vadd.f32 0.0, %v1596
    %1598 = vdwg.mxu0
    %v1599 = vadd.f32 %v1534, %v1597
    %v1600 = vxor.u32 %v1599, 2147483648
    %v1601 = vmul.f32 %v1600, 1.442695
    %v1602 = vpow.pop %v1601
    %v1603 = vadd.f32 %v1602, 1.0
    %v1604 = vrcp.pop %v1603
    %v1605 = vmul.f32 %v1603, %v1604
    %v1606 = vsub.f32 1.0, %v1605
    %v1607 = vmul.f32 %v1604, %v1606
    %v1608 = vadd.f32 %v1604, %v1607
    %vm1609 = vweird.f32 %v1603
    %vm1610 = vweird.f32 %v1604
    %vm1611 = vmor %vm1609, %vm1610
    %v1612 = vsel %vm1611, %v1604, %v1608
    %v1613 = vand.u32 2147483647, %v1603
    %vm1614 = vcmp.eq.f32.partialorder %v1613, 8.507059e+37
    %v1615 = vand.u32 %v1603, 2147483648
    %v1616 = vor.u32 1.1754944e-38, %v1615
    %v1617 = vsel %vm1614, %v1616, %v1612
    %v1618 = vmul.f32 1.0, %v1617
    %v1620 = vperm.slane %v1530, 0
    %1622 = vmatpush.msra.mxu0 0.0
    %1623 = vmatpush.msra.mxu0 0.0
    %1624 = vmatpush.msra.mxu0 0.0
    %1625 = vmatpush.msra.mxu0 0.0
    %1626 = vmatpush.msra.mxu0 0.0
    %1627 = vmatpush.msra.mxu0 0.0
    %1628 = vmatpush.msra.mxu0 0.0
    %1629 = vmatpush.msra.mxu0 0.0
    %1630 = vmatpush.msra.mxu0 0.0
    %1631 = vmatpush.msra.mxu0 0.0
    %1632 = vmatpush.msra.mxu0 0.0
    %1633 = vmatpush.msra.mxu0 0.0
    %1634 = vmatpush.msra.mxu0 %v1529
    %1635 = vmatpush.msra.mxu0 %v1528
    %1636 = vmatpush.msra.mxu0 %v1527
    %1637 = vmatpush.msra.mxu0 %v1526
    %1638 = vmatmul.f32.gmra.mxu0 %v1537
    %v1639 = vpop.f32.mrf.mxu0
    %v1640 = vadd.f32 %v1620, %v1639
    %1641 = vdwg.mxu0
    %v1642 = vmul.f32 %v1578, %v1640
    %v1643 = vadd.f32 %v1535, %v1642
    %v1644 = vtanh.pop %v1643
    %v1645 = vsub.f32 1.0, %v1618
    %v1646 = vmul.f32 %v1645, %v1644
    %v1647 = vmul.f32 %v1618, %v1532
    %v1648 = vadd.f32 %v1646, %v1647
    %1649 = vst.msk [vmem:[#allocation5] sm:$0xff] %vm266, %v1648
    %v1650 = vld [vmem:[#allocation2 + $0x8] sm:$0xff]
    %v1651 = vld [vmem:[#allocation3 + $0x8] sm:$0xff]
    %v1652 = vld [vmem:[#allocation4 + $0x8] sm:$0xff]
    %v1654 = vsel %vm266, %v1648, 0
    %1656 = vmatpush.msra.mxu0 0.0
    %1657 = vmatpush.msra.mxu0 0.0
    %1658 = vmatpush.msra.mxu0 0.0
    %1659 = vmatpush.msra.mxu0 0.0
    %1660 = vmatpush.msra.mxu0 0.0
    %1661 = vmatpush.msra.mxu0 0.0
    %1662 = vmatpush.msra.mxu0 0.0
    %1663 = vmatpush.msra.mxu0 0.0
    %1664 = vmatpush.msra.mxu0 0.0
    %1665 = vmatpush.msra.mxu0 0.0
    %1666 = vmatpush.msra.mxu0 0.0
    %1667 = vmatpush.msra.mxu0 0.0
    %1668 = vmatpush.msra.mxu0 %v1521
    %1669 = vmatpush.msra.mxu0 %v1520
    %1670 = vmatpush.msra.mxu0 %v1519
    %1671 = vmatpush.msra.mxu0 %v1518
    %1672 = vmatmul.f32.gmra.mxu0 %v1654
    %v1673 = vpop.f32.mrf.mxu0
    %v1674 = vadd.f32 0.0, %v1673
    %1675 = vdwg.mxu0
    %v1676 = vadd.f32 %v1650, %v1674
    %v1677 = vxor.u32 %v1676, 2147483648
    %v1678 = vmul.f32 %v1677, 1.442695
    %v1679 = vpow.pop %v1678
    %v1680 = vadd.f32 %v1679, 1.0
    %v1681 = vrcp.pop %v1680
    %v1682 = vmul.f32 %v1680, %v1681
    %v1683 = vsub.f32 1.0, %v1682
    %v1684 = vmul.f32 %v1681, %v1683
    %v1685 = vadd.f32 %v1681, %v1684
    %vm1686 = vweird.f32 %v1680
    %vm1687 = vweird.f32 %v1681
    %vm1688 = vmor %vm1686, %vm1687
    %v1689 = vsel %vm1688, %v1681, %v1685
    %v1690 = vand.u32 2147483647, %v1680
    %vm1691 = vcmp.eq.f32.partialorder %v1690, 8.507059e+37
    %v1692 = vand.u32 %v1680, 2147483648
    %v1693 = vor.u32 1.1754944e-38, %v1692
    %v1694 = vsel %vm1691, %v1693, %v1689
    %v1695 = vmul.f32 1.0, %v1694
    %1696 = vmatpush.msra.mxu0 0.0
    %1697 = vmatpush.msra.mxu0 0.0
    %1698 = vmatpush.msra.mxu0 0.0
    %1699 = vmatpush.msra.mxu0 0.0
    %1700 = vmatpush.msra.mxu0 0.0
    %1701 = vmatpush.msra.mxu0 0.0
    %1702 = vmatpush.msra.mxu0 0.0
    %1703 = vmatpush.msra.mxu0 0.0
    %1704 = vmatpush.msra.mxu0 0.0
    %1705 = vmatpush.msra.mxu0 0.0
    %1706 = vmatpush.msra.mxu0 0.0
    %1707 = vmatpush.msra.mxu0 0.0
    %1708 = vmatpush.msra.mxu0 %v1525
    %1709 = vmatpush.msra.mxu0 %v1524
    %1710 = vmatpush.msra.mxu0 %v1523
    %1711 = vmatpush.msra.mxu0 %v1522
    %1712 = vmatmul.f32.gmra.mxu0 %v1654
    %v1713 = vpop.f32.mrf.mxu0
    %v1714 = vadd.f32 0.0, %v1713
    %1715 = vdwg.mxu0
    %v1716 = vadd.f32 %v1651, %v1714
    %v1717 = vxor.u32 %v1716, 2147483648
    %v1718 = vmul.f32 %v1717, 1.442695
    %v1719 = vpow.pop %v1718
    %v1720 = vadd.f32 %v1719, 1.0
    %v1721 = vrcp.pop %v1720
    %v1722 = vmul.f32 %v1720, %v1721
    %v1723 = vsub.f32 1.0, %v1722
    %v1724 = vmul.f32 %v1721, %v1723
    %v1725 = vadd.f32 %v1721, %v1724
    %vm1726 = vweird.f32 %v1720
    %vm1727 = vweird.f32 %v1721
    %vm1728 = vmor %vm1726, %vm1727
    %v1729 = vsel %vm1728, %v1721, %v1725
    %v1730 = vand.u32 2147483647, %v1720
    %vm1731 = vcmp.eq.f32.partialorder %v1730, 8.507059e+37
    %v1732 = vand.u32 %v1720, 2147483648
    %v1733 = vor.u32 1.1754944e-38, %v1732
    %v1734 = vsel %vm1731, %v1733, %v1729
    %v1735 = vmul.f32 1.0, %v1734
    %1736 = vmatpush.msra.mxu0 0.0
    %1737 = vmatpush.msra.mxu0 0.0
    %1738 = vmatpush.msra.mxu0 0.0
    %1739 = vmatpush.msra.mxu0 0.0
    %1740 = vmatpush.msra.mxu0 0.0
    %1741 = vmatpush.msra.mxu0 0.0
    %1742 = vmatpush.msra.mxu0 0.0
    %1743 = vmatpush.msra.mxu0 0.0
    %1744 = vmatpush.msra.mxu0 0.0
    %1745 = vmatpush.msra.mxu0 0.0
    %1746 = vmatpush.msra.mxu0 0.0
    %1747 = vmatpush.msra.mxu0 0.0
    %1748 = vmatpush.msra.mxu0 %v1529
    %1749 = vmatpush.msra.mxu0 %v1528
    %1750 = vmatpush.msra.mxu0 %v1527
    %1751 = vmatpush.msra.mxu0 %v1526
    %1752 = vmatmul.f32.gmra.mxu0 %v1654
    %v1753 = vpop.f32.mrf.mxu0
    %v1754 = vadd.f32 %v1620, %v1753
    %1755 = vdwg.mxu0
    %v1756 = vmul.f32 %v1695, %v1754
    %v1757 = vadd.f32 %v1652, %v1756
    %v1758 = vtanh.pop %v1757
    %v1759 = vsub.f32 1.0, %v1735
    %v1760 = vmul.f32 %v1759, %v1758
    %v1761 = vmul.f32 %v1735, %v1648
    %v1762 = vadd.f32 %v1760, %v1761
    %1763 = vst.msk [vmem:[#allocation5 + $0x8] sm:$0xff] %vm266, %v1762
    %v1764 = vld [vmem:[#allocation2 + $0x10] sm:$0xff]
    %v1765 = vld [vmem:[#allocation3 + $0x10] sm:$0xff]
    %v1766 = vld [vmem:[#allocation4 + $0x10] sm:$0xff]
    %v1768 = vsel %vm266, %v1762, 0
    %1770 = vmatpush.msra.mxu0 0.0
    %1771 = vmatpush.msra.mxu0 0.0
    %1772 = vmatpush.msra.mxu0 0.0
    %1773 = vmatpush.msra.mxu0 0.0
    %1774 = vmatpush.msra.mxu0 0.0
    %1775 = vmatpush.msra.mxu0 0.0
    %1776 = vmatpush.msra.mxu0 0.0
    %1777 = vmatpush.msra.mxu0 0.0
    %1778 = vmatpush.msra.mxu0 0.0
    %1779 = vmatpush.msra.mxu0 0.0
    %1780 = vmatpush.msra.mxu0 0.0
    %1781 = vmatpush.msra.mxu0 0.0
    %1782 = vmatpush.msra.mxu0 %v1521
    %1783 = vmatpush.msra.mxu0 %v1520
    %1784 = vmatpush.msra.mxu0 %v1519
    %1785 = vmatpush.msra.mxu0 %v1518
    %1786 = vmatmul.f32.gmra.mxu0 %v1768
    %v1787 = vpop.f32.mrf.mxu0
    %v1788 = vadd.f32 0.0, %v1787
    %1789 = vdwg.mxu0
    %v1790 = vadd.f32 %v1764, %v1788
    %v1791 = vxor.u32 %v1790, 2147483648
    %v1792 = vmul.f32 %v1791, 1.442695
    %v1793 = vpow.pop %v1792
    %v1794 = vadd.f32 %v1793, 1.0
    %v1795 = vrcp.pop %v1794
    %v1796 = vmul.f32 %v1794, %v1795
    %v1797 = vsub.f32 1.0, %v1796
    %v1798 = vmul.f32 %v1795, %v1797
    %v1799 = vadd.f32 %v1795, %v1798
    %vm1800 = vweird.f32 %v1794
    %vm1801 = vweird.f32 %v1795
    %vm1802 = vmor %vm1800, %vm1801
    %v1803 = vsel %vm1802, %v1795, %v1799
    %v1804 = vand.u32 2147483647, %v1794
    %vm1805 = vcmp.eq.f32.partialorder %v1804, 8.507059e+37
    %v1806 = vand.u32 %v1794, 2147483648
    %v1807 = vor.u32 1.1754944e-38, %v1806
    %v1808 = vsel %vm1805, %v1807, %v1803
    %v1809 = vmul.f32 1.0, %v1808
    %1810 = vmatpush.msra.mxu0 0.0
    %1811 = vmatpush.msra.mxu0 0.0
    %1812 = vmatpush.msra.mxu0 0.0
    %1813 = vmatpush.msra.mxu0 0.0
    %1814 = vmatpush.msra.mxu0 0.0
    %1815 = vmatpush.msra.mxu0 0.0
    %1816 = vmatpush.msra.mxu0 0.0
    %1817 = vmatpush.msra.mxu0 0.0
    %1818 = vmatpush.msra.mxu0 0.0
    %1819 = vmatpush.msra.mxu0 0.0
    %1820 = vmatpush.msra.mxu0 0.0
    %1821 = vmatpush.msra.mxu0 0.0
    %1822 = vmatpush.msra.mxu0 %v1525
    %1823 = vmatpush.msra.mxu0 %v1524
    %1824 = vmatpush.msra.mxu0 %v1523
    %1825 = vmatpush.msra.mxu0 %v1522
    %1826 = vmatmul.f32.gmra.mxu0 %v1768
    %v1827 = vpop.f32.mrf.mxu0
    %v1828 = vadd.f32 0.0, %v1827
    %1829 = vdwg.mxu0
    %v1830 = vadd.f32 %v1765, %v1828
    %v1831 = vxor.u32 %v1830, 2147483648
    %v1832 = vmul.f32 %v1831, 1.442695
    %v1833 = vpow.pop %v1832
    %v1834 = vadd.f32 %v1833, 1.0
    %v1835 = vrcp.pop %v1834
    %v1836 = vmul.f32 %v1834, %v1835
    %v1837 = vsub.f32 1.0, %v1836
    %v1838 = vmul.f32 %v1835, %v1837
    %v1839 = vadd.f32 %v1835, %v1838
    %vm1840 = vweird.f32 %v1834
    %vm1841 = vweird.f32 %v1835
    %vm1842 = vmor %vm1840, %vm1841
    %v1843 = vsel %vm1842, %v1835, %v1839
    %v1844 = vand.u32 2147483647, %v1834
    %vm1845 = vcmp.eq.f32.partialorder %v1844, 8.507059e+37
    %v1846 = vand.u32 %v1834, 2147483648
    %v1847 = vor.u32 1.1754944e-38, %v1846
    %v1848 = vsel %vm1845, %v1847, %v1843
    %v1849 = vmul.f32 1.0, %v1848
    %1850 = vmatpush.msra.mxu0 0.0
    %1851 = vmatpush.msra.mxu0 0.0
    %1852 = vmatpush.msra.mxu0 0.0
    %1853 = vmatpush.msra.mxu0 0.0
    %1854 = vmatpush.msra.mxu0 0.0
    %1855 = vmatpush.msra.mxu0 0.0
    %1856 = vmatpush.msra.mxu0 0.0
    %1857 = vmatpush.msra.mxu0 0.0
    %1858 = vmatpush.msra.mxu0 0.0
    %1859 = vmatpush.msra.mxu0 0.0
    %1860 = vmatpush.msra.mxu0 0.0
    %1861 = vmatpush.msra.mxu0 0.0
    %1862 = vmatpush.msra.mxu0 %v1529
    %1863 = vmatpush.msra.mxu0 %v1528
    %1864 = vmatpush.msra.mxu0 %v1527
    %1865 = vmatpush.msra.mxu0 %v1526
    %1866 = vmatmul.f32.gmra.mxu0 %v1768
    %v1867 = vpop.f32.mrf.mxu0
    %v1868 = vadd.f32 %v1620, %v1867
    %1869 = vdwg.mxu0
    %v1870 = vmul.f32 %v1809, %v1868
    %v1871 = vadd.f32 %v1766, %v1870
    %v1872 = vtanh.pop %v1871
    %v1873 = vsub.f32 1.0, %v1849
    %v1874 = vmul.f32 %v1873, %v1872
    %v1875 = vmul.f32 %v1849, %v1762
    %v1876 = vadd.f32 %v1874, %v1875
    %1877 = vst.msk [vmem:[#allocation5 + $0x10] sm:$0xff] %vm266, %v1876
    %v1878 = vld [vmem:[#allocation2 + $0x18] sm:$0xff]
    %v1879 = vld [vmem:[#allocation3 + $0x18] sm:$0xff]
    %v1880 = vld [vmem:[#allocation4 + $0x18] sm:$0xff]
    %v1882 = vsel %vm266, %v1876, 0
    %1884 = vmatpush.msra.mxu0 0.0
    %1885 = vmatpush.msra.mxu0 0.0
    %1886 = vmatpush.msra.mxu0 0.0
    %1887 = vmatpush.msra.mxu0 0.0
    %1888 = vmatpush.msra.mxu0 0.0
    %1889 = vmatpush.msra.mxu0 0.0
    %1890 = vmatpush.msra.mxu0 0.0
    %1891 = vmatpush.msra.mxu0 0.0
    %1892 = vmatpush.msra.mxu0 0.0
    %1893 = vmatpush.msra.mxu0 0.0
    %1894 = vmatpush.msra.mxu0 0.0
    %1895 = vmatpush.msra.mxu0 0.0
    %1896 = vmatpush.msra.mxu0 %v1521
    %1897 = vmatpush.msra.mxu0 %v1520
    %1898 = vmatpush.msra.mxu0 %v1519
    %1899 = vmatpush.msra.mxu0 %v1518
    %1900 = vmatmul.f32.gmra.mxu0 %v1882
    %v1901 = vpop.f32.mrf.mxu0
    %v1902 = vadd.f32 0.0, %v1901
    %1903 = vdwg.mxu0
    %v1904 = vadd.f32 %v1878, %v1902
    %v1905 = vxor.u32 %v1904, 2147483648
    %v1906 = vmul.f32 %v1905, 1.442695
    %v1907 = vpow.pop %v1906
    %v1908 = vadd.f32 %v1907, 1.0
    %v1909 = vrcp.pop %v1908
    %v1910 = vmul.f32 %v1908, %v1909
    %v1911 = vsub.f32 1.0, %v1910
    %v1912 = vmul.f32 %v1909, %v1911
    %v1913 = vadd.f32 %v1909, %v1912
    %vm1914 = vweird.f32 %v1908
    %vm1915 = vweird.f32 %v1909
    %vm1916 = vmor %vm1914, %vm1915
    %v1917 = vsel %vm1916, %v1909, %v1913
    %v1918 = vand.u32 2147483647, %v1908
    %vm1919 = vcmp.eq.f32.partialorder %v1918, 8.507059e+37
    %v1920 = vand.u32 %v1908, 2147483648
    %v1921 = vor.u32 1.1754944e-38, %v1920
    %v1922 = vsel %vm1919, %v1921, %v1917
    %v1923 = vmul.f32 1.0, %v1922
    %1924 = vmatpush.msra.mxu0 0.0
    %1925 = vmatpush.msra.mxu0 0.0
    %1926 = vmatpush.msra.mxu0 0.0
    %1927 = vmatpush.msra.mxu0 0.0
    %1928 = vmatpush.msra.mxu0 0.0
    %1929 = vmatpush.msra.mxu0 0.0
    %1930 = vmatpush.msra.mxu0 0.0
    %1931 = vmatpush.msra.mxu0 0.0
    %1932 = vmatpush.msra.mxu0 0.0
    %1933 = vmatpush.msra.mxu0 0.0
    %1934 = vmatpush.msra.mxu0 0.0
    %1935 = vmatpush.msra.mxu0 0.0
    %1936 = vmatpush.msra.mxu0 %v1525
    %1937 = vmatpush.msra.mxu0 %v1524
    %1938 = vmatpush.msra.mxu0 %v1523
    %1939 = vmatpush.msra.mxu0 %v1522
    %1940 = vmatmul.f32.gmra.mxu0 %v1882
    %v1941 = vpop.f32.mrf.mxu0
    %v1942 = vadd.f32 0.0, %v1941
    %1943 = vdwg.mxu0
    %v1944 = vadd.f32 %v1879, %v1942
    %v1945 = vxor.u32 %v1944, 2147483648
    %v1946 = vmul.f32 %v1945, 1.442695
    %v1947 = vpow.pop %v1946
    %v1948 = vadd.f32 %v1947, 1.0
    %v1949 = vrcp.pop %v1948
    %v1950 = vmul.f32 %v1948, %v1949
    %v1951 = vsub.f32 1.0, %v1950
    %v1952 = vmul.f32 %v1949, %v1951
    %v1953 = vadd.f32 %v1949, %v1952
    %vm1954 = vweird.f32 %v1948
    %vm1955 = vweird.f32 %v1949
    %vm1956 = vmor %vm1954, %vm1955
    %v1957 = vsel %vm1956, %v1949, %v1953
    %v1958 = vand.u32 2147483647, %v1948
    %vm1959 = vcmp.eq.f32.partialorder %v1958, 8.507059e+37
    %v1960 = vand.u32 %v1948, 2147483648
    %v1961 = vor.u32 1.1754944e-38, %v1960
    %v1962 = vsel %vm1959, %v1961, %v1957
    %v1963 = vmul.f32 1.0, %v1962
    %1964 = vmatpush.msra.mxu0 0.0
    %1965 = vmatpush.msra.mxu0 0.0
    %1966 = vmatpush.msra.mxu0 0.0
    %1967 = vmatpush.msra.mxu0 0.0
    %1968 = vmatpush.msra.mxu0 0.0
    %1969 = vmatpush.msra.mxu0 0.0
    %1970 = vmatpush.msra.mxu0 0.0
    %1971 = vmatpush.msra.mxu0 0.0
    %1972 = vmatpush.msra.mxu0 0.0
    %1973 = vmatpush.msra.mxu0 0.0
    %1974 = vmatpush.msra.mxu0 0.0
    %1975 = vmatpush.msra.mxu0 0.0
    %1976 = vmatpush.msra.mxu0 %v1529
    %1977 = vmatpush.msra.mxu0 %v1528
    %1978 = vmatpush.msra.mxu0 %v1527
    %1979 = vmatpush.msra.mxu0 %v1526
    %1980 = vmatmul.f32.gmra.mxu0 %v1882
    %v1981 = vpop.f32.mrf.mxu0
    %v1982 = vadd.f32 %v1620, %v1981
    %1983 = vdwg.mxu0
    %v1984 = vmul.f32 %v1923, %v1982
    %v1985 = vadd.f32 %v1880, %v1984
    %v1986 = vtanh.pop %v1985
    %v1987 = vsub.f32 1.0, %v1963
    %v1988 = vmul.f32 %v1987, %v1986
    %v1989 = vmul.f32 %v1963, %v1876
    %v1990 = vadd.f32 %v1988, %v1989
    %1991 = vst.msk [vmem:[#allocation5 + $0x18] sm:$0xff] %vm266, %v1990
    %v1992 = vld [vmem:[#allocation2 + $0x20] sm:$0xff]
    %v1993 = vld [vmem:[#allocation3 + $0x20] sm:$0xff]
    %v1994 = vld [vmem:[#allocation4 + $0x20] sm:$0xff]
    %v1996 = vsel %vm266, %v1990, 0
    %1998 = vmatpush.msra.mxu0 0.0
    %1999 = vmatpush.msra.mxu0 0.0
    %2000 = vmatpush.msra.mxu0 0.0
    %2001 = vmatpush.msra.mxu0 0.0
    %2002 = vmatpush.msra.mxu0 0.0
    %2003 = vmatpush.msra.mxu0 0.0
    %2004 = vmatpush.msra.mxu0 0.0
    %2005 = vmatpush.msra.mxu0 0.0
    %2006 = vmatpush.msra.mxu0 0.0
    %2007 = vmatpush.msra.mxu0 0.0
    %2008 = vmatpush.msra.mxu0 0.0
    %2009 = vmatpush.msra.mxu0 0.0
    %2010 = vmatpush.msra.mxu0 %v1521
    %2011 = vmatpush.msra.mxu0 %v1520
    %2012 = vmatpush.msra.mxu0 %v1519
    %2013 = vmatpush.msra.mxu0 %v1518
    %2014 = vmatmul.f32.gmra.mxu0 %v1996
    %v2015 = vpop.f32.mrf.mxu0
    %v2016 = vadd.f32 0.0, %v2015
    %2017 = vdwg.mxu0
    %v2018 = vadd.f32 %v1992, %v2016
    %v2019 = vxor.u32 %v2018, 2147483648
    %v2020 = vmul.f32 %v2019, 1.442695
    %v2021 = vpow.pop %v2020
    %v2022 = vadd.f32 %v2021, 1.0
    %v2023 = vrcp.pop %v2022
    %v2024 = vmul.f32 %v2022, %v2023
    %v2025 = vsub.f32 1.0, %v2024
    %v2026 = vmul.f32 %v2023, %v2025
    %v2027 = vadd.f32 %v2023, %v2026
    %vm2028 = vweird.f32 %v2022
    %vm2029 = vweird.f32 %v2023
    %vm2030 = vmor %vm2028, %vm2029
    %v2031 = vsel %vm2030, %v2023, %v2027
    %v2032 = vand.u32 2147483647, %v2022
    %vm2033 = vcmp.eq.f32.partialorder %v2032, 8.507059e+37
    %v2034 = vand.u32 %v2022, 2147483648
    %v2035 = vor.u32 1.1754944e-38, %v2034
    %v2036 = vsel %vm2033, %v2035, %v2031
    %v2037 = vmul.f32 1.0, %v2036
    %2038 = vmatpush.msra.mxu0 0.0
    %2039 = vmatpush.msra.mxu0 0.0
    %2040 = vmatpush.msra.mxu0 0.0
    %2041 = vmatpush.msra.mxu0 0.0
    %2042 = vmatpush.msra.mxu0 0.0
    %2043 = vmatpush.msra.mxu0 0.0
    %2044 = vmatpush.msra.mxu0 0.0
    %2045 = vmatpush.msra.mxu0 0.0
    %2046 = vmatpush.msra.mxu0 0.0
    %2047 = vmatpush.msra.mxu0 0.0
    %2048 = vmatpush.msra.mxu0 0.0
    %2049 = vmatpush.msra.mxu0 0.0
    %2050 = vmatpush.msra.mxu0 %v1525
    %2051 = vmatpush.msra.mxu0 %v1524
    %2052 = vmatpush.msra.mxu0 %v1523
    %2053 = vmatpush.msra.mxu0 %v1522
    %2054 = vmatmul.f32.gmra.mxu0 %v1996
    %v2055 = vpop.f32.mrf.mxu0
    %v2056 = vadd.f32 0.0, %v2055
    %2057 = vdwg.mxu0
    %v2058 = vadd.f32 %v1993, %v2056
    %v2059 = vxor.u32 %v2058, 2147483648
    %v2060 = vmul.f32 %v2059, 1.442695
    %v2061 = vpow.pop %v2060
    %v2062 = vadd.f32 %v2061, 1.0
    %v2063 = vrcp.pop %v2062
    %v2064 = vmul.f32 %v2062, %v2063
    %v2065 = vsub.f32 1.0, %v2064
    %v2066 = vmul.f32 %v2063, %v2065
    %v2067 = vadd.f32 %v2063, %v2066
    %vm2068 = vweird.f32 %v2062
    %vm2069 = vweird.f32 %v2063
    %vm2070 = vmor %vm2068, %vm2069
    %v2071 = vsel %vm2070, %v2063, %v2067
    %v2072 = vand.u32 2147483647, %v2062
    %vm2073 = vcmp.eq.f32.partialorder %v2072, 8.507059e+37
    %v2074 = vand.u32 %v2062, 2147483648
    %v2075 = vor.u32 1.1754944e-38, %v2074
    %v2076 = vsel %vm2073, %v2075, %v2071
    %v2077 = vmul.f32 1.0, %v2076
    %2078 = vmatpush.msra.mxu0 0.0
    %2079 = vmatpush.msra.mxu0 0.0
    %2080 = vmatpush.msra.mxu0 0.0
    %2081 = vmatpush.msra.mxu0 0.0
    %2082 = vmatpush.msra.mxu0 0.0
    %2083 = vmatpush.msra.mxu0 0.0
    %2084 = vmatpush.msra.mxu0 0.0
    %2085 = vmatpush.msra.mxu0 0.0
    %2086 = vmatpush.msra.mxu0 0.0
    %2087 = vmatpush.msra.mxu0 0.0
    %2088 = vmatpush.msra.mxu0 0.0
    %2089 = vmatpush.msra.mxu0 0.0
    %2090 = vmatpush.msra.mxu0 %v1529
    %2091 = vmatpush.msra.mxu0 %v1528
    %2092 = vmatpush.msra.mxu0 %v1527
    %2093 = vmatpush.msra.mxu0 %v1526
    %2094 = vmatmul.f32.gmra.mxu0 %v1996
    %v2095 = vpop.f32.mrf.mxu0
    %v2096 = vadd.f32 %v1620, %v2095
    %2097 = vdwg.mxu0
    %v2098 = vmul.f32 %v2037, %v2096
    %v2099 = vadd.f32 %v1994, %v2098
    %v2100 = vtanh.pop %v2099
    %v2101 = vsub.f32 1.0, %v2077
    %v2102 = vmul.f32 %v2101, %v2100
    %v2103 = vmul.f32 %v2077, %v1990
    %v2104 = vadd.f32 %v2102, %v2103
    %2105 = vst.msk [vmem:[#allocation5 + $0x20] sm:$0xff] %vm266, %v2104
    %v2106 = vld [vmem:[#allocation2 + $0x28] sm:$0xff]
    %v2107 = vld [vmem:[#allocation3 + $0x28] sm:$0xff]
    %v2108 = vld [vmem:[#allocation4 + $0x28] sm:$0xff]
    %v2110 = vsel %vm266, %v2104, 0
    %2112 = vmatpush.msra.mxu0 0.0
    %2113 = vmatpush.msra.mxu0 0.0
    %2114 = vmatpush.msra.mxu0 0.0
    %2115 = vmatpush.msra.mxu0 0.0
    %2116 = vmatpush.msra.mxu0 0.0
    %2117 = vmatpush.msra.mxu0 0.0
    %2118 = vmatpush.msra.mxu0 0.0
    %2119 = vmatpush.msra.mxu0 0.0
    %2120 = vmatpush.msra.mxu0 0.0
    %2121 = vmatpush.msra.mxu0 0.0
    %2122 = vmatpush.msra.mxu0 0.0
    %2123 = vmatpush.msra.mxu0 0.0
    %2124 = vmatpush.msra.mxu0 %v1521
    %2125 = vmatpush.msra.mxu0 %v1520
    %2126 = vmatpush.msra.mxu0 %v1519
    %2127 = vmatpush.msra.mxu0 %v1518
    %2128 = vmatmul.f32.gmra.mxu0 %v2110
    %v2129 = vpop.f32.mrf.mxu0
    %v2130 = vadd.f32 0.0, %v2129
    %2131 = vdwg.mxu0
    %v2132 = vadd.f32 %v2106, %v2130
    %v2133 = vxor.u32 %v2132, 2147483648
    %v2134 = vmul.f32 %v2133, 1.442695
    %v2135 = vpow.pop %v2134
    %v2136 = vadd.f32 %v2135, 1.0
    %v2137 = vrcp.pop %v2136
    %v2138 = vmul.f32 %v2136, %v2137
    %v2139 = vsub.f32 1.0, %v2138
    %v2140 = vmul.f32 %v2137, %v2139
    %v2141 = vadd.f32 %v2137, %v2140
    %vm2142 = vweird.f32 %v2136
    %vm2143 = vweird.f32 %v2137
    %vm2144 = vmor %vm2142, %vm2143
    %v2145 = vsel %vm2144, %v2137, %v2141
    %v2146 = vand.u32 2147483647, %v2136
    %vm2147 = vcmp.eq.f32.partialorder %v2146, 8.507059e+37
    %v2148 = vand.u32 %v2136, 2147483648
    %v2149 = vor.u32 1.1754944e-38, %v2148
    %v2150 = vsel %vm2147, %v2149, %v2145
    %v2151 = vmul.f32 1.0, %v2150
    %2152 = vmatpush.msra.mxu0 0.0
    %2153 = vmatpush.msra.mxu0 0.0
    %2154 = vmatpush.msra.mxu0 0.0
    %2155 = vmatpush.msra.mxu0 0.0
    %2156 = vmatpush.msra.mxu0 0.0
    %2157 = vmatpush.msra.mxu0 0.0
    %2158 = vmatpush.msra.mxu0 0.0
    %2159 = vmatpush.msra.mxu0 0.0
    %2160 = vmatpush.msra.mxu0 0.0
    %2161 = vmatpush.msra.mxu0 0.0
    %2162 = vmatpush.msra.mxu0 0.0
    %2163 = vmatpush.msra.mxu0 0.0
    %2164 = vmatpush.msra.mxu0 %v1525
    %2165 = vmatpush.msra.mxu0 %v1524
    %2166 = vmatpush.msra.mxu0 %v1523
    %2167 = vmatpush.msra.mxu0 %v1522
    %2168 = vmatmul.f32.gmra.mxu0 %v2110
    %v2169 = vpop.f32.mrf.mxu0
    %v2170 = vadd.f32 0.0, %v2169
    %2171 = vdwg.mxu0
    %v2172 = vadd.f32 %v2107, %v2170
    %v2173 = vxor.u32 %v2172, 2147483648
    %v2174 = vmul.f32 %v2173, 1.442695
    %v2175 = vpow.pop %v2174
    %v2176 = vadd.f32 %v2175, 1.0
    %v2177 = vrcp.pop %v2176
    %v2178 = vmul.f32 %v2176, %v2177
    %v2179 = vsub.f32 1.0, %v2178
    %v2180 = vmul.f32 %v2177, %v2179
    %v2181 = vadd.f32 %v2177, %v2180
    %vm2182 = vweird.f32 %v2176
    %vm2183 = vweird.f32 %v2177
    %vm2184 = vmor %vm2182, %vm2183
    %v2185 = vsel %vm2184, %v2177, %v2181
    %v2186 = vand.u32 2147483647, %v2176
    %vm2187 = vcmp.eq.f32.partialorder %v2186, 8.507059e+37
    %v2188 = vand.u32 %v2176, 2147483648
    %v2189 = vor.u32 1.1754944e-38, %v2188
    %v2190 = vsel %vm2187, %v2189, %v2185
    %v2191 = vmul.f32 1.0, %v2190
    %2192 = vmatpush.msra.mxu0 0.0
    %2193 = vmatpush.msra.mxu0 0.0
    %2194 = vmatpush.msra.mxu0 0.0
    %2195 = vmatpush.msra.mxu0 0.0
    %2196 = vmatpush.msra.mxu0 0.0
    %2197 = vmatpush.msra.mxu0 0.0
    %2198 = vmatpush.msra.mxu0 0.0
    %2199 = vmatpush.msra.mxu0 0.0
    %2200 = vmatpush.msra.mxu0 0.0
    %2201 = vmatpush.msra.mxu0 0.0
    %2202 = vmatpush.msra.mxu0 0.0
    %2203 = vmatpush.msra.mxu0 0.0
    %2204 = vmatpush.msra.mxu0 %v1529
    %2205 = vmatpush.msra.mxu0 %v1528
    %2206 = vmatpush.msra.mxu0 %v1527
    %2207 = vmatpush.msra.mxu0 %v1526
    %2208 = vmatmul.f32.gmra.mxu0 %v2110
    %v2209 = vpop.f32.mrf.mxu0
    %v2210 = vadd.f32 %v1620, %v2209
    %2211 = vdwg.mxu0
    %v2212 = vmul.f32 %v2151, %v2210
    %v2213 = vadd.f32 %v2108, %v2212
    %v2214 = vtanh.pop %v2213
    %v2215 = vsub.f32 1.0, %v2191
    %v2216 = vmul.f32 %v2215, %v2214
    %v2217 = vmul.f32 %v2191, %v2104
    %v2218 = vadd.f32 %v2216, %v2217
    %2219 = vst.msk [vmem:[#allocation5 + $0x28] sm:$0xff] %vm266, %v2218
    %v2220 = vld [vmem:[#allocation2 + $0x30] sm:$0xff]
    %v2221 = vld [vmem:[#allocation3 + $0x30] sm:$0xff]
    %v2222 = vld [vmem:[#allocation4 + $0x30] sm:$0xff]
    %v2224 = vsel %vm266, %v2218, 0
    %2226 = vmatpush.msra.mxu0 0.0
    %2227 = vmatpush.msra.mxu0 0.0
    %2228 = vmatpush.msra.mxu0 0.0
    %2229 = vmatpush.msra.mxu0 0.0
    %2230 = vmatpush.msra.mxu0 0.0
    %2231 = vmatpush.msra.mxu0 0.0
    %2232 = vmatpush.msra.mxu0 0.0
    %2233 = vmatpush.msra.mxu0 0.0
    %2234 = vmatpush.msra.mxu0 0.0
    %2235 = vmatpush.msra.mxu0 0.0
    %2236 = vmatpush.msra.mxu0 0.0
    %2237 = vmatpush.msra.mxu0 0.0
    %2238 = vmatpush.msra.mxu0 %v1521
    %2239 = vmatpush.msra.mxu0 %v1520
    %2240 = vmatpush.msra.mxu0 %v1519
    %2241 = vmatpush.msra.mxu0 %v1518
    %2242 = vmatmul.f32.gmra.mxu0 %v2224
    %v2243 = vpop.f32.mrf.mxu0
    %v2244 = vadd.f32 0.0, %v2243
    %2245 = vdwg.mxu0
    %v2246 = vadd.f32 %v2220, %v2244
    %v2247 = vxor.u32 %v2246, 2147483648
    %v2248 = vmul.f32 %v2247, 1.442695
    %v2249 = vpow.pop %v2248
    %v2250 = vadd.f32 %v2249, 1.0
    %v2251 = vrcp.pop %v2250
    %v2252 = vmul.f32 %v2250, %v2251
    %v2253 = vsub.f32 1.0, %v2252
    %v2254 = vmul.f32 %v2251, %v2253
    %v2255 = vadd.f32 %v2251, %v2254
    %vm2256 = vweird.f32 %v2250
    %vm2257 = vweird.f32 %v2251
    %vm2258 = vmor %vm2256, %vm2257
    %v2259 = vsel %vm2258, %v2251, %v2255
    %v2260 = vand.u32 2147483647, %v2250
    %vm2261 = vcmp.eq.f32.partialorder %v2260, 8.507059e+37
    %v2262 = vand.u32 %v2250, 2147483648
    %v2263 = vor.u32 1.1754944e-38, %v2262
    %v2264 = vsel %vm2261, %v2263, %v2259
    %v2265 = vmul.f32 1.0, %v2264
    %2266 = vmatpush.msra.mxu0 0.0
    %2267 = vmatpush.msra.mxu0 0.0
    %2268 = vmatpush.msra.mxu0 0.0
    %2269 = vmatpush.msra.mxu0 0.0
    %2270 = vmatpush.msra.mxu0 0.0
    %2271 = vmatpush.msra.mxu0 0.0
    %2272 = vmatpush.msra.mxu0 0.0
    %2273 = vmatpush.msra.mxu0 0.0
    %2274 = vmatpush.msra.mxu0 0.0
    %2275 = vmatpush.msra.mxu0 0.0
    %2276 = vmatpush.msra.mxu0 0.0
    %2277 = vmatpush.msra.mxu0 0.0
    %2278 = vmatpush.msra.mxu0 %v1525
    %2279 = vmatpush.msra.mxu0 %v1524
    %2280 = vmatpush.msra.mxu0 %v1523
    %2281 = vmatpush.msra.mxu0 %v1522
    %2282 = vmatmul.f32.gmra.mxu0 %v2224
    %v2283 = vpop.f32.mrf.mxu0
    %v2284 = vadd.f32 0.0, %v2283
    %2285 = vdwg.mxu0
    %v2286 = vadd.f32 %v2221, %v2284
    %v2287 = vxor.u32 %v2286, 2147483648
    %v2288 = vmul.f32 %v2287, 1.442695
    %v2289 = vpow.pop %v2288
    %v2290 = vadd.f32 %v2289, 1.0
    %v2291 = vrcp.pop %v2290
    %v2292 = vmul.f32 %v2290, %v2291
    %v2293 = vsub.f32 1.0, %v2292
    %v2294 = vmul.f32 %v2291, %v2293
    %v2295 = vadd.f32 %v2291, %v2294
    %vm2296 = vweird.f32 %v2290
    %vm2297 = vweird.f32 %v2291
    %vm2298 = vmor %vm2296, %vm2297
    %v2299 = vsel %vm2298, %v2291, %v2295
    %v2300 = vand.u32 2147483647, %v2290
    %vm2301 = vcmp.eq.f32.partialorder %v2300, 8.507059e+37
    %v2302 = vand.u32 %v2290, 2147483648
    %v2303 = vor.u32 1.1754944e-38, %v2302
    %v2304 = vsel %vm2301, %v2303, %v2299
    %v2305 = vmul.f32 1.0, %v2304
    %2306 = vmatpush.msra.mxu0 0.0
    %2307 = vmatpush.msra.mxu0 0.0
    %2308 = vmatpush.msra.mxu0 0.0
    %2309 = vmatpush.msra.mxu0 0.0
    %2310 = vmatpush.msra.mxu0 0.0
    %2311 = vmatpush.msra.mxu0 0.0
    %2312 = vmatpush.msra.mxu0 0.0
    %2313 = vmatpush.msra.mxu0 0.0
    %2314 = vmatpush.msra.mxu0 0.0
    %2315 = vmatpush.msra.mxu0 0.0
    %2316 = vmatpush.msra.mxu0 0.0
    %2317 = vmatpush.msra.mxu0 0.0
    %2318 = vmatpush.msra.mxu0 %v1529
    %2319 = vmatpush.msra.mxu0 %v1528
    %2320 = vmatpush.msra.mxu0 %v1527
    %2321 = vmatpush.msra.mxu0 %v1526
    %2322 = vmatmul.f32.gmra.mxu0 %v2224
    %v2323 = vpop.f32.mrf.mxu0
    %v2324 = vadd.f32 %v1620, %v2323
    %2325 = vdwg.mxu0
    %v2326 = vmul.f32 %v2265, %v2324
    %v2327 = vadd.f32 %v2222, %v2326
    %v2328 = vtanh.pop %v2327
    %v2329 = vsub.f32 1.0, %v2305
    %v2330 = vmul.f32 %v2329, %v2328
    %v2331 = vmul.f32 %v2305, %v2218
    %v2332 = vadd.f32 %v2330, %v2331
    %2333 = vst.msk [vmem:[#allocation5 + $0x30] sm:$0xff] %vm266, %v2332
    %v2334 = vld [vmem:[#allocation2 + $0x38] sm:$0xff]
    %v2335 = vld [vmem:[#allocation3 + $0x38] sm:$0xff]
    %v2336 = vld [vmem:[#allocation4 + $0x38] sm:$0xff]
    %v2338 = vsel %vm266, %v2332, 0
    %2340 = vmatpush.msra.mxu0 0.0
    %2341 = vmatpush.msra.mxu0 0.0
    %2342 = vmatpush.msra.mxu0 0.0
    %2343 = vmatpush.msra.mxu0 0.0
    %2344 = vmatpush.msra.mxu0 0.0
    %2345 = vmatpush.msra.mxu0 0.0
    %2346 = vmatpush.msra.mxu0 0.0
    %2347 = vmatpush.msra.mxu0 0.0
    %2348 = vmatpush.msra.mxu0 0.0
    %2349 = vmatpush.msra.mxu0 0.0
    %2350 = vmatpush.msra.mxu0 0.0
    %2351 = vmatpush.msra.mxu0 0.0
    %2352 = vmatpush.msra.mxu0 %v1521
    %2353 = vmatpush.msra.mxu0 %v1520
    %2354 = vmatpush.msra.mxu0 %v1519
    %2355 = vmatpush.msra.mxu0 %v1518
    %2356 = vmatmul.f32.gmra.mxu0 %v2338
    %v2357 = vpop.f32.mrf.mxu0
    %v2358 = vadd.f32 0.0, %v2357
    %2359 = vdwg.mxu0
    %v2360 = vadd.f32 %v2334, %v2358
    %v2361 = vxor.u32 %v2360, 2147483648
    %v2362 = vmul.f32 %v2361, 1.442695
    %v2363 = vpow.pop %v2362
    %v2364 = vadd.f32 %v2363, 1.0
    %v2365 = vrcp.pop %v2364
    %v2366 = vmul.f32 %v2364, %v2365
    %v2367 = vsub.f32 1.0, %v2366
    %v2368 = vmul.f32 %v2365, %v2367
    %v2369 = vadd.f32 %v2365, %v2368
    %vm2370 = vweird.f32 %v2364
    %vm2371 = vweird.f32 %v2365
    %vm2372 = vmor %vm2370, %vm2371
    %v2373 = vsel %vm2372, %v2365, %v2369
    %v2374 = vand.u32 2147483647, %v2364
    %vm2375 = vcmp.eq.f32.partialorder %v2374, 8.507059e+37
    %v2376 = vand.u32 %v2364, 2147483648
    %v2377 = vor.u32 1.1754944e-38, %v2376
    %v2378 = vsel %vm2375, %v2377, %v2373
    %v2379 = vmul.f32 1.0, %v2378
    %2380 = vmatpush.msra.mxu0 0.0
    %2381 = vmatpush.msra.mxu0 0.0
    %2382 = vmatpush.msra.mxu0 0.0
    %2383 = vmatpush.msra.mxu0 0.0
    %2384 = vmatpush.msra.mxu0 0.0
    %2385 = vmatpush.msra.mxu0 0.0
    %2386 = vmatpush.msra.mxu0 0.0
    %2387 = vmatpush.msra.mxu0 0.0
    %2388 = vmatpush.msra.mxu0 0.0
    %2389 = vmatpush.msra.mxu0 0.0
    %2390 = vmatpush.msra.mxu0 0.0
    %2391 = vmatpush.msra.mxu0 0.0
    %2392 = vmatpush.msra.mxu0 %v1525
    %2393 = vmatpush.msra.mxu0 %v1524
    %2394 = vmatpush.msra.mxu0 %v1523
    %2395 = vmatpush.msra.mxu0 %v1522
    %2396 = vmatmul.f32.gmra.mxu0 %v2338
    %v2397 = vpop.f32.mrf.mxu0
    %v2398 = vadd.f32 0.0, %v2397
    %2399 = vdwg.mxu0
    %v2400 = vadd.f32 %v2335, %v2398
    %v2401 = vxor.u32 %v2400, 2147483648
    %v2402 = vmul.f32 %v2401, 1.442695
    %v2403 = vpow.pop %v2402
    %v2404 = vadd.f32 %v2403, 1.0
    %v2405 = vrcp.pop %v2404
    %v2406 = vmul.f32 %v2404, %v2405
    %v2407 = vsub.f32 1.0, %v2406
    %v2408 = vmul.f32 %v2405, %v2407
    %v2409 = vadd.f32 %v2405, %v2408
    %vm2410 = vweird.f32 %v2404
    %vm2411 = vweird.f32 %v2405
    %vm2412 = vmor %vm2410, %vm2411
    %v2413 = vsel %vm2412, %v2405, %v2409
    %v2414 = vand.u32 2147483647, %v2404
    %vm2415 = vcmp.eq.f32.partialorder %v2414, 8.507059e+37
    %v2416 = vand.u32 %v2404, 2147483648
    %v2417 = vor.u32 1.1754944e-38, %v2416
    %v2418 = vsel %vm2415, %v2417, %v2413
    %v2419 = vmul.f32 1.0, %v2418
    %2420 = vmatpush.msra.mxu0 0.0
    %2421 = vmatpush.msra.mxu0 0.0
    %2422 = vmatpush.msra.mxu0 0.0
    %2423 = vmatpush.msra.mxu0 0.0
    %2424 = vmatpush.msra.mxu0 0.0
    %2425 = vmatpush.msra.mxu0 0.0
    %2426 = vmatpush.msra.mxu0 0.0
    %2427 = vmatpush.msra.mxu0 0.0
    %2428 = vmatpush.msra.mxu0 0.0
    %2429 = vmatpush.msra.mxu0 0.0
    %2430 = vmatpush.msra.mxu0 0.0
    %2431 = vmatpush.msra.mxu0 0.0
    %2432 = vmatpush.msra.mxu0 %v1529
    %2433 = vmatpush.msra.mxu0 %v1528
    %2434 = vmatpush.msra.mxu0 %v1527
    %2435 = vmatpush.msra.mxu0 %v1526
    %2436 = vmatmul.f32.gmra.mxu0 %v2338
    %v2437 = vpop.f32.mrf.mxu0
    %v2438 = vadd.f32 %v1620, %v2437
    %2439 = vdwg.mxu0
    %v2440 = vmul.f32 %v2379, %v2438
    %v2441 = vadd.f32 %v2336, %v2440
    %v2442 = vtanh.pop %v2441
    %v2443 = vsub.f32 1.0, %v2419
    %v2444 = vmul.f32 %v2443, %v2442
    %v2445 = vmul.f32 %v2419, %v2332
    %v2446 = vadd.f32 %v2444, %v2445
    %2447 = vst.msk [vmem:[#allocation5 + $0x38] sm:$0xff] %vm266, %v2446
    %s2448 = scalar_lea.vmem %s25, 8
    %2449 = vst.msk [vmem:[%s2448] sm:$0xff] %vm266, %v2446
    %v2450 = vld [vmem:[#allocation5] sm:$0xff]
    %v2451 = vld [vmem:[#allocation5 + $0x8] sm:$0xff]
    %v2452 = vld [vmem:[#allocation5 + $0x10] sm:$0xff]
    %v2453 = vld [vmem:[#allocation5 + $0x18] sm:$0xff]
    %v2454 = vld [vmem:[#allocation5 + $0x20] sm:$0xff]
    %v2455 = vld [vmem:[#allocation5 + $0x28] sm:$0xff]
    %v2456 = vld [vmem:[#allocation5 + $0x30] sm:$0xff]
    %v2457 = vld [vmem:[#allocation5 + $0x38] sm:$0xff]
    %v2458 = vld [vmem:[%s22] sm:$0xff]
    %v2459 = vld [vmem:[%s22 + $0x8] sm:$0xff]
    %v2460 = vld [vmem:[%s22 + $0x10] sm:$0xff]
    %v2461 = vld [vmem:[%s22 + $0x18] sm:$0xff]
    %v2462 = vld [vmem:[%s23] sm:$0x1]
    %v2464 = vperm.slane %v2462, 0
    %v2467 = vsel %vm266, %v2450, 0
    %v2470 = vsel %vm266, %v2451, 0
    %v2473 = vsel %vm266, %v2452, 0
    %v2476 = vsel %vm266, %v2453, 0
    %v2479 = vsel %vm266, %v2454, 0
    %v2482 = vsel %vm266, %v2455, 0
    %v2485 = vsel %vm266, %v2456, 0
    %v2488 = vsel %vm266, %v2457, 0
    %2490 = vmatpush.msra.mxu0 0.0
    %2491 = vmatpush.msra.mxu0 0.0
    %2492 = vmatpush.msra.mxu0 0.0
    %2493 = vmatpush.msra.mxu0 0.0
    %2494 = vmatpush.msra.mxu0 0.0
    %2495 = vmatpush.msra.mxu0 0.0
    %2496 = vmatpush.msra.mxu0 0.0
    %2497 = vmatpush.msra.mxu0 0.0
    %2498 = vmatpush.msra.mxu0 0.0
    %2499 = vmatpush.msra.mxu0 0.0
    %2500 = vmatpush.msra.mxu0 0.0
    %2501 = vmatpush.msra.mxu0 0.0
    %2502 = vmatpush.msra.mxu0 %v2461
    %2503 = vmatpush.msra.mxu0 %v2460
    %2504 = vmatpush.msra.mxu0 %v2459
    %2505 = vmatpush.msra.mxu0 %v2458
    %2506 = vmatmul.f32.gmra.mxu0 %v2467
    %v2507 = vpop.f32.mrf.mxu0
    %v2508 = vadd.f32 %v2464, %v2507
    %2509 = vmatmul.f32.gmra.mxu0 %v2470
    %v2510 = vpop.f32.mrf.mxu0
    %v2511 = vadd.f32 %v2464, %v2510
    %2512 = vmatmul.f32.gmra.mxu0 %v2473
    %v2513 = vpop.f32.mrf.mxu0
    %v2514 = vadd.f32 %v2464, %v2513
    %2515 = vmatmul.f32.gmra.mxu0 %v2476
    %v2516 = vpop.f32.mrf.mxu0
    %v2517 = vadd.f32 %v2464, %v2516
    %2518 = vmatmul.f32.gmra.mxu0 %v2479
    %v2519 = vpop.f32.mrf.mxu0
    %v2520 = vadd.f32 %v2464, %v2519
    %2521 = vmatmul.f32.gmra.mxu0 %v2482
    %v2522 = vpop.f32.mrf.mxu0
    %v2523 = vadd.f32 %v2464, %v2522
    %2524 = vmatmul.f32.gmra.mxu0 %v2485
    %v2525 = vpop.f32.mrf.mxu0
    %v2526 = vadd.f32 %v2464, %v2525
    %2527 = vmatmul.f32.gmra.mxu0 %v2488
    %v2528 = vpop.f32.mrf.mxu0
    %v2529 = vadd.f32 %v2464, %v2528
    %2530 = vdwg.mxu0
    %2531 = vst.msk [vmem:[%s24] sm:$0xff] %vm200, %v2508
    %2532 = vst.msk [vmem:[%s24 + $0x8] sm:$0xff] %vm200, %v2511
    %2533 = vst.msk [vmem:[%s24 + $0x10] sm:$0xff] %vm200, %v2514
    %2534 = vst.msk [vmem:[%s24 + $0x18] sm:$0xff] %vm200, %v2517
    %2535 = vst.msk [vmem:[%s24 + $0x20] sm:$0xff] %vm200, %v2520
    %2536 = vst.msk [vmem:[%s24 + $0x28] sm:$0xff] %vm200, %v2523
    %2537 = vst.msk [vmem:[%s24 + $0x30] sm:$0xff] %vm200, %v2526
    %2538 = vst.msk [vmem:[%s24 + $0x38] sm:$0xff] %vm200, %v2529
    // Predicated region
    $region126: #{alice_forward.1} parent=1 // pred_check
      _
    $region127: #{alice_forward.1} parent=1 // pred_check_branch
      %2540 = sbr.rel (0) target = $region129
    $region128: #{alice_forward.1} parent=1 // pred_region
      _
    $region129: #{alice_forward.1} parent=1 // pred_fallthru
      _
    // Predicated region
    $region130: #{alice_forward.1} parent=1 // pred_check
      _
    $region131: #{alice_forward.1} parent=1 // pred_check_branch
      %2542 = sbr.rel (0) target = $region133
    $region132: #{alice_forward.1} parent=1 // pred_region
      _
    $region133: #{alice_forward.1} parent=1 // pred_fallthru
      _
    // Predicated region
    $region134: #{alice_forward.1} parent=1 // pred_check
      _
    $region135: #{alice_forward.1} parent=1 // pred_check_branch
      %2544 = sbr.rel (0) target = $region137
    $region136: #{alice_forward.1} parent=1 // pred_region
      _
    $region137: #{alice_forward.1} parent=1 // pred_fallthru
      _
    // Predicated region
    $region138: #{alice_forward.1} parent=1 // pred_check
      _
    $region139: #{alice_forward.1} parent=1 // pred_check_branch
      %2546 = sbr.rel (0) target = $region141
    $region140: #{alice_forward.1} parent=1 // pred_region
      _
    $region141: #{alice_forward.1} parent=1 // pred_fallthru
      _
    %2547 = vsyncpa [#allocation7], 1
    %2548 = vsyncpa [#allocation9], 1
    %2549 = vsyncpa [#allocation12], 1
    %2550 = vsyncpa [#allocation15], 1

</llo_original>
